<compile_context>
chip_gen: v7x
topology: tpu7x:2x2x1
jax: 0.10.0
libtpu: 0.0.40
codegen_flags: <defaults>
</compile_context>

<pallas_src>
import functools

import jax
import jax.numpy as jnp
import numpy as np
from jax.experimental import pallas as pl
from jax.experimental.pallas import tpu as pltpu

EPS = 1e-5            # BatchNorm eps (PyTorch default)
LRELU_SLOPE = 0.2
KSIZE = 4             # conv kernel size; stride 2, pad 1 throughout
INPUT_SIZE = 32       # fixed by the PyTorch module
N_LAYERS = 4


def _log2(v: int) -> int:
    assert v > 0 and (v & (v - 1)) == 0, f"power of two required, got {v}"
    return v.bit_length() - 1


# ------------------------------- fused kernel -------------------------------

def _disc_fused_kernel(x_ref, t0_ref, t1_ref, t2_ref, t3_ref,
                       g1_ref, b1_ref, g2_ref, b2_ref, g3_ref, b3_ref,
                       wfc_ref, bfc_ref, o_ref, *, cfg, n_batch):
    """Whole Discriminator forward in one kernel.

    cfg: 4-tuple of (H, C_in_padded, C_out) per conv layer (static).
    Activation layout: [N*H, W*C], row = (sample, h), lane = (w, channel).
    """
    f32, bf16 = jnp.float32, jnp.bfloat16

    def gather_rows(act, h, ho, kh):
        # B_kh[(n,i), :] = act[(n, 2i+kh-1), :]  (zero when out of range, which
        # realizes the conv's H zero-padding).  Done as a matmul against a 0/1
        # selection matrix built from iotas: no strided / data-dependent loads.
        r_dim, q_dim = n_batch * ho, n_batch * h
        r = jax.lax.broadcasted_iota(jnp.int32, (r_dim, q_dim), 0)
        q = jax.lax.broadcasted_iota(jnp.int32, (r_dim, q_dim), 1)
        n_r = r >> _log2(ho)
        i_r = r & (ho - 1)
        n_q = q >> _log2(h)
        h_q = q & (h - 1)
        sel = (n_q == n_r) & (h_q == 2 * i_r + (kh - 1))
        s = jnp.where(sel, 1.0, 0.0).astype(bf16)
        return jnp.dot(s, act, preferred_element_type=f32).astype(bf16)

    def conv_lrelu(act, t_ref, h, c_in, c_out):
        # k=4 / s=2 / p=1 conv as 4 row gathers + 4 accumulating matmuls
        # against block-Toeplitz weight slabs (W taps + W padding baked in).
        ho = h // 2
        wc = h * c_in                         # input lane width (= 128 here)
        acc = None
        for kh in range(4):
            b_kh = gather_rows(act, h, ho, kh)                 # [n*ho, wc] bf16
            t_kh = t_ref[kh * wc:(kh + 1) * wc, :]             # [wc, ho*c_out] bf16
            d = jnp.dot(b_kh, t_kh, preferred_element_type=f32)
            acc = d if acc is None else acc + d
        return jnp.where(acc > 0, acc, LRELU_SLOPE * acc)      # LeakyReLU(0.2), f32

    def batchnorm(y, w_out, c_out, g_ref, b_ref):
        # Training-mode BatchNorm over (sample, h, w), applied AFTER LeakyReLU
        # exactly like the reference forward loop.  One-pass stats; the
        # per-channel group sum + broadcast over the interleaved (w, c) lane
        # axis is a single small matmul against an iota-built 0/1 matrix.
        rows, lanes = y.shape
        s1 = jnp.sum(y, axis=0, keepdims=True)                 # [1, lanes]
        s2 = jnp.sum(y * y, axis=0, keepdims=True)
        p = jax.lax.broadcasted_iota(jnp.int32, (lanes, lanes), 0)
        q = jax.lax.broadcasted_iota(jnp.int32, (lanes, lanes), 1)
        grp = jnp.where((p & (c_out - 1)) == (q & (c_out - 1)), 1.0, 0.0)
        inv_cnt = 1.0 / float(rows * w_out)
        mean = jnp.dot(s1, grp, preferred_element_type=f32) * inv_cnt
        ex2 = jnp.dot(s2, grp, preferred_element_type=f32) * inv_cnt
        var = ex2 - mean * mean                                # biased (training BN)
        inv_std = jax.lax.rsqrt(var + EPS)
        return (y - mean) * (inv_std * g_ref[...]) + b_ref[...]

    (h0, ci0, co0), (h1, ci1, co1), (h2, ci2, co2), (h3, ci3, co3) = cfg

    act = x_ref[...]                                           # bf16 [n*32, 128]
    y = conv_lrelu(act, t0_ref, h0, ci0, co0)                  # layer 0: no BN
    y = batchnorm(conv_lrelu(y.astype(bf16), t1_ref, h1, ci1, co1),
                  h1 // 2, co1, g1_ref, b1_ref)
    y = batchnorm(conv_lrelu(y.astype(bf16), t2_ref, h2, ci2, co2),
                  h2 // 2, co2, g2_ref, b2_ref)
    y = batchnorm(conv_lrelu(y.astype(bf16), t3_ref, h3, ci3, co3),
                  h3 // 2, co3, g3_ref, b3_ref)
    # y: f32 [n*2, 2*co3]; row = (sample, out_row i), lane = (out_col j, chan c)

    # Fused FC head; NCHW flatten order handled by the precomputed weight
    # pattern: logits[n] = sum_{i,j,c} y[(n,i),(j,c)] * Wfc[c*4 + i*2 + j] + b.
    rows3, lanes3 = y.shape
    rps = rows3 // n_batch                                     # rows per sample = 2
    par = jax.lax.broadcasted_iota(jnp.int32, (rows3, lanes3), 0) & (rps - 1)
    wbig = jnp.where(par == 0, wfc_ref[0:1, :], wfc_ref[1:2, :])   # [rows3, lanes3]
    prod = y * wbig
    gi = jax.lax.broadcasted_iota(jnp.int32, (n_batch, rows3), 0)
    ri = jax.lax.broadcasted_iota(jnp.int32, (n_batch, rows3), 1)
    pair = jnp.where((ri >> _log2(rps)) == gi, 1.0, 0.0)           # [n, rows3]
    per_sample = jnp.dot(pair, prod, preferred_element_type=f32)   # [n, lanes3]
    o_ref[...] = jnp.sum(per_sample, axis=1, keepdims=True) + bfc_ref[...]


# ------------------------ one-time weight layout prep ------------------------

def _toeplitz_weight(w, h_in, c_in_pad):
    """PyTorch conv weight [C_out, C_in, 4, 4] -> stacked block-Toeplitz matrix
    T of shape [4 * h_in * c_in_pad, (h_in//2) * C_out], where
    T[kh*(W*Cp) + w*Cp + ci, j*Cout + co] = weight[co, ci, kh, w + 1 - 2*j]
    (k=4, s=2, p=1), zero outside the kernel / image or for ci >= C_in."""
    c_out, c_in = w.shape[0], w.shape[1]
    w_out = h_in // 2
    t = np.zeros((4, h_in, c_in_pad, w_out, c_out), np.float32)
    for kh in range(4):
        for j in range(w_out):
            for kw in range(4):
                wi = 2 * j + kw - 1
                if 0 <= wi < h_in:
                    t[kh, wi, :c_in, j, :] = w[:, :, kh, kw].T
    return t.reshape(4 * h_in * c_in_pad, w_out * c_out)


def init_discriminator_params(key, conv_dim=8):
    """All weight-layout shuffles done once here (never per forward):
    block-Toeplitz conv matrices (bf16), per-lane pre-tiled BN gamma/beta (f32),
    FC weight re-laid out to the kernel's (row, (col, channel)) pattern (f32)."""
    keys = jax.random.split(key, 2 * N_LAYERS + 1)
    convs = []
    c_in, c_out, h = 3, conv_dim, INPUT_SIZE
    for l in range(N_LAYERS):
        w = 0.05 * jax.random.normal(keys[2 * l], (c_out, c_in, KSIZE, KSIZE),
                                     jnp.float32)
        c_in_pad = 4 if l == 0 else c_in       # pad RGB->4 so lane width is 128
        t = _toeplitz_weight(np.asarray(w), h, c_in_pad)
        entry = {"t": jnp.asarray(t, jnp.bfloat16)}
        if l != 0:                             # layers_wo_bn = [0]
            gk, bk = jax.random.split(keys[2 * l + 1])
            gamma = 1.0 + 0.05 * jax.random.normal(gk, (c_out,), jnp.float32)
            beta = 0.05 * jax.random.normal(bk, (c_out,), jnp.float32)
            w_out = h // 2
            entry["gamma"] = jnp.tile(gamma, w_out).reshape(1, w_out * c_out)
            entry["beta"] = jnp.tile(beta, w_out).reshape(1, w_out * c_out)
        convs.append(entry)
        c_in, c_out, h = c_out, c_out * 2, h // 2

    conv_out = INPUT_SIZE // 2 ** N_LAYERS     # = 2
    c_last = c_in                              # = 8 * conv_dim
    fc_w = 0.05 * jax.random.normal(keys[-1],
                                    (1, c_last * conv_out * conv_out), jnp.float32)
    # PyTorch flatten order is (c, i, j); re-lay to [i, (j, c)] once here.
    pat = np.asarray(fc_w).reshape(c_last, conv_out, conv_out)       # [c, i, j]
    pat = np.transpose(pat, (1, 2, 0)).reshape(conv_out, conv_out * c_last)
    return {
        "convs": convs,
        "fc_pat": jnp.asarray(pat, jnp.float32),
        "fc_b": jnp.zeros((1, 1), jnp.float32),
    }


# ---------------------------------- forward ----------------------------------

def discriminator_forward(params, x):
    """x: [N, 3, 32, 32] NCHW (PyTorch convention) -> logits [N, 1]."""
    convs = params["convs"]
    n, _, h_in, _ = x.shape
    assert h_in == INPUT_SIZE

    # Static per-layer config derived from (static) parameter shapes.
    cfg, hh = [], INPUT_SIZE
    for l in range(N_LAYERS):
        t = convs[l]["t"]
        cfg.append((hh, t.shape[0] // (4 * hh), t.shape[1] // (hh // 2)))
        hh //= 2
    cfg = tuple(cfg)

    # One-time tiny relayout of the network input (the only transpose in the
    # whole forward): NCHW -> [N*H, W*4] bf16, RGB padded to 4 channels so the
    # lane width is 128.
    xt = jnp.transpose(x, (0, 2, 3, 1))
    xt = jnp.pad(xt, ((0, 0), (0, 0), (0, 0), (0, 1)))
    x0 = xt.reshape(n * INPUT_SIZE, INPUT_SIZE * 4).astype(jnp.bfloat16)

    kernel = functools.partial(_disc_fused_kernel, cfg=cfg, n_batch=n)
    return pl.pallas_call(
        kernel,
        out_shape=jax.ShapeDtypeStruct((n, 1), jnp.float32),
        in_specs=[pl.BlockSpec(memory_space=pltpu.MemorySpace.VMEM)
                  for _ in range(13)],
        out_specs=pl.BlockSpec(memory_space=pltpu.MemorySpace.VMEM),
        compiler_params=pltpu.CompilerParams(vmem_limit_bytes=32 * 1024 * 1024),
        # TODO(synk): when batch/conv_dim scale up, add an M-tiled grid with
        # dimension_semantics=("parallel",) so v7x's second TensorCore is used
        # and VMEM stays within the 64 MiB budget.
    )(x0,
      convs[0]["t"], convs[1]["t"], convs[2]["t"], convs[3]["t"],
      convs[1]["gamma"], convs[1]["beta"],
      convs[2]["gamma"], convs[2]["beta"],
      convs[3]["gamma"], convs[3]["beta"],
      params["fc_pat"], params["fc_b"])


if __name__ == "__main__":
    key = jax.random.PRNGKey(0)
    kp, kx = jax.random.split(key)
    params = init_discriminator_params(kp, conv_dim=8)
    x = jax.random.normal(kx, (2, 3, 32, 32), jnp.float32)   # input_size=32 fixed
    out = jax.jit(discriminator_forward)(params, x)
    jax.block_until_ready(out)
    assert out.shape == (2, 1), out.shape
    assert bool(jnp.all(jnp.isfinite(out)))
    print("KERNEL_OK")
</pallas_src>

<mosaic_0001>
module attributes {stable_mosaic.version = 11 : i64} {
  func.func @_disc_fused_kernel(%arg0: memref<64x128xbf16, #tpu.memory_space<vmem>>, %arg1: memref<512x128xbf16, #tpu.memory_space<vmem>>, %arg2: memref<512x128xbf16, #tpu.memory_space<vmem>>, %arg3: memref<512x128xbf16, #tpu.memory_space<vmem>>, %arg4: memref<512x128xbf16, #tpu.memory_space<vmem>>, %arg5: memref<1x128xf32, #tpu.memory_space<vmem>>, %arg6: memref<1x128xf32, #tpu.memory_space<vmem>>, %arg7: memref<1x128xf32, #tpu.memory_space<vmem>>, %arg8: memref<1x128xf32, #tpu.memory_space<vmem>>, %arg9: memref<1x128xf32, #tpu.memory_space<vmem>>, %arg10: memref<1x128xf32, #tpu.memory_space<vmem>>, %arg11: memref<2x128xf32, #tpu.memory_space<vmem>>, %arg12: memref<1x1xf32, #tpu.memory_space<vmem>>, %arg13: memref<2x1xf32, #tpu.memory_space<vmem>>) attributes {dimension_semantics = [], scalar_prefetch = 0 : i64, scratch_operands = 0 : i64, tpu.core_type = #tpu.core_type<tc>} {
    %c0 = arith.constant 0 : index
    %c0_0 = arith.constant 0 : index
    %0 = vector.load %arg0[%c0, %c0_0] : memref<64x128xbf16, #tpu.memory_space<vmem>>, vector<64x128xbf16>
    %1 = tpu.iota {dimensions = array<i32: 0>} : vector<32x64xi32>
    %2 = tpu.iota {dimensions = array<i32: 1>} : vector<32x64xi32>
    %c4_i32 = arith.constant 4 : i32
    %3 = vector.broadcast %c4_i32 : i32 to vector<32x64xi32>
    %4 = arith.shrsi %1, %3 : vector<32x64xi32>
    %c15_i32 = arith.constant 15 : i32
    %5 = vector.broadcast %c15_i32 : i32 to vector<32x64xi32>
    %6 = arith.andi %1, %5 : vector<32x64xi32>
    %c5_i32 = arith.constant 5 : i32
    %7 = vector.broadcast %c5_i32 : i32 to vector<32x64xi32>
    %8 = arith.shrsi %2, %7 : vector<32x64xi32>
    %c31_i32 = arith.constant 31 : i32
    %9 = vector.broadcast %c31_i32 : i32 to vector<32x64xi32>
    %10 = arith.andi %2, %9 : vector<32x64xi32>
    %11 = arith.cmpi eq, %8, %4 : vector<32x64xi32>
    %c2_i32 = arith.constant 2 : i32
    %12 = vector.broadcast %c2_i32 : i32 to vector<32x64xi32>
    %13 = arith.muli %12, %6 : vector<32x64xi32>
    %c-1_i32 = arith.constant -1 : i32
    %14 = vector.broadcast %c-1_i32 : i32 to vector<32x64xi32>
    %15 = arith.addi %13, %14 : vector<32x64xi32>
    %16 = arith.cmpi eq, %10, %15 : vector<32x64xi32>
    %17 = arith.andi %11, %16 : vector<32x64xi1>
    %cst = arith.constant 1.000000e+00 : f32
    %cst_1 = arith.constant 0.000000e+00 : f32
    %18 = vector.broadcast %cst : f32 to vector<32x64xf32>
    %19 = vector.broadcast %cst_1 : f32 to vector<32x64xf32>
    %20 = arith.select %17, %18, %19 : vector<32x64xi1>, vector<32x64xf32>
    %21 = arith.truncf %20 : vector<32x64xf32> to vector<32x64xbf16>
    %cst_2 = arith.constant dense<0.000000e+00> : vector<32x128xf32>
    %22 = tpu.matmul %21, %0, %cst_2 {dimension_numbers = #tpu.dot_dimension_numbers<[1], [0], [0], [1], [0, 0, 1, 1], [], []>} : vector<32x64xbf16>, vector<64x128xbf16>, vector<32x128xf32> -> vector<32x128xf32>
    %23 = arith.truncf %22 : vector<32x128xf32> to vector<32x128xbf16>
    %c0_3 = arith.constant 0 : index
    %c0_4 = arith.constant 0 : index
    %24 = vector.load %arg1[%c0_3, %c0_4] : memref<512x128xbf16, #tpu.memory_space<vmem>>, vector<128x128xbf16>
    %cst_5 = arith.constant dense<0.000000e+00> : vector<32x128xf32>
    %25 = tpu.matmul %23, %24, %cst_5 {dimension_numbers = #tpu.dot_dimension_numbers<[1], [0], [0], [1], [0, 0, 1, 1], [], []>} : vector<32x128xbf16>, vector<128x128xbf16>, vector<32x128xf32> -> vector<32x128xf32>
    %26 = tpu.iota {dimensions = array<i32: 0>} : vector<32x64xi32>
    %27 = tpu.iota {dimensions = array<i32: 1>} : vector<32x64xi32>
    %c4_i32_6 = arith.constant 4 : i32
    %28 = vector.broadcast %c4_i32_6 : i32 to vector<32x64xi32>
    %29 = arith.shrsi %26, %28 : vector<32x64xi32>
    %c15_i32_7 = arith.constant 15 : i32
    %30 = vector.broadcast %c15_i32_7 : i32 to vector<32x64xi32>
    %31 = arith.andi %26, %30 : vector<32x64xi32>
    %c5_i32_8 = arith.constant 5 : i32
    %32 = vector.broadcast %c5_i32_8 : i32 to vector<32x64xi32>
    %33 = arith.shrsi %27, %32 : vector<32x64xi32>
    %c31_i32_9 = arith.constant 31 : i32
    %34 = vector.broadcast %c31_i32_9 : i32 to vector<32x64xi32>
    %35 = arith.andi %27, %34 : vector<32x64xi32>
    %36 = arith.cmpi eq, %33, %29 : vector<32x64xi32>
    %c2_i32_10 = arith.constant 2 : i32
    %37 = vector.broadcast %c2_i32_10 : i32 to vector<32x64xi32>
    %38 = arith.muli %37, %31 : vector<32x64xi32>
    %c0_i32 = arith.constant 0 : i32
    %39 = vector.broadcast %c0_i32 : i32 to vector<32x64xi32>
    %40 = arith.addi %38, %39 : vector<32x64xi32>
    %41 = arith.cmpi eq, %35, %40 : vector<32x64xi32>
    %42 = arith.andi %36, %41 : vector<32x64xi1>
    %cst_11 = arith.constant 1.000000e+00 : f32
    %cst_12 = arith.constant 0.000000e+00 : f32
    %43 = vector.broadcast %cst_11 : f32 to vector<32x64xf32>
    %44 = vector.broadcast %cst_12 : f32 to vector<32x64xf32>
    %45 = arith.select %42, %43, %44 : vector<32x64xi1>, vector<32x64xf32>
    %46 = arith.truncf %45 : vector<32x64xf32> to vector<32x64xbf16>
    %cst_13 = arith.constant dense<0.000000e+00> : vector<32x128xf32>
    %47 = tpu.matmul %46, %0, %cst_13 {dimension_numbers = #tpu.dot_dimension_numbers<[1], [0], [0], [1], [0, 0, 1, 1], [], []>} : vector<32x64xbf16>, vector<64x128xbf16>, vector<32x128xf32> -> vector<32x128xf32>
    %48 = arith.truncf %47 : vector<32x128xf32> to vector<32x128xbf16>
    %c128 = arith.constant 128 : index
    %c0_14 = arith.constant 0 : index
    %49 = vector.load %arg1[%c128, %c0_14] : memref<512x128xbf16, #tpu.memory_space<vmem>>, vector<128x128xbf16>
    %cst_15 = arith.constant dense<0.000000e+00> : vector<32x128xf32>
    %50 = tpu.matmul %48, %49, %cst_15 {dimension_numbers = #tpu.dot_dimension_numbers<[1], [0], [0], [1], [0, 0, 1, 1], [], []>} : vector<32x128xbf16>, vector<128x128xbf16>, vector<32x128xf32> -> vector<32x128xf32>
    %51 = arith.addf %25, %50 : vector<32x128xf32>
    %52 = tpu.iota {dimensions = array<i32: 0>} : vector<32x64xi32>
    %53 = tpu.iota {dimensions = array<i32: 1>} : vector<32x64xi32>
    %c4_i32_16 = arith.constant 4 : i32
    %54 = vector.broadcast %c4_i32_16 : i32 to vector<32x64xi32>
    %55 = arith.shrsi %52, %54 : vector<32x64xi32>
    %c15_i32_17 = arith.constant 15 : i32
    %56 = vector.broadcast %c15_i32_17 : i32 to vector<32x64xi32>
    %57 = arith.andi %52, %56 : vector<32x64xi32>
    %c5_i32_18 = arith.constant 5 : i32
    %58 = vector.broadcast %c5_i32_18 : i32 to vector<32x64xi32>
    %59 = arith.shrsi %53, %58 : vector<32x64xi32>
    %c31_i32_19 = arith.constant 31 : i32
    %60 = vector.broadcast %c31_i32_19 : i32 to vector<32x64xi32>
    %61 = arith.andi %53, %60 : vector<32x64xi32>
    %62 = arith.cmpi eq, %59, %55 : vector<32x64xi32>
    %c2_i32_20 = arith.constant 2 : i32
    %63 = vector.broadcast %c2_i32_20 : i32 to vector<32x64xi32>
    %64 = arith.muli %63, %57 : vector<32x64xi32>
    %c1_i32 = arith.constant 1 : i32
    %65 = vector.broadcast %c1_i32 : i32 to vector<32x64xi32>
    %66 = arith.addi %64, %65 : vector<32x64xi32>
    %67 = arith.cmpi eq, %61, %66 : vector<32x64xi32>
    %68 = arith.andi %62, %67 : vector<32x64xi1>
    %cst_21 = arith.constant 1.000000e+00 : f32
    %cst_22 = arith.constant 0.000000e+00 : f32
    %69 = vector.broadcast %cst_21 : f32 to vector<32x64xf32>
    %70 = vector.broadcast %cst_22 : f32 to vector<32x64xf32>
    %71 = arith.select %68, %69, %70 : vector<32x64xi1>, vector<32x64xf32>
    %72 = arith.truncf %71 : vector<32x64xf32> to vector<32x64xbf16>
    %cst_23 = arith.constant dense<0.000000e+00> : vector<32x128xf32>
    %73 = tpu.matmul %72, %0, %cst_23 {dimension_numbers = #tpu.dot_dimension_numbers<[1], [0], [0], [1], [0, 0, 1, 1], [], []>} : vector<32x64xbf16>, vector<64x128xbf16>, vector<32x128xf32> -> vector<32x128xf32>
    %74 = arith.truncf %73 : vector<32x128xf32> to vector<32x128xbf16>
    %c256 = arith.constant 256 : index
    %c0_24 = arith.constant 0 : index
    %75 = vector.load %arg1[%c256, %c0_24] : memref<512x128xbf16, #tpu.memory_space<vmem>>, vector<128x128xbf16>
    %cst_25 = arith.constant dense<0.000000e+00> : vector<32x128xf32>
    %76 = tpu.matmul %74, %75, %cst_25 {dimension_numbers = #tpu.dot_dimension_numbers<[1], [0], [0], [1], [0, 0, 1, 1], [], []>} : vector<32x128xbf16>, vector<128x128xbf16>, vector<32x128xf32> -> vector<32x128xf32>
    %77 = arith.addf %51, %76 : vector<32x128xf32>
    %78 = tpu.iota {dimensions = array<i32: 0>} : vector<32x64xi32>
    %79 = tpu.iota {dimensions = array<i32: 1>} : vector<32x64xi32>
    %c4_i32_26 = arith.constant 4 : i32
    %80 = vector.broadcast %c4_i32_26 : i32 to vector<32x64xi32>
    %81 = arith.shrsi %78, %80 : vector<32x64xi32>
    %c15_i32_27 = arith.constant 15 : i32
    %82 = vector.broadcast %c15_i32_27 : i32 to vector<32x64xi32>
    %83 = arith.andi %78, %82 : vector<32x64xi32>
    %c5_i32_28 = arith.constant 5 : i32
    %84 = vector.broadcast %c5_i32_28 : i32 to vector<32x64xi32>
    %85 = arith.shrsi %79, %84 : vector<32x64xi32>
    %c31_i32_29 = arith.constant 31 : i32
    %86 = vector.broadcast %c31_i32_29 : i32 to vector<32x64xi32>
    %87 = arith.andi %79, %86 : vector<32x64xi32>
    %88 = arith.cmpi eq, %85, %81 : vector<32x64xi32>
    %c2_i32_30 = arith.constant 2 : i32
    %89 = vector.broadcast %c2_i32_30 : i32 to vector<32x64xi32>
    %90 = arith.muli %89, %83 : vector<32x64xi32>
    %c2_i32_31 = arith.constant 2 : i32
    %91 = vector.broadcast %c2_i32_31 : i32 to vector<32x64xi32>
    %92 = arith.addi %90, %91 : vector<32x64xi32>
    %93 = arith.cmpi eq, %87, %92 : vector<32x64xi32>
    %94 = arith.andi %88, %93 : vector<32x64xi1>
    %cst_32 = arith.constant 1.000000e+00 : f32
    %cst_33 = arith.constant 0.000000e+00 : f32
    %95 = vector.broadcast %cst_32 : f32 to vector<32x64xf32>
    %96 = vector.broadcast %cst_33 : f32 to vector<32x64xf32>
    %97 = arith.select %94, %95, %96 : vector<32x64xi1>, vector<32x64xf32>
    %98 = arith.truncf %97 : vector<32x64xf32> to vector<32x64xbf16>
    %cst_34 = arith.constant dense<0.000000e+00> : vector<32x128xf32>
    %99 = tpu.matmul %98, %0, %cst_34 {dimension_numbers = #tpu.dot_dimension_numbers<[1], [0], [0], [1], [0, 0, 1, 1], [], []>} : vector<32x64xbf16>, vector<64x128xbf16>, vector<32x128xf32> -> vector<32x128xf32>
    %100 = arith.truncf %99 : vector<32x128xf32> to vector<32x128xbf16>
    %c384 = arith.constant 384 : index
    %c0_35 = arith.constant 0 : index
    %101 = vector.load %arg1[%c384, %c0_35] : memref<512x128xbf16, #tpu.memory_space<vmem>>, vector<128x128xbf16>
    %cst_36 = arith.constant dense<0.000000e+00> : vector<32x128xf32>
    %102 = tpu.matmul %100, %101, %cst_36 {dimension_numbers = #tpu.dot_dimension_numbers<[1], [0], [0], [1], [0, 0, 1, 1], [], []>} : vector<32x128xbf16>, vector<128x128xbf16>, vector<32x128xf32> -> vector<32x128xf32>
    %103 = arith.addf %77, %102 : vector<32x128xf32>
    %cst_37 = arith.constant 0.000000e+00 : f32
    %104 = vector.broadcast %cst_37 : f32 to vector<32x128xf32>
    %105 = arith.cmpf ogt, %103, %104 : vector<32x128xf32>
    %cst_38 = arith.constant 2.000000e-01 : f32
    %106 = vector.broadcast %cst_38 : f32 to vector<32x128xf32>
    %107 = arith.mulf %106, %103 : vector<32x128xf32>
    %108 = arith.select %105, %103, %107 : vector<32x128xi1>, vector<32x128xf32>
    %109 = arith.truncf %108 : vector<32x128xf32> to vector<32x128xbf16>
    %110 = tpu.iota {dimensions = array<i32: 0>} : vector<16x32xi32>
    %111 = tpu.iota {dimensions = array<i32: 1>} : vector<16x32xi32>
    %c3_i32 = arith.constant 3 : i32
    %112 = vector.broadcast %c3_i32 : i32 to vector<16x32xi32>
    %113 = arith.shrsi %110, %112 : vector<16x32xi32>
    %c7_i32 = arith.constant 7 : i32
    %114 = vector.broadcast %c7_i32 : i32 to vector<16x32xi32>
    %115 = arith.andi %110, %114 : vector<16x32xi32>
    %c4_i32_39 = arith.constant 4 : i32
    %116 = vector.broadcast %c4_i32_39 : i32 to vector<16x32xi32>
    %117 = arith.shrsi %111, %116 : vector<16x32xi32>
    %c15_i32_40 = arith.constant 15 : i32
    %118 = vector.broadcast %c15_i32_40 : i32 to vector<16x32xi32>
    %119 = arith.andi %111, %118 : vector<16x32xi32>
    %120 = arith.cmpi eq, %117, %113 : vector<16x32xi32>
    %c2_i32_41 = arith.constant 2 : i32
    %121 = vector.broadcast %c2_i32_41 : i32 to vector<16x32xi32>
    %122 = arith.muli %121, %115 : vector<16x32xi32>
    %c-1_i32_42 = arith.constant -1 : i32
    %123 = vector.broadcast %c-1_i32_42 : i32 to vector<16x32xi32>
    %124 = arith.addi %122, %123 : vector<16x32xi32>
    %125 = arith.cmpi eq, %119, %124 : vector<16x32xi32>
    %126 = arith.andi %120, %125 : vector<16x32xi1>
    %cst_43 = arith.constant 1.000000e+00 : f32
    %cst_44 = arith.constant 0.000000e+00 : f32
    %127 = vector.broadcast %cst_43 : f32 to vector<16x32xf32>
    %128 = vector.broadcast %cst_44 : f32 to vector<16x32xf32>
    %129 = arith.select %126, %127, %128 : vector<16x32xi1>, vector<16x32xf32>
    %130 = arith.truncf %129 : vector<16x32xf32> to vector<16x32xbf16>
    %cst_45 = arith.constant dense<0.000000e+00> : vector<16x128xf32>
    %131 = tpu.matmul %130, %109, %cst_45 {dimension_numbers = #tpu.dot_dimension_numbers<[1], [0], [0], [1], [0, 0, 1, 1], [], []>} : vector<16x32xbf16>, vector<32x128xbf16>, vector<16x128xf32> -> vector<16x128xf32>
    %132 = arith.truncf %131 : vector<16x128xf32> to vector<16x128xbf16>
    %c0_46 = arith.constant 0 : index
    %c0_47 = arith.constant 0 : index
    %133 = vector.load %arg2[%c0_46, %c0_47] : memref<512x128xbf16, #tpu.memory_space<vmem>>, vector<128x128xbf16>
    %cst_48 = arith.constant dense<0.000000e+00> : vector<16x128xf32>
    %134 = tpu.matmul %132, %133, %cst_48 {dimension_numbers = #tpu.dot_dimension_numbers<[1], [0], [0], [1], [0, 0, 1, 1], [], []>} : vector<16x128xbf16>, vector<128x128xbf16>, vector<16x128xf32> -> vector<16x128xf32>
    %135 = tpu.iota {dimensions = array<i32: 0>} : vector<16x32xi32>
    %136 = tpu.iota {dimensions = array<i32: 1>} : vector<16x32xi32>
    %c3_i32_49 = arith.constant 3 : i32
    %137 = vector.broadcast %c3_i32_49 : i32 to vector<16x32xi32>
    %138 = arith.shrsi %135, %137 : vector<16x32xi32>
    %c7_i32_50 = arith.constant 7 : i32
    %139 = vector.broadcast %c7_i32_50 : i32 to vector<16x32xi32>
    %140 = arith.andi %135, %139 : vector<16x32xi32>
    %c4_i32_51 = arith.constant 4 : i32
    %141 = vector.broadcast %c4_i32_51 : i32 to vector<16x32xi32>
    %142 = arith.shrsi %136, %141 : vector<16x32xi32>
    %c15_i32_52 = arith.constant 15 : i32
    %143 = vector.broadcast %c15_i32_52 : i32 to vector<16x32xi32>
    %144 = arith.andi %136, %143 : vector<16x32xi32>
    %145 = arith.cmpi eq, %142, %138 : vector<16x32xi32>
    %c2_i32_53 = arith.constant 2 : i32
    %146 = vector.broadcast %c2_i32_53 : i32 to vector<16x32xi32>
    %147 = arith.muli %146, %140 : vector<16x32xi32>
    %c0_i32_54 = arith.constant 0 : i32
    %148 = vector.broadcast %c0_i32_54 : i32 to vector<16x32xi32>
    %149 = arith.addi %147, %148 : vector<16x32xi32>
    %150 = arith.cmpi eq, %144, %149 : vector<16x32xi32>
    %151 = arith.andi %145, %150 : vector<16x32xi1>
    %cst_55 = arith.constant 1.000000e+00 : f32
    %cst_56 = arith.constant 0.000000e+00 : f32
    %152 = vector.broadcast %cst_55 : f32 to vector<16x32xf32>
    %153 = vector.broadcast %cst_56 : f32 to vector<16x32xf32>
    %154 = arith.select %151, %152, %153 : vector<16x32xi1>, vector<16x32xf32>
    %155 = arith.truncf %154 : vector<16x32xf32> to vector<16x32xbf16>
    %cst_57 = arith.constant dense<0.000000e+00> : vector<16x128xf32>
    %156 = tpu.matmul %155, %109, %cst_57 {dimension_numbers = #tpu.dot_dimension_numbers<[1], [0], [0], [1], [0, 0, 1, 1], [], []>} : vector<16x32xbf16>, vector<32x128xbf16>, vector<16x128xf32> -> vector<16x128xf32>
    %157 = arith.truncf %156 : vector<16x128xf32> to vector<16x128xbf16>
    %c128_58 = arith.constant 128 : index
    %c0_59 = arith.constant 0 : index
    %158 = vector.load %arg2[%c128_58, %c0_59] : memref<512x128xbf16, #tpu.memory_space<vmem>>, vector<128x128xbf16>
    %cst_60 = arith.constant dense<0.000000e+00> : vector<16x128xf32>
    %159 = tpu.matmul %157, %158, %cst_60 {dimension_numbers = #tpu.dot_dimension_numbers<[1], [0], [0], [1], [0, 0, 1, 1], [], []>} : vector<16x128xbf16>, vector<128x128xbf16>, vector<16x128xf32> -> vector<16x128xf32>
    %160 = arith.addf %134, %159 : vector<16x128xf32>
    %161 = tpu.iota {dimensions = array<i32: 0>} : vector<16x32xi32>
    %162 = tpu.iota {dimensions = array<i32: 1>} : vector<16x32xi32>
    %c3_i32_61 = arith.constant 3 : i32
    %163 = vector.broadcast %c3_i32_61 : i32 to vector<16x32xi32>
    %164 = arith.shrsi %161, %163 : vector<16x32xi32>
    %c7_i32_62 = arith.constant 7 : i32
    %165 = vector.broadcast %c7_i32_62 : i32 to vector<16x32xi32>
    %166 = arith.andi %161, %165 : vector<16x32xi32>
    %c4_i32_63 = arith.constant 4 : i32
    %167 = vector.broadcast %c4_i32_63 : i32 to vector<16x32xi32>
    %168 = arith.shrsi %162, %167 : vector<16x32xi32>
    %c15_i32_64 = arith.constant 15 : i32
    %169 = vector.broadcast %c15_i32_64 : i32 to vector<16x32xi32>
    %170 = arith.andi %162, %169 : vector<16x32xi32>
    %171 = arith.cmpi eq, %168, %164 : vector<16x32xi32>
    %c2_i32_65 = arith.constant 2 : i32
    %172 = vector.broadcast %c2_i32_65 : i32 to vector<16x32xi32>
    %173 = arith.muli %172, %166 : vector<16x32xi32>
    %c1_i32_66 = arith.constant 1 : i32
    %174 = vector.broadcast %c1_i32_66 : i32 to vector<16x32xi32>
    %175 = arith.addi %173, %174 : vector<16x32xi32>
    %176 = arith.cmpi eq, %170, %175 : vector<16x32xi32>
    %177 = arith.andi %171, %176 : vector<16x32xi1>
    %cst_67 = arith.constant 1.000000e+00 : f32
    %cst_68 = arith.constant 0.000000e+00 : f32
    %178 = vector.broadcast %cst_67 : f32 to vector<16x32xf32>
    %179 = vector.broadcast %cst_68 : f32 to vector<16x32xf32>
    %180 = arith.select %177, %178, %179 : vector<16x32xi1>, vector<16x32xf32>
    %181 = arith.truncf %180 : vector<16x32xf32> to vector<16x32xbf16>
    %cst_69 = arith.constant dense<0.000000e+00> : vector<16x128xf32>
    %182 = tpu.matmul %181, %109, %cst_69 {dimension_numbers = #tpu.dot_dimension_numbers<[1], [0], [0], [1], [0, 0, 1, 1], [], []>} : vector<16x32xbf16>, vector<32x128xbf16>, vector<16x128xf32> -> vector<16x128xf32>
    %183 = arith.truncf %182 : vector<16x128xf32> to vector<16x128xbf16>
    %c256_70 = arith.constant 256 : index
    %c0_71 = arith.constant 0 : index
    %184 = vector.load %arg2[%c256_70, %c0_71] : memref<512x128xbf16, #tpu.memory_space<vmem>>, vector<128x128xbf16>
    %cst_72 = arith.constant dense<0.000000e+00> : vector<16x128xf32>
    %185 = tpu.matmul %183, %184, %cst_72 {dimension_numbers = #tpu.dot_dimension_numbers<[1], [0], [0], [1], [0, 0, 1, 1], [], []>} : vector<16x128xbf16>, vector<128x128xbf16>, vector<16x128xf32> -> vector<16x128xf32>
    %186 = arith.addf %160, %185 : vector<16x128xf32>
    %187 = tpu.iota {dimensions = array<i32: 0>} : vector<16x32xi32>
    %188 = tpu.iota {dimensions = array<i32: 1>} : vector<16x32xi32>
    %c3_i32_73 = arith.constant 3 : i32
    %189 = vector.broadcast %c3_i32_73 : i32 to vector<16x32xi32>
    %190 = arith.shrsi %187, %189 : vector<16x32xi32>
    %c7_i32_74 = arith.constant 7 : i32
    %191 = vector.broadcast %c7_i32_74 : i32 to vector<16x32xi32>
    %192 = arith.andi %187, %191 : vector<16x32xi32>
    %c4_i32_75 = arith.constant 4 : i32
    %193 = vector.broadcast %c4_i32_75 : i32 to vector<16x32xi32>
    %194 = arith.shrsi %188, %193 : vector<16x32xi32>
    %c15_i32_76 = arith.constant 15 : i32
    %195 = vector.broadcast %c15_i32_76 : i32 to vector<16x32xi32>
    %196 = arith.andi %188, %195 : vector<16x32xi32>
    %197 = arith.cmpi eq, %194, %190 : vector<16x32xi32>
    %c2_i32_77 = arith.constant 2 : i32
    %198 = vector.broadcast %c2_i32_77 : i32 to vector<16x32xi32>
    %199 = arith.muli %198, %192 : vector<16x32xi32>
    %c2_i32_78 = arith.constant 2 : i32
    %200 = vector.broadcast %c2_i32_78 : i32 to vector<16x32xi32>
    %201 = arith.addi %199, %200 : vector<16x32xi32>
    %202 = arith.cmpi eq, %196, %201 : vector<16x32xi32>
    %203 = arith.andi %197, %202 : vector<16x32xi1>
    %cst_79 = arith.constant 1.000000e+00 : f32
    %cst_80 = arith.constant 0.000000e+00 : f32
    %204 = vector.broadcast %cst_79 : f32 to vector<16x32xf32>
    %205 = vector.broadcast %cst_80 : f32 to vector<16x32xf32>
    %206 = arith.select %203, %204, %205 : vector<16x32xi1>, vector<16x32xf32>
    %207 = arith.truncf %206 : vector<16x32xf32> to vector<16x32xbf16>
    %cst_81 = arith.constant dense<0.000000e+00> : vector<16x128xf32>
    %208 = tpu.matmul %207, %109, %cst_81 {dimension_numbers = #tpu.dot_dimension_numbers<[1], [0], [0], [1], [0, 0, 1, 1], [], []>} : vector<16x32xbf16>, vector<32x128xbf16>, vector<16x128xf32> -> vector<16x128xf32>
    %209 = arith.truncf %208 : vector<16x128xf32> to vector<16x128xbf16>
    %c384_82 = arith.constant 384 : index
    %c0_83 = arith.constant 0 : index
    %210 = vector.load %arg2[%c384_82, %c0_83] : memref<512x128xbf16, #tpu.memory_space<vmem>>, vector<128x128xbf16>
    %cst_84 = arith.constant dense<0.000000e+00> : vector<16x128xf32>
    %211 = tpu.matmul %209, %210, %cst_84 {dimension_numbers = #tpu.dot_dimension_numbers<[1], [0], [0], [1], [0, 0, 1, 1], [], []>} : vector<16x128xbf16>, vector<128x128xbf16>, vector<16x128xf32> -> vector<16x128xf32>
    %212 = arith.addf %186, %211 : vector<16x128xf32>
    %cst_85 = arith.constant 0.000000e+00 : f32
    %213 = vector.broadcast %cst_85 : f32 to vector<16x128xf32>
    %214 = arith.cmpf ogt, %212, %213 : vector<16x128xf32>
    %cst_86 = arith.constant 2.000000e-01 : f32
    %215 = vector.broadcast %cst_86 : f32 to vector<16x128xf32>
    %216 = arith.mulf %215, %212 : vector<16x128xf32>
    %217 = arith.select %214, %212, %216 : vector<16x128xi1>, vector<16x128xf32>
    %cst_87 = arith.constant dense<0.000000e+00> : vector<128xf32>
    %218 = vector.multi_reduction <add>, %217, %cst_87 [0] : vector<16x128xf32> to vector<128xf32>
    %219 = vector.shape_cast %218 : vector<128xf32> to vector<1x128xf32>
    %220 = arith.mulf %217, %217 : vector<16x128xf32>
    %cst_88 = arith.constant dense<0.000000e+00> : vector<128xf32>
    %221 = vector.multi_reduction <add>, %220, %cst_88 [0] : vector<16x128xf32> to vector<128xf32>
    %222 = vector.shape_cast %221 : vector<128xf32> to vector<1x128xf32>
    %223 = tpu.iota {dimensions = array<i32: 0>} : vector<128x128xi32>
    %224 = tpu.iota {dimensions = array<i32: 1>} : vector<128x128xi32>
    %c15_i32_89 = arith.constant 15 : i32
    %225 = vector.broadcast %c15_i32_89 : i32 to vector<128x128xi32>
    %226 = arith.andi %223, %225 : vector<128x128xi32>
    %c15_i32_90 = arith.constant 15 : i32
    %227 = vector.broadcast %c15_i32_90 : i32 to vector<128x128xi32>
    %228 = arith.andi %224, %227 : vector<128x128xi32>
    %229 = arith.cmpi eq, %226, %228 : vector<128x128xi32>
    %cst_91 = arith.constant 1.000000e+00 : f32
    %cst_92 = arith.constant 0.000000e+00 : f32
    %230 = vector.broadcast %cst_91 : f32 to vector<128x128xf32>
    %231 = vector.broadcast %cst_92 : f32 to vector<128x128xf32>
    %232 = arith.select %229, %230, %231 : vector<128x128xi1>, vector<128x128xf32>
    %cst_93 = arith.constant dense<0.000000e+00> : vector<1x128xf32>
    %233 = tpu.matmul %219, %232, %cst_93 {dimension_numbers = #tpu.dot_dimension_numbers<[1], [0], [0], [1], [0, 0, 1, 1], [], []>} : vector<1x128xf32>, vector<128x128xf32>, vector<1x128xf32> -> vector<1x128xf32>
    %cst_94 = arith.constant 7.812500e-03 : f32
    %234 = vector.broadcast %cst_94 : f32 to vector<1x128xf32>
    %235 = arith.mulf %233, %234 : vector<1x128xf32>
    %cst_95 = arith.constant dense<0.000000e+00> : vector<1x128xf32>
    %236 = tpu.matmul %222, %232, %cst_95 {dimension_numbers = #tpu.dot_dimension_numbers<[1], [0], [0], [1], [0, 0, 1, 1], [], []>} : vector<1x128xf32>, vector<128x128xf32>, vector<1x128xf32> -> vector<1x128xf32>
    %cst_96 = arith.constant 7.812500e-03 : f32
    %237 = vector.broadcast %cst_96 : f32 to vector<1x128xf32>
    %238 = arith.mulf %236, %237 : vector<1x128xf32>
    %239 = arith.mulf %235, %235 : vector<1x128xf32>
    %240 = arith.subf %238, %239 : vector<1x128xf32>
    %cst_97 = arith.constant 9.99999974E-6 : f32
    %241 = vector.broadcast %cst_97 : f32 to vector<1x128xf32>
    %242 = arith.addf %240, %241 : vector<1x128xf32>
    %243 = math.rsqrt %242 : vector<1x128xf32>
    %244 = vector.broadcast %235 : vector<1x128xf32> to vector<16x128xf32>
    %245 = arith.subf %217, %244 : vector<16x128xf32>
    %c0_98 = arith.constant 0 : index
    %c0_99 = arith.constant 0 : index
    %246 = vector.load %arg5[%c0_98, %c0_99] : memref<1x128xf32, #tpu.memory_space<vmem>>, vector<1x128xf32>
    %247 = arith.mulf %243, %246 : vector<1x128xf32>
    %248 = vector.broadcast %247 : vector<1x128xf32> to vector<16x128xf32>
    %249 = arith.mulf %245, %248 : vector<16x128xf32>
    %c0_100 = arith.constant 0 : index
    %c0_101 = arith.constant 0 : index
    %250 = vector.load %arg6[%c0_100, %c0_101] : memref<1x128xf32, #tpu.memory_space<vmem>>, vector<1x128xf32>
    %251 = vector.broadcast %250 : vector<1x128xf32> to vector<16x128xf32>
    %252 = arith.addf %249, %251 : vector<16x128xf32>
    %253 = arith.truncf %252 : vector<16x128xf32> to vector<16x128xbf16>
    %254 = tpu.iota {dimensions = array<i32: 0>} : vector<8x16xi32>
    %255 = tpu.iota {dimensions = array<i32: 1>} : vector<8x16xi32>
    %c2_i32_102 = arith.constant 2 : i32
    %256 = vector.broadcast %c2_i32_102 : i32 to vector<8x16xi32>
    %257 = arith.shrsi %254, %256 : vector<8x16xi32>
    %c3_i32_103 = arith.constant 3 : i32
    %258 = vector.broadcast %c3_i32_103 : i32 to vector<8x16xi32>
    %259 = arith.andi %254, %258 : vector<8x16xi32>
    %c3_i32_104 = arith.constant 3 : i32
    %260 = vector.broadcast %c3_i32_104 : i32 to vector<8x16xi32>
    %261 = arith.shrsi %255, %260 : vector<8x16xi32>
    %c7_i32_105 = arith.constant 7 : i32
    %262 = vector.broadcast %c7_i32_105 : i32 to vector<8x16xi32>
    %263 = arith.andi %255, %262 : vector<8x16xi32>
    %264 = arith.cmpi eq, %261, %257 : vector<8x16xi32>
    %c2_i32_106 = arith.constant 2 : i32
    %265 = vector.broadcast %c2_i32_106 : i32 to vector<8x16xi32>
    %266 = arith.muli %265, %259 : vector<8x16xi32>
    %c-1_i32_107 = arith.constant -1 : i32
    %267 = vector.broadcast %c-1_i32_107 : i32 to vector<8x16xi32>
    %268 = arith.addi %266, %267 : vector<8x16xi32>
    %269 = arith.cmpi eq, %263, %268 : vector<8x16xi32>
    %270 = arith.andi %264, %269 : vector<8x16xi1>
    %cst_108 = arith.constant 1.000000e+00 : f32
    %cst_109 = arith.constant 0.000000e+00 : f32
    %271 = vector.broadcast %cst_108 : f32 to vector<8x16xf32>
    %272 = vector.broadcast %cst_109 : f32 to vector<8x16xf32>
    %273 = arith.select %270, %271, %272 : vector<8x16xi1>, vector<8x16xf32>
    %274 = arith.truncf %273 : vector<8x16xf32> to vector<8x16xbf16>
    %cst_110 = arith.constant dense<0.000000e+00> : vector<8x128xf32>
    %275 = tpu.matmul %274, %253, %cst_110 {dimension_numbers = #tpu.dot_dimension_numbers<[1], [0], [0], [1], [0, 0, 1, 1], [], []>} : vector<8x16xbf16>, vector<16x128xbf16>, vector<8x128xf32> -> vector<8x128xf32>
    %276 = arith.truncf %275 : vector<8x128xf32> to vector<8x128xbf16>
    %c0_111 = arith.constant 0 : index
    %c0_112 = arith.constant 0 : index
    %277 = vector.load %arg3[%c0_111, %c0_112] : memref<512x128xbf16, #tpu.memory_space<vmem>>, vector<128x128xbf16>
    %cst_113 = arith.constant dense<0.000000e+00> : vector<8x128xf32>
    %278 = tpu.matmul %276, %277, %cst_113 {dimension_numbers = #tpu.dot_dimension_numbers<[1], [0], [0], [1], [0, 0, 1, 1], [], []>} : vector<8x128xbf16>, vector<128x128xbf16>, vector<8x128xf32> -> vector<8x128xf32>
    %279 = tpu.iota {dimensions = array<i32: 0>} : vector<8x16xi32>
    %280 = tpu.iota {dimensions = array<i32: 1>} : vector<8x16xi32>
    %c2_i32_114 = arith.constant 2 : i32
    %281 = vector.broadcast %c2_i32_114 : i32 to vector<8x16xi32>
    %282 = arith.shrsi %279, %281 : vector<8x16xi32>
    %c3_i32_115 = arith.constant 3 : i32
    %283 = vector.broadcast %c3_i32_115 : i32 to vector<8x16xi32>
    %284 = arith.andi %279, %283 : vector<8x16xi32>
    %c3_i32_116 = arith.constant 3 : i32
    %285 = vector.broadcast %c3_i32_116 : i32 to vector<8x16xi32>
    %286 = arith.shrsi %280, %285 : vector<8x16xi32>
    %c7_i32_117 = arith.constant 7 : i32
    %287 = vector.broadcast %c7_i32_117 : i32 to vector<8x16xi32>
    %288 = arith.andi %280, %287 : vector<8x16xi32>
    %289 = arith.cmpi eq, %286, %282 : vector<8x16xi32>
    %c2_i32_118 = arith.constant 2 : i32
    %290 = vector.broadcast %c2_i32_118 : i32 to vector<8x16xi32>
    %291 = arith.muli %290, %284 : vector<8x16xi32>
    %c0_i32_119 = arith.constant 0 : i32
    %292 = vector.broadcast %c0_i32_119 : i32 to vector<8x16xi32>
    %293 = arith.addi %291, %292 : vector<8x16xi32>
    %294 = arith.cmpi eq, %288, %293 : vector<8x16xi32>
    %295 = arith.andi %289, %294 : vector<8x16xi1>
    %cst_120 = arith.constant 1.000000e+00 : f32
    %cst_121 = arith.constant 0.000000e+00 : f32
    %296 = vector.broadcast %cst_120 : f32 to vector<8x16xf32>
    %297 = vector.broadcast %cst_121 : f32 to vector<8x16xf32>
    %298 = arith.select %295, %296, %297 : vector<8x16xi1>, vector<8x16xf32>
    %299 = arith.truncf %298 : vector<8x16xf32> to vector<8x16xbf16>
    %cst_122 = arith.constant dense<0.000000e+00> : vector<8x128xf32>
    %300 = tpu.matmul %299, %253, %cst_122 {dimension_numbers = #tpu.dot_dimension_numbers<[1], [0], [0], [1], [0, 0, 1, 1], [], []>} : vector<8x16xbf16>, vector<16x128xbf16>, vector<8x128xf32> -> vector<8x128xf32>
    %301 = arith.truncf %300 : vector<8x128xf32> to vector<8x128xbf16>
    %c128_123 = arith.constant 128 : index
    %c0_124 = arith.constant 0 : index
    %302 = vector.load %arg3[%c128_123, %c0_124] : memref<512x128xbf16, #tpu.memory_space<vmem>>, vector<128x128xbf16>
    %cst_125 = arith.constant dense<0.000000e+00> : vector<8x128xf32>
    %303 = tpu.matmul %301, %302, %cst_125 {dimension_numbers = #tpu.dot_dimension_numbers<[1], [0], [0], [1], [0, 0, 1, 1], [], []>} : vector<8x128xbf16>, vector<128x128xbf16>, vector<8x128xf32> -> vector<8x128xf32>
    %304 = arith.addf %278, %303 : vector<8x128xf32>
    %305 = tpu.iota {dimensions = array<i32: 0>} : vector<8x16xi32>
    %306 = tpu.iota {dimensions = array<i32: 1>} : vector<8x16xi32>
    %c2_i32_126 = arith.constant 2 : i32
    %307 = vector.broadcast %c2_i32_126 : i32 to vector<8x16xi32>
    %308 = arith.shrsi %305, %307 : vector<8x16xi32>
    %c3_i32_127 = arith.constant 3 : i32
    %309 = vector.broadcast %c3_i32_127 : i32 to vector<8x16xi32>
    %310 = arith.andi %305, %309 : vector<8x16xi32>
    %c3_i32_128 = arith.constant 3 : i32
    %311 = vector.broadcast %c3_i32_128 : i32 to vector<8x16xi32>
    %312 = arith.shrsi %306, %311 : vector<8x16xi32>
    %c7_i32_129 = arith.constant 7 : i32
    %313 = vector.broadcast %c7_i32_129 : i32 to vector<8x16xi32>
    %314 = arith.andi %306, %313 : vector<8x16xi32>
    %315 = arith.cmpi eq, %312, %308 : vector<8x16xi32>
    %c2_i32_130 = arith.constant 2 : i32
    %316 = vector.broadcast %c2_i32_130 : i32 to vector<8x16xi32>
    %317 = arith.muli %316, %310 : vector<8x16xi32>
    %c1_i32_131 = arith.constant 1 : i32
    %318 = vector.broadcast %c1_i32_131 : i32 to vector<8x16xi32>
    %319 = arith.addi %317, %318 : vector<8x16xi32>
    %320 = arith.cmpi eq, %314, %319 : vector<8x16xi32>
    %321 = arith.andi %315, %320 : vector<8x16xi1>
    %cst_132 = arith.constant 1.000000e+00 : f32
    %cst_133 = arith.constant 0.000000e+00 : f32
    %322 = vector.broadcast %cst_132 : f32 to vector<8x16xf32>
    %323 = vector.broadcast %cst_133 : f32 to vector<8x16xf32>
    %324 = arith.select %321, %322, %323 : vector<8x16xi1>, vector<8x16xf32>
    %325 = arith.truncf %324 : vector<8x16xf32> to vector<8x16xbf16>
    %cst_134 = arith.constant dense<0.000000e+00> : vector<8x128xf32>
    %326 = tpu.matmul %325, %253, %cst_134 {dimension_numbers = #tpu.dot_dimension_numbers<[1], [0], [0], [1], [0, 0, 1, 1], [], []>} : vector<8x16xbf16>, vector<16x128xbf16>, vector<8x128xf32> -> vector<8x128xf32>
    %327 = arith.truncf %326 : vector<8x128xf32> to vector<8x128xbf16>
    %c256_135 = arith.constant 256 : index
    %c0_136 = arith.constant 0 : index
    %328 = vector.load %arg3[%c256_135, %c0_136] : memref<512x128xbf16, #tpu.memory_space<vmem>>, vector<128x128xbf16>
    %cst_137 = arith.constant dense<0.000000e+00> : vector<8x128xf32>
    %329 = tpu.matmul %327, %328, %cst_137 {dimension_numbers = #tpu.dot_dimension_numbers<[1], [0], [0], [1], [0, 0, 1, 1], [], []>} : vector<8x128xbf16>, vector<128x128xbf16>, vector<8x128xf32> -> vector<8x128xf32>
    %330 = arith.addf %304, %329 : vector<8x128xf32>
    %331 = tpu.iota {dimensions = array<i32: 0>} : vector<8x16xi32>
    %332 = tpu.iota {dimensions = array<i32: 1>} : vector<8x16xi32>
    %c2_i32_138 = arith.constant 2 : i32
    %333 = vector.broadcast %c2_i32_138 : i32 to vector<8x16xi32>
    %334 = arith.shrsi %331, %333 : vector<8x16xi32>
    %c3_i32_139 = arith.constant 3 : i32
    %335 = vector.broadcast %c3_i32_139 : i32 to vector<8x16xi32>
    %336 = arith.andi %331, %335 : vector<8x16xi32>
    %c3_i32_140 = arith.constant 3 : i32
    %337 = vector.broadcast %c3_i32_140 : i32 to vector<8x16xi32>
    %338 = arith.shrsi %332, %337 : vector<8x16xi32>
    %c7_i32_141 = arith.constant 7 : i32
    %339 = vector.broadcast %c7_i32_141 : i32 to vector<8x16xi32>
    %340 = arith.andi %332, %339 : vector<8x16xi32>
    %341 = arith.cmpi eq, %338, %334 : vector<8x16xi32>
    %c2_i32_142 = arith.constant 2 : i32
    %342 = vector.broadcast %c2_i32_142 : i32 to vector<8x16xi32>
    %343 = arith.muli %342, %336 : vector<8x16xi32>
    %c2_i32_143 = arith.constant 2 : i32
    %344 = vector.broadcast %c2_i32_143 : i32 to vector<8x16xi32>
    %345 = arith.addi %343, %344 : vector<8x16xi32>
    %346 = arith.cmpi eq, %340, %345 : vector<8x16xi32>
    %347 = arith.andi %341, %346 : vector<8x16xi1>
    %cst_144 = arith.constant 1.000000e+00 : f32
    %cst_145 = arith.constant 0.000000e+00 : f32
    %348 = vector.broadcast %cst_144 : f32 to vector<8x16xf32>
    %349 = vector.broadcast %cst_145 : f32 to vector<8x16xf32>
    %350 = arith.select %347, %348, %349 : vector<8x16xi1>, vector<8x16xf32>
    %351 = arith.truncf %350 : vector<8x16xf32> to vector<8x16xbf16>
    %cst_146 = arith.constant dense<0.000000e+00> : vector<8x128xf32>
    %352 = tpu.matmul %351, %253, %cst_146 {dimension_numbers = #tpu.dot_dimension_numbers<[1], [0], [0], [1], [0, 0, 1, 1], [], []>} : vector<8x16xbf16>, vector<16x128xbf16>, vector<8x128xf32> -> vector<8x128xf32>
    %353 = arith.truncf %352 : vector<8x128xf32> to vector<8x128xbf16>
    %c384_147 = arith.constant 384 : index
    %c0_148 = arith.constant 0 : index
    %354 = vector.load %arg3[%c384_147, %c0_148] : memref<512x128xbf16, #tpu.memory_space<vmem>>, vector<128x128xbf16>
    %cst_149 = arith.constant dense<0.000000e+00> : vector<8x128xf32>
    %355 = tpu.matmul %353, %354, %cst_149 {dimension_numbers = #tpu.dot_dimension_numbers<[1], [0], [0], [1], [0, 0, 1, 1], [], []>} : vector<8x128xbf16>, vector<128x128xbf16>, vector<8x128xf32> -> vector<8x128xf32>
    %356 = arith.addf %330, %355 : vector<8x128xf32>
    %cst_150 = arith.constant 0.000000e+00 : f32
    %357 = vector.broadcast %cst_150 : f32 to vector<8x128xf32>
    %358 = arith.cmpf ogt, %356, %357 : vector<8x128xf32>
    %cst_151 = arith.constant 2.000000e-01 : f32
    %359 = vector.broadcast %cst_151 : f32 to vector<8x128xf32>
    %360 = arith.mulf %359, %356 : vector<8x128xf32>
    %361 = arith.select %358, %356, %360 : vector<8x128xi1>, vector<8x128xf32>
    %cst_152 = arith.constant dense<0.000000e+00> : vector<128xf32>
    %362 = vector.multi_reduction <add>, %361, %cst_152 [0] : vector<8x128xf32> to vector<128xf32>
    %363 = vector.shape_cast %362 : vector<128xf32> to vector<1x128xf32>
    %364 = arith.mulf %361, %361 : vector<8x128xf32>
    %cst_153 = arith.constant dense<0.000000e+00> : vector<128xf32>
    %365 = vector.multi_reduction <add>, %364, %cst_153 [0] : vector<8x128xf32> to vector<128xf32>
    %366 = vector.shape_cast %365 : vector<128xf32> to vector<1x128xf32>
    %367 = tpu.iota {dimensions = array<i32: 0>} : vector<128x128xi32>
    %368 = tpu.iota {dimensions = array<i32: 1>} : vector<128x128xi32>
    %c31_i32_154 = arith.constant 31 : i32
    %369 = vector.broadcast %c31_i32_154 : i32 to vector<128x128xi32>
    %370 = arith.andi %367, %369 : vector<128x128xi32>
    %c31_i32_155 = arith.constant 31 : i32
    %371 = vector.broadcast %c31_i32_155 : i32 to vector<128x128xi32>
    %372 = arith.andi %368, %371 : vector<128x128xi32>
    %373 = arith.cmpi eq, %370, %372 : vector<128x128xi32>
    %cst_156 = arith.constant 1.000000e+00 : f32
    %cst_157 = arith.constant 0.000000e+00 : f32
    %374 = vector.broadcast %cst_156 : f32 to vector<128x128xf32>
    %375 = vector.broadcast %cst_157 : f32 to vector<128x128xf32>
    %376 = arith.select %373, %374, %375 : vector<128x128xi1>, vector<128x128xf32>
    %cst_158 = arith.constant dense<0.000000e+00> : vector<1x128xf32>
    %377 = tpu.matmul %363, %376, %cst_158 {dimension_numbers = #tpu.dot_dimension_numbers<[1], [0], [0], [1], [0, 0, 1, 1], [], []>} : vector<1x128xf32>, vector<128x128xf32>, vector<1x128xf32> -> vector<1x128xf32>
    %cst_159 = arith.constant 3.125000e-02 : f32
    %378 = vector.broadcast %cst_159 : f32 to vector<1x128xf32>
    %379 = arith.mulf %377, %378 : vector<1x128xf32>
    %cst_160 = arith.constant dense<0.000000e+00> : vector<1x128xf32>
    %380 = tpu.matmul %366, %376, %cst_160 {dimension_numbers = #tpu.dot_dimension_numbers<[1], [0], [0], [1], [0, 0, 1, 1], [], []>} : vector<1x128xf32>, vector<128x128xf32>, vector<1x128xf32> -> vector<1x128xf32>
    %cst_161 = arith.constant 3.125000e-02 : f32
    %381 = vector.broadcast %cst_161 : f32 to vector<1x128xf32>
    %382 = arith.mulf %380, %381 : vector<1x128xf32>
    %383 = arith.mulf %379, %379 : vector<1x128xf32>
    %384 = arith.subf %382, %383 : vector<1x128xf32>
    %cst_162 = arith.constant 9.99999974E-6 : f32
    %385 = vector.broadcast %cst_162 : f32 to vector<1x128xf32>
    %386 = arith.addf %384, %385 : vector<1x128xf32>
    %387 = math.rsqrt %386 : vector<1x128xf32>
    %388 = vector.broadcast %379 : vector<1x128xf32> to vector<8x128xf32>
    %389 = arith.subf %361, %388 : vector<8x128xf32>
    %c0_163 = arith.constant 0 : index
    %c0_164 = arith.constant 0 : index
    %390 = vector.load %arg7[%c0_163, %c0_164] : memref<1x128xf32, #tpu.memory_space<vmem>>, vector<1x128xf32>
    %391 = arith.mulf %387, %390 : vector<1x128xf32>
    %392 = vector.broadcast %391 : vector<1x128xf32> to vector<8x128xf32>
    %393 = arith.mulf %389, %392 : vector<8x128xf32>
    %c0_165 = arith.constant 0 : index
    %c0_166 = arith.constant 0 : index
    %394 = vector.load %arg8[%c0_165, %c0_166] : memref<1x128xf32, #tpu.memory_space<vmem>>, vector<1x128xf32>
    %395 = vector.broadcast %394 : vector<1x128xf32> to vector<8x128xf32>
    %396 = arith.addf %393, %395 : vector<8x128xf32>
    %397 = arith.truncf %396 : vector<8x128xf32> to vector<8x128xbf16>
    %398 = tpu.iota {dimensions = array<i32: 0>} : vector<4x8xi32>
    %399 = tpu.iota {dimensions = array<i32: 1>} : vector<4x8xi32>
    %c1_i32_167 = arith.constant 1 : i32
    %400 = vector.broadcast %c1_i32_167 : i32 to vector<4x8xi32>
    %401 = arith.shrsi %398, %400 : vector<4x8xi32>
    %c1_i32_168 = arith.constant 1 : i32
    %402 = vector.broadcast %c1_i32_168 : i32 to vector<4x8xi32>
    %403 = arith.andi %398, %402 : vector<4x8xi32>
    %c2_i32_169 = arith.constant 2 : i32
    %404 = vector.broadcast %c2_i32_169 : i32 to vector<4x8xi32>
    %405 = arith.shrsi %399, %404 : vector<4x8xi32>
    %c3_i32_170 = arith.constant 3 : i32
    %406 = vector.broadcast %c3_i32_170 : i32 to vector<4x8xi32>
    %407 = arith.andi %399, %406 : vector<4x8xi32>
    %408 = arith.cmpi eq, %405, %401 : vector<4x8xi32>
    %c2_i32_171 = arith.constant 2 : i32
    %409 = vector.broadcast %c2_i32_171 : i32 to vector<4x8xi32>
    %410 = arith.muli %409, %403 : vector<4x8xi32>
    %c-1_i32_172 = arith.constant -1 : i32
    %411 = vector.broadcast %c-1_i32_172 : i32 to vector<4x8xi32>
    %412 = arith.addi %410, %411 : vector<4x8xi32>
    %413 = arith.cmpi eq, %407, %412 : vector<4x8xi32>
    %414 = arith.andi %408, %413 : vector<4x8xi1>
    %cst_173 = arith.constant 1.000000e+00 : f32
    %cst_174 = arith.constant 0.000000e+00 : f32
    %415 = vector.broadcast %cst_173 : f32 to vector<4x8xf32>
    %416 = vector.broadcast %cst_174 : f32 to vector<4x8xf32>
    %417 = arith.select %414, %415, %416 : vector<4x8xi1>, vector<4x8xf32>
    %418 = arith.truncf %417 : vector<4x8xf32> to vector<4x8xbf16>
    %cst_175 = arith.constant dense<0.000000e+00> : vector<4x128xf32>
    %419 = tpu.matmul %418, %397, %cst_175 {dimension_numbers = #tpu.dot_dimension_numbers<[1], [0], [0], [1], [0, 0, 1, 1], [], []>} : vector<4x8xbf16>, vector<8x128xbf16>, vector<4x128xf32> -> vector<4x128xf32>
    %420 = arith.truncf %419 : vector<4x128xf32> to vector<4x128xbf16>
    %c0_176 = arith.constant 0 : index
    %c0_177 = arith.constant 0 : index
    %421 = vector.load %arg4[%c0_176, %c0_177] : memref<512x128xbf16, #tpu.memory_space<vmem>>, vector<128x128xbf16>
    %cst_178 = arith.constant dense<0.000000e+00> : vector<4x128xf32>
    %422 = tpu.matmul %420, %421, %cst_178 {dimension_numbers = #tpu.dot_dimension_numbers<[1], [0], [0], [1], [0, 0, 1, 1], [], []>} : vector<4x128xbf16>, vector<128x128xbf16>, vector<4x128xf32> -> vector<4x128xf32>
    %423 = tpu.iota {dimensions = array<i32: 0>} : vector<4x8xi32>
    %424 = tpu.iota {dimensions = array<i32: 1>} : vector<4x8xi32>
    %c1_i32_179 = arith.constant 1 : i32
    %425 = vector.broadcast %c1_i32_179 : i32 to vector<4x8xi32>
    %426 = arith.shrsi %423, %425 : vector<4x8xi32>
    %c1_i32_180 = arith.constant 1 : i32
    %427 = vector.broadcast %c1_i32_180 : i32 to vector<4x8xi32>
    %428 = arith.andi %423, %427 : vector<4x8xi32>
    %c2_i32_181 = arith.constant 2 : i32
    %429 = vector.broadcast %c2_i32_181 : i32 to vector<4x8xi32>
    %430 = arith.shrsi %424, %429 : vector<4x8xi32>
    %c3_i32_182 = arith.constant 3 : i32
    %431 = vector.broadcast %c3_i32_182 : i32 to vector<4x8xi32>
    %432 = arith.andi %424, %431 : vector<4x8xi32>
    %433 = arith.cmpi eq, %430, %426 : vector<4x8xi32>
    %c2_i32_183 = arith.constant 2 : i32
    %434 = vector.broadcast %c2_i32_183 : i32 to vector<4x8xi32>
    %435 = arith.muli %434, %428 : vector<4x8xi32>
    %c0_i32_184 = arith.constant 0 : i32
    %436 = vector.broadcast %c0_i32_184 : i32 to vector<4x8xi32>
    %437 = arith.addi %435, %436 : vector<4x8xi32>
    %438 = arith.cmpi eq, %432, %437 : vector<4x8xi32>
    %439 = arith.andi %433, %438 : vector<4x8xi1>
    %cst_185 = arith.constant 1.000000e+00 : f32
    %cst_186 = arith.constant 0.000000e+00 : f32
    %440 = vector.broadcast %cst_185 : f32 to vector<4x8xf32>
    %441 = vector.broadcast %cst_186 : f32 to vector<4x8xf32>
    %442 = arith.select %439, %440, %441 : vector<4x8xi1>, vector<4x8xf32>
    %443 = arith.truncf %442 : vector<4x8xf32> to vector<4x8xbf16>
    %cst_187 = arith.constant dense<0.000000e+00> : vector<4x128xf32>
    %444 = tpu.matmul %443, %397, %cst_187 {dimension_numbers = #tpu.dot_dimension_numbers<[1], [0], [0], [1], [0, 0, 1, 1], [], []>} : vector<4x8xbf16>, vector<8x128xbf16>, vector<4x128xf32> -> vector<4x128xf32>
    %445 = arith.truncf %444 : vector<4x128xf32> to vector<4x128xbf16>
    %c128_188 = arith.constant 128 : index
    %c0_189 = arith.constant 0 : index
    %446 = vector.load %arg4[%c128_188, %c0_189] : memref<512x128xbf16, #tpu.memory_space<vmem>>, vector<128x128xbf16>
    %cst_190 = arith.constant dense<0.000000e+00> : vector<4x128xf32>
    %447 = tpu.matmul %445, %446, %cst_190 {dimension_numbers = #tpu.dot_dimension_numbers<[1], [0], [0], [1], [0, 0, 1, 1], [], []>} : vector<4x128xbf16>, vector<128x128xbf16>, vector<4x128xf32> -> vector<4x128xf32>
    %448 = arith.addf %422, %447 : vector<4x128xf32>
    %449 = tpu.iota {dimensions = array<i32: 0>} : vector<4x8xi32>
    %450 = tpu.iota {dimensions = array<i32: 1>} : vector<4x8xi32>
    %c1_i32_191 = arith.constant 1 : i32
    %451 = vector.broadcast %c1_i32_191 : i32 to vector<4x8xi32>
    %452 = arith.shrsi %449, %451 : vector<4x8xi32>
    %c1_i32_192 = arith.constant 1 : i32
    %453 = vector.broadcast %c1_i32_192 : i32 to vector<4x8xi32>
    %454 = arith.andi %449, %453 : vector<4x8xi32>
    %c2_i32_193 = arith.constant 2 : i32
    %455 = vector.broadcast %c2_i32_193 : i32 to vector<4x8xi32>
    %456 = arith.shrsi %450, %455 : vector<4x8xi32>
    %c3_i32_194 = arith.constant 3 : i32
    %457 = vector.broadcast %c3_i32_194 : i32 to vector<4x8xi32>
    %458 = arith.andi %450, %457 : vector<4x8xi32>
    %459 = arith.cmpi eq, %456, %452 : vector<4x8xi32>
    %c2_i32_195 = arith.constant 2 : i32
    %460 = vector.broadcast %c2_i32_195 : i32 to vector<4x8xi32>
    %461 = arith.muli %460, %454 : vector<4x8xi32>
    %c1_i32_196 = arith.constant 1 : i32
    %462 = vector.broadcast %c1_i32_196 : i32 to vector<4x8xi32>
    %463 = arith.addi %461, %462 : vector<4x8xi32>
    %464 = arith.cmpi eq, %458, %463 : vector<4x8xi32>
    %465 = arith.andi %459, %464 : vector<4x8xi1>
    %cst_197 = arith.constant 1.000000e+00 : f32
    %cst_198 = arith.constant 0.000000e+00 : f32
    %466 = vector.broadcast %cst_197 : f32 to vector<4x8xf32>
    %467 = vector.broadcast %cst_198 : f32 to vector<4x8xf32>
    %468 = arith.select %465, %466, %467 : vector<4x8xi1>, vector<4x8xf32>
    %469 = arith.truncf %468 : vector<4x8xf32> to vector<4x8xbf16>
    %cst_199 = arith.constant dense<0.000000e+00> : vector<4x128xf32>
    %470 = tpu.matmul %469, %397, %cst_199 {dimension_numbers = #tpu.dot_dimension_numbers<[1], [0], [0], [1], [0, 0, 1, 1], [], []>} : vector<4x8xbf16>, vector<8x128xbf16>, vector<4x128xf32> -> vector<4x128xf32>
    %471 = arith.truncf %470 : vector<4x128xf32> to vector<4x128xbf16>
    %c256_200 = arith.constant 256 : index
    %c0_201 = arith.constant 0 : index
    %472 = vector.load %arg4[%c256_200, %c0_201] : memref<512x128xbf16, #tpu.memory_space<vmem>>, vector<128x128xbf16>
    %cst_202 = arith.constant dense<0.000000e+00> : vector<4x128xf32>
    %473 = tpu.matmul %471, %472, %cst_202 {dimension_numbers = #tpu.dot_dimension_numbers<[1], [0], [0], [1], [0, 0, 1, 1], [], []>} : vector<4x128xbf16>, vector<128x128xbf16>, vector<4x128xf32> -> vector<4x128xf32>
    %474 = arith.addf %448, %473 : vector<4x128xf32>
    %475 = tpu.iota {dimensions = array<i32: 0>} : vector<4x8xi32>
    %476 = tpu.iota {dimensions = array<i32: 1>} : vector<4x8xi32>
    %c1_i32_203 = arith.constant 1 : i32
    %477 = vector.broadcast %c1_i32_203 : i32 to vector<4x8xi32>
    %478 = arith.shrsi %475, %477 : vector<4x8xi32>
    %c1_i32_204 = arith.constant 1 : i32
    %479 = vector.broadcast %c1_i32_204 : i32 to vector<4x8xi32>
    %480 = arith.andi %475, %479 : vector<4x8xi32>
    %c2_i32_205 = arith.constant 2 : i32
    %481 = vector.broadcast %c2_i32_205 : i32 to vector<4x8xi32>
    %482 = arith.shrsi %476, %481 : vector<4x8xi32>
    %c3_i32_206 = arith.constant 3 : i32
    %483 = vector.broadcast %c3_i32_206 : i32 to vector<4x8xi32>
    %484 = arith.andi %476, %483 : vector<4x8xi32>
    %485 = arith.cmpi eq, %482, %478 : vector<4x8xi32>
    %c2_i32_207 = arith.constant 2 : i32
    %486 = vector.broadcast %c2_i32_207 : i32 to vector<4x8xi32>
    %487 = arith.muli %486, %480 : vector<4x8xi32>
    %c2_i32_208 = arith.constant 2 : i32
    %488 = vector.broadcast %c2_i32_208 : i32 to vector<4x8xi32>
    %489 = arith.addi %487, %488 : vector<4x8xi32>
    %490 = arith.cmpi eq, %484, %489 : vector<4x8xi32>
    %491 = arith.andi %485, %490 : vector<4x8xi1>
    %cst_209 = arith.constant 1.000000e+00 : f32
    %cst_210 = arith.constant 0.000000e+00 : f32
    %492 = vector.broadcast %cst_209 : f32 to vector<4x8xf32>
    %493 = vector.broadcast %cst_210 : f32 to vector<4x8xf32>
    %494 = arith.select %491, %492, %493 : vector<4x8xi1>, vector<4x8xf32>
    %495 = arith.truncf %494 : vector<4x8xf32> to vector<4x8xbf16>
    %cst_211 = arith.constant dense<0.000000e+00> : vector<4x128xf32>
    %496 = tpu.matmul %495, %397, %cst_211 {dimension_numbers = #tpu.dot_dimension_numbers<[1], [0], [0], [1], [0, 0, 1, 1], [], []>} : vector<4x8xbf16>, vector<8x128xbf16>, vector<4x128xf32> -> vector<4x128xf32>
    %497 = arith.truncf %496 : vector<4x128xf32> to vector<4x128xbf16>
    %c384_212 = arith.constant 384 : index
    %c0_213 = arith.constant 0 : index
    %498 = vector.load %arg4[%c384_212, %c0_213] : memref<512x128xbf16, #tpu.memory_space<vmem>>, vector<128x128xbf16>
    %cst_214 = arith.constant dense<0.000000e+00> : vector<4x128xf32>
    %499 = tpu.matmul %497, %498, %cst_214 {dimension_numbers = #tpu.dot_dimension_numbers<[1], [0], [0], [1], [0, 0, 1, 1], [], []>} : vector<4x128xbf16>, vector<128x128xbf16>, vector<4x128xf32> -> vector<4x128xf32>
    %500 = arith.addf %474, %499 : vector<4x128xf32>
    %cst_215 = arith.constant 0.000000e+00 : f32
    %501 = vector.broadcast %cst_215 : f32 to vector<4x128xf32>
    %502 = arith.cmpf ogt, %500, %501 : vector<4x128xf32>
    %cst_216 = arith.constant 2.000000e-01 : f32
    %503 = vector.broadcast %cst_216 : f32 to vector<4x128xf32>
    %504 = arith.mulf %503, %500 : vector<4x128xf32>
    %505 = arith.select %502, %500, %504 : vector<4x128xi1>, vector<4x128xf32>
    %cst_217 = arith.constant dense<0.000000e+00> : vector<128xf32>
    %506 = vector.multi_reduction <add>, %505, %cst_217 [0] : vector<4x128xf32> to vector<128xf32>
    %507 = vector.shape_cast %506 : vector<128xf32> to vector<1x128xf32>
    %508 = arith.mulf %505, %505 : vector<4x128xf32>
    %cst_218 = arith.constant dense<0.000000e+00> : vector<128xf32>
    %509 = vector.multi_reduction <add>, %508, %cst_218 [0] : vector<4x128xf32> to vector<128xf32>
    %510 = vector.shape_cast %509 : vector<128xf32> to vector<1x128xf32>
    %511 = tpu.iota {dimensions = array<i32: 0>} : vector<128x128xi32>
    %512 = tpu.iota {dimensions = array<i32: 1>} : vector<128x128xi32>
    %c63_i32 = arith.constant 63 : i32
    %513 = vector.broadcast %c63_i32 : i32 to vector<128x128xi32>
    %514 = arith.andi %511, %513 : vector<128x128xi32>
    %c63_i32_219 = arith.constant 63 : i32
    %515 = vector.broadcast %c63_i32_219 : i32 to vector<128x128xi32>
    %516 = arith.andi %512, %515 : vector<128x128xi32>
    %517 = arith.cmpi eq, %514, %516 : vector<128x128xi32>
    %cst_220 = arith.constant 1.000000e+00 : f32
    %cst_221 = arith.constant 0.000000e+00 : f32
    %518 = vector.broadcast %cst_220 : f32 to vector<128x128xf32>
    %519 = vector.broadcast %cst_221 : f32 to vector<128x128xf32>
    %520 = arith.select %517, %518, %519 : vector<128x128xi1>, vector<128x128xf32>
    %cst_222 = arith.constant dense<0.000000e+00> : vector<1x128xf32>
    %521 = tpu.matmul %507, %520, %cst_222 {dimension_numbers = #tpu.dot_dimension_numbers<[1], [0], [0], [1], [0, 0, 1, 1], [], []>} : vector<1x128xf32>, vector<128x128xf32>, vector<1x128xf32> -> vector<1x128xf32>
    %cst_223 = arith.constant 1.250000e-01 : f32
    %522 = vector.broadcast %cst_223 : f32 to vector<1x128xf32>
    %523 = arith.mulf %521, %522 : vector<1x128xf32>
    %cst_224 = arith.constant dense<0.000000e+00> : vector<1x128xf32>
    %524 = tpu.matmul %510, %520, %cst_224 {dimension_numbers = #tpu.dot_dimension_numbers<[1], [0], [0], [1], [0, 0, 1, 1], [], []>} : vector<1x128xf32>, vector<128x128xf32>, vector<1x128xf32> -> vector<1x128xf32>
    %cst_225 = arith.constant 1.250000e-01 : f32
    %525 = vector.broadcast %cst_225 : f32 to vector<1x128xf32>
    %526 = arith.mulf %524, %525 : vector<1x128xf32>
    %527 = arith.mulf %523, %523 : vector<1x128xf32>
    %528 = arith.subf %526, %527 : vector<1x128xf32>
    %cst_226 = arith.constant 9.99999974E-6 : f32
    %529 = vector.broadcast %cst_226 : f32 to vector<1x128xf32>
    %530 = arith.addf %528, %529 : vector<1x128xf32>
    %531 = math.rsqrt %530 : vector<1x128xf32>
    %532 = vector.broadcast %523 : vector<1x128xf32> to vector<4x128xf32>
    %533 = arith.subf %505, %532 : vector<4x128xf32>
    %c0_227 = arith.constant 0 : index
    %c0_228 = arith.constant 0 : index
    %534 = vector.load %arg9[%c0_227, %c0_228] : memref<1x128xf32, #tpu.memory_space<vmem>>, vector<1x128xf32>
    %535 = arith.mulf %531, %534 : vector<1x128xf32>
    %536 = vector.broadcast %535 : vector<1x128xf32> to vector<4x128xf32>
    %537 = arith.mulf %533, %536 : vector<4x128xf32>
    %c0_229 = arith.constant 0 : index
    %c0_230 = arith.constant 0 : index
    %538 = vector.load %arg10[%c0_229, %c0_230] : memref<1x128xf32, #tpu.memory_space<vmem>>, vector<1x128xf32>
    %539 = vector.broadcast %538 : vector<1x128xf32> to vector<4x128xf32>
    %540 = arith.addf %537, %539 : vector<4x128xf32>
    %541 = tpu.iota {dimensions = array<i32: 0>} : vector<4x128xi32>
    %c1_i32_231 = arith.constant 1 : i32
    %542 = vector.broadcast %c1_i32_231 : i32 to vector<4x128xi32>
    %543 = arith.andi %541, %542 : vector<4x128xi32>
    %c0_i32_232 = arith.constant 0 : i32
    %544 = vector.broadcast %c0_i32_232 : i32 to vector<4x128xi32>
    %545 = arith.cmpi eq, %543, %544 : vector<4x128xi32>
    %c0_233 = arith.constant 0 : index
    %c0_234 = arith.constant 0 : index
    %546 = vector.load %arg11[%c0_233, %c0_234] : memref<2x128xf32, #tpu.memory_space<vmem>>, vector<1x128xf32>
    %c1 = arith.constant 1 : index
    %c0_235 = arith.constant 0 : index
    %547 = vector.load %arg11[%c1, %c0_235] : memref<2x128xf32, #tpu.memory_space<vmem>>, vector<1x128xf32>
    %548 = vector.shape_cast %546 : vector<1x128xf32> to vector<1x128xf32>
    %549 = vector.broadcast %548 : vector<1x128xf32> to vector<4x128xf32>
    %550 = vector.shape_cast %547 : vector<1x128xf32> to vector<1x128xf32>
    %551 = vector.broadcast %550 : vector<1x128xf32> to vector<4x128xf32>
    %552 = arith.select %545, %549, %551 : vector<4x128xi1>, vector<4x128xf32>
    %553 = arith.mulf %540, %552 : vector<4x128xf32>
    %554 = tpu.iota {dimensions = array<i32: 0>} : vector<2x4xi32>
    %555 = tpu.iota {dimensions = array<i32: 1>} : vector<2x4xi32>
    %c1_i32_236 = arith.constant 1 : i32
    %556 = vector.broadcast %c1_i32_236 : i32 to vector<2x4xi32>
    %557 = arith.shrsi %555, %556 : vector<2x4xi32>
    %558 = arith.cmpi eq, %557, %554 : vector<2x4xi32>
    %cst_237 = arith.constant 1.000000e+00 : f32
    %cst_238 = arith.constant 0.000000e+00 : f32
    %559 = vector.broadcast %cst_237 : f32 to vector<2x4xf32>
    %560 = vector.broadcast %cst_238 : f32 to vector<2x4xf32>
    %561 = arith.select %558, %559, %560 : vector<2x4xi1>, vector<2x4xf32>
    %cst_239 = arith.constant dense<0.000000e+00> : vector<2x128xf32>
    %562 = tpu.matmul %561, %553, %cst_239 {dimension_numbers = #tpu.dot_dimension_numbers<[1], [0], [0], [1], [0, 0, 1, 1], [], []>} : vector<2x4xf32>, vector<4x128xf32>, vector<2x128xf32> -> vector<2x128xf32>
    %cst_240 = arith.constant dense<0.000000e+00> : vector<2xf32>
    %563 = vector.multi_reduction <add>, %562, %cst_240 [1] : vector<2x128xf32> to vector<2xf32>
    %564 = vector.shape_cast %563 : vector<2xf32> to vector<2x1xf32>
    %c0_241 = arith.constant 0 : index
    %c0_242 = arith.constant 0 : index
    %565 = vector.load %arg12[%c0_241, %c0_242] : memref<1x1xf32, #tpu.memory_space<vmem>>, vector<1x1xf32>
    %566 = vector.broadcast %565 : vector<1x1xf32> to vector<2x1xf32>
    %567 = arith.addf %564, %566 : vector<2x1xf32>
    %c0_243 = arith.constant 0 : index
    %c0_244 = arith.constant 0 : index
    %568 = vector.load %arg13[%c0_243, %c0_244] : memref<2x1xf32, #tpu.memory_space<vmem>>, vector<2x1xf32>
    tpu.vector_store %arg13[%c0_243, %c0_244], %567 {strides = array<i32>} : memref<2x1xf32, #tpu.memory_space<vmem>>, vector<2x1xf32>,
    return
  }
}

</mosaic_0001>

<llo_original>
// kernel: discriminator_forward.1
$region0: #{discriminator_forward.1}
  #allocation0 [shape = 'u32[]', space=smem, size = 0x4, offset = 0x4, fixed_abs, tag = 'smem constant byte address 0x4 - core index']
  #allocation1 [shape = 'u32[144,128]{1,0:T(1,128)}', space=vmem, size = 0x12000, scoped, tag = 'internal scratch']
  #allocation2 [shape = 'f32[1,1]{1,0:T(1,128)S(1)}', space=vmem, size = 0x200, scoped, tag = 'scoped memory for discriminator_forward.1']
  %s0 = inlined_call_operand.vmem [shape: bf16[64,128], index: 0, kind: input, shape index: {}]
  %s1 = inlined_call_operand.vmem [shape: bf16[512,128], index: 1, kind: input, shape index: {}]
  %s2 = inlined_call_operand.vmem [shape: bf16[512,128], index: 2, kind: input, shape index: {}]
  %s3 = inlined_call_operand.vmem [shape: bf16[512,128], index: 3, kind: input, shape index: {}]
  %s4 = inlined_call_operand.hbm [shape: bf16[512,128], index: 4, kind: input, shape index: {}]
  %s5 = inlined_call_operand.vmem [shape: f32[1,128], index: 5, kind: input, shape index: {}]
  %s6 = inlined_call_operand.vmem [shape: f32[1,128], index: 6, kind: input, shape index: {}]
  %s7 = inlined_call_operand.vmem [shape: f32[1,128], index: 7, kind: input, shape index: {}]
  %s8 = inlined_call_operand.vmem [shape: f32[1,128], index: 8, kind: input, shape index: {}]
  %s9 = inlined_call_operand.vmem [shape: f32[1,128], index: 9, kind: input, shape index: {}]
  %s10 = inlined_call_operand.vmem [shape: f32[1,128], index: 10, kind: input, shape index: {}]
  %s11 = inlined_call_operand.vmem [shape: f32[2,128], index: 11, kind: input, shape index: {}]
  %s12 = inlined_call_operand.<no memory space> [shape: f32[1,1], index: 12, kind: input, shape index: {}]
  %s13 = inlined_call_operand.vmem [shape: f32[2,1], index: 13, kind: output, shape index: {}]
  %s14 = sld [smem:[#allocation0]]
  $region66: #{discriminator_forward.1} parent=0
    _
  %s16 = ssub.s32 1, %s14
  %s17 = scalar_select 0, %s16, %s14
  %v18 = vstv %s12
  %19 = vst [vmem:[#allocation2] sm:$0x1] %v18
  $region1: #{discriminator_forward.1} parent=0
    #allocation3 [shape = 'u8[131072]{0}', space=vmem, size = 0x20000, scoped, tag = 'input window, operand 4, single buffered']
    #allocation4 [shape = 's32[1]{0}', space=sflag, size = 0x4, scoped, tag = 'scoped memory for discriminator_forward.1']
    %20 = vsyncpa [#allocation4], 0
    // Predicated region
    $region2: #{discriminator_forward.1} parent=1 // pred_check
      _
    $region3: #{discriminator_forward.1} parent=1 // pred_check_branch
      %22 = sbr.rel (0) target = $region5
    $region4: #{discriminator_forward.1} parent=1 // pred_region
      _
    $region5: #{discriminator_forward.1} parent=1 // pred_fallthru
      _
    // Predicated region
    $region6: #{discriminator_forward.1} parent=1 // pred_check
      _
    $region7: #{discriminator_forward.1} parent=1 // pred_check_branch
      %24 = sbr.rel (0) target = $region9
    $region8: #{discriminator_forward.1} parent=1 // pred_region
      _
    $region9: #{discriminator_forward.1} parent=1 // pred_fallthru
      _
    // Predicated region
    $region10: #{discriminator_forward.1} parent=1 // pred_check
      _
    $region11: #{discriminator_forward.1} parent=1 // pred_check_branch
      %26 = sbr.rel (0) target = $region13
    $region12: #{discriminator_forward.1} parent=1 // pred_region
      _
    $region13: #{discriminator_forward.1} parent=1 // pred_fallthru
      _
    // Predicated region
    $region14: #{discriminator_forward.1} parent=1 // pred_check
      _
    $region15: #{discriminator_forward.1} parent=1 // pred_check_branch
      %28 = sbr.rel (0) target = $region17
    $region16: #{discriminator_forward.1} parent=1 // pred_region
      _
    $region17: #{discriminator_forward.1} parent=1 // pred_fallthru
      _
    // Predicated region
    $region18: #{discriminator_forward.1} parent=1 // pred_check
      _
    $region19: #{discriminator_forward.1} parent=1 // pred_check_branch
      %30 = sbr.rel (0) target = $region21
    $region20: #{discriminator_forward.1} parent=1 // pred_region
      %s32 = ssub.s32 4096, 4096
      %33 = vsyncadd [#allocation4], %s32
      %s34 = sshll.u32 [#allocation3], 4
      %s35 = int_to_ptr.vmem [resolvable:$true] %s34
      %40 = dma.hbm_to_vmem [thread:$0]  %s4, 4096, %s35, [#allocation4], 64, 64, 4
    $region21: #{discriminator_forward.1} parent=1 // pred_fallthru
      _
    // Predicated region
    $region22: #{discriminator_forward.1} parent=1 // pred_check
      _
    $region23: #{discriminator_forward.1} parent=1 // pred_check_branch
      %42 = sbr.rel (0) target = $region25
    $region24: #{discriminator_forward.1} parent=1 // pred_region
      _
    $region25: #{discriminator_forward.1} parent=1 // pred_fallthru
      _
    // Predicated region
    $region26: #{discriminator_forward.1} parent=1 // pred_check
      _
    $region27: #{discriminator_forward.1} parent=1 // pred_check_branch
      %44 = sbr.rel (0) target = $region29
    $region28: #{discriminator_forward.1} parent=1 // pred_region
      _
    $region29: #{discriminator_forward.1} parent=1 // pred_fallthru
      _
    // Predicated region
    $region30: #{discriminator_forward.1} parent=1 // pred_check
      _
    $region31: #{discriminator_forward.1} parent=1 // pred_check_branch
      %46 = sbr.rel (0) target = $region33
    $region32: #{discriminator_forward.1} parent=1 // pred_region
      _
    $region33: #{discriminator_forward.1} parent=1 // pred_fallthru
      _
    // Predicated region
    $region34: #{discriminator_forward.1} parent=1 // pred_check
      _
    $region35: #{discriminator_forward.1} parent=1 // pred_check_branch
      %48 = sbr.rel (0) target = $region37
    $region36: #{discriminator_forward.1} parent=1 // pred_region
      _
    $region37: #{discriminator_forward.1} parent=1 // pred_fallthru
      _
    // Predicated region
    $region38: #{discriminator_forward.1} parent=1 // pred_check
      _
    $region39: #{discriminator_forward.1} parent=1 // pred_check_branch
      %50 = sbr.rel (0) target = $region41
    $region40: #{discriminator_forward.1} parent=1 // pred_region
      _
    $region41: #{discriminator_forward.1} parent=1 // pred_fallthru
      _
    // Predicated region
    $region42: #{discriminator_forward.1} parent=1 // pred_check
      _
    $region43: #{discriminator_forward.1} parent=1 // pred_check_branch
      %52 = sbr.rel (0) target = $region45
    $region44: #{discriminator_forward.1} parent=1 // pred_region
      _
    $region45: #{discriminator_forward.1} parent=1 // pred_fallthru
      _
    // Predicated region
    $region46: #{discriminator_forward.1} parent=1 // pred_check
      _
    $region47: #{discriminator_forward.1} parent=1 // pred_check_branch
      %54 = sbr.rel (0) target = $region49
    $region48: #{discriminator_forward.1} parent=1 // pred_region
      _
    $region49: #{discriminator_forward.1} parent=1 // pred_fallthru
      _
    // Predicated region
    $region50: #{discriminator_forward.1} parent=1 // pred_check
      _
    $region51: #{discriminator_forward.1} parent=1 // pred_check_branch
      %56 = sbr.rel (0) target = $region53
    $region52: #{discriminator_forward.1} parent=1 // pred_region
      _
    $region53: #{discriminator_forward.1} parent=1 // pred_fallthru
      _
    // Predicated region
    $region54: #{discriminator_forward.1} parent=1 // pred_check
      _
    $region55: #{discriminator_forward.1} parent=1 // pred_check_branch
      %58 = sbr.rel (0) target = $region57
    $region56: #{discriminator_forward.1} parent=1 // pred_region
      %59 = dma.done [#allocation4], 4096
    $region57: #{discriminator_forward.1} parent=1 // pred_fallthru
      _
    %v61 = vld [vmem:[%s0] sm:$0xf]
    %v62 = vld [vmem:[%s0 + $0x4] sm:$0xf]
    %v63 = vld [vmem:[%s0 + $0x8] sm:$0xf]
    %v64 = vld [vmem:[%s0 + $0xc] sm:$0xf]
    %v65 = vld [vmem:[%s0 + $0x10] sm:$0xf]
    %v66 = vld [vmem:[%s0 + $0x14] sm:$0xf]
    %v67 = vld [vmem:[%s0 + $0x18] sm:$0xf]
    %v68 = vld [vmem:[%s0 + $0x1c] sm:$0xf]
    %v69 = vlaneseq
    %v70 = vshrl.u32 %v69, 7
    %v71 = vadd.s32 %v70, 8
    %v72 = vadd.s32 %v70, 16
    %v73 = vadd.s32 %v70, 24
    %v74 = vlaneseq
    %v75 = vand.u32 %v74, 127
    %v76 = vshra.s32 %v70, 4
    %v77 = vshra.s32 %v71, 4
    %v78 = vshra.s32 %v72, 4
    %v79 = vshra.s32 %v73, 4
    %v80 = vand.u32 %v70, 15
    %v81 = vand.u32 %v71, 15
    %v82 = vand.u32 %v72, 15
    %v83 = vand.u32 %v73, 15
    %v84 = vshra.s32 %v75, 5
    %v85 = vand.u32 %v75, 31
    %vm86 = vcmp.eq.s32.totalorder %v84, %v76
    %vm87 = vcmp.eq.s32.totalorder %v84, %v77
    %vm88 = vcmp.eq.s32.totalorder %v84, %v78
    %vm89 = vcmp.eq.s32.totalorder %v84, %v79
    %v90 = vmul.u32 %v80, 2
    %v91 = vmul.u32 %v81, 2
    %v92 = vmul.u32 %v82, 2
    %v93 = vmul.u32 %v83, 2
    %v94 = vadd.s32 %v90, 4294967295
    %v95 = vadd.s32 %v91, 4294967295
    %v96 = vadd.s32 %v92, 4294967295
    %v97 = vadd.s32 %v93, 4294967295
    %vm98 = vcmp.eq.s32.totalorder %v85, %v94
    %vm99 = vcmp.eq.s32.totalorder %v85, %v95
    %vm100 = vcmp.eq.s32.totalorder %v85, %v96
    %vm101 = vcmp.eq.s32.totalorder %v85, %v97
    %vm102 = vmand %vm86, %vm98
    %vm103 = vmand %vm87, %vm99
    %vm104 = vmand %vm88, %vm100
    %vm105 = vmand %vm89, %vm101
    %v106 = vsel %vm102, 1.0, 0.0
    %v107 = vsel %vm103, 1.0, 0.0
    %v108 = vsel %vm104, 1.0, 0.0
    %v109 = vsel %vm105, 1.0, 0.0
    %v110 = vpack.c.bf16 %v107, %v106
    %v111 = vpack.c.bf16 %v109, %v108
    %v120 = vunpack.c.l.b16 %v61
    %v121 = vunpack.c.l.b16 %v62
    %v122 = vunpack.c.l.b16 %v63
    %v123 = vunpack.c.l.b16 %v64
    %v124 = vunpack.c.l.b16 %v65
    %v125 = vunpack.c.l.b16 %v66
    %v126 = vunpack.c.l.b16 %v67
    %v127 = vunpack.c.l.b16 %v68
    %v128 = vpack.c.b16 %v121, %v120
    %v129 = vpack.c.b16 %v123, %v122
    %v130 = vpack.c.b16 %v125, %v124
    %v131 = vpack.c.b16 %v127, %v126
    %vm136 = vcmask 523264
    %v138 = vsel %vm136, %v110, 0
    %v141 = vsel %vm136, %v111, 0
    %143 = vmatprep.subr.bf16.mxu0 0
    %144 = vmatpush1.bf16.msra.mxu0 %v128
    %145 = vmatprep.subr.bf16.mxu0 0
    %146 = vmatpush1.bf16.msra.mxu0 %v129
    %147 = vmatprep.subr.bf16.mxu0 0
    %148 = vmatpush1.bf16.msra.mxu0 %v130
    %149 = vmatprep.subr.bf16.mxu0 0
    %150 = vmatpush1.bf16.msra.mxu0 %v131
    %151 = vmatprep.subr.bf16.mxu0 0
    %152 = vmatpush1.bf16.msra.mxu0 0
    %153 = vmatprep.subr.bf16.mxu0 0
    %154 = vmatpush1.bf16.msra.mxu0 0
    %155 = vmatprep.subr.bf16.mxu0 0
    %156 = vmatpush1.bf16.msra.mxu0 0
    %157 = vmatprep.subr.bf16.mxu0 0
    %158 = vmatpush1.bf16.msra.mxu0 0
    %159 = vmatprep.subr.bf16.mxu0 0
    %160 = vmatpush1.bf16.msra.mxu0 0
    %161 = vmatprep.subr.bf16.mxu0 0
    %162 = vmatpush1.bf16.msra.mxu0 0
    %163 = vmatprep.subr.bf16.mxu0 0
    %164 = vmatpush1.bf16.msra.mxu0 0
    %165 = vmatprep.subr.bf16.mxu0 0
    %166 = vmatpush1.bf16.msra.mxu0 0
    %167 = vmatprep.subr.bf16.mxu0 0
    %168 = vmatpush1.bf16.msra.mxu0 0
    %169 = vmatprep.subr.bf16.mxu0 0
    %170 = vmatpush1.bf16.msra.mxu0 0
    %171 = vmatprep.subr.bf16.mxu0 0
    %172 = vmatpush1.bf16.msra.mxu0 0
    %173 = vmatprep.subr.bf16.mxu0 0
    %174 = vmatpush1.bf16.msra.mxu0 0
    %175 = vmatprep.mubr.bf16.mxu0 0
    %176 = vmatmul.mubr.bf16.gmra.mrb[0].mxu0 %v138
    %v177 = vpop.f32.mrb[0].mxu0
    %v178 = vadd.f32 0.0, %v177
    %v179 = vpop.f32.mrb[0].mxu0
    %v180 = vpop.f32.mrb[0].mxu0
    %v181 = vadd.f32 0.0, %v180
    %v182 = vpop.f32.mrb[0].mxu0
    %183 = vmatprep.mubr.bf16.mxu0 0
    %184 = vmatmul.mubr.bf16.gmra.mrb[0].mxu0 %v141
    %v185 = vpop.f32.mrb[0].mxu0
    %v186 = vadd.f32 0.0, %v185
    %v187 = vpop.f32.mrb[0].mxu0
    %v188 = vpop.f32.mrb[0].mxu0
    %v189 = vadd.f32 0.0, %v188
    %v190 = vpop.f32.mrb[0].mxu0
    %191 = vdwg.mxu0
    %v192 = vpack.c.bf16 %v181, %v178
    %v193 = vpack.c.bf16 %v189, %v186
    %v194 = vld [vmem:[%s1] sm:$0xf]
    %v195 = vld [vmem:[%s1 + $0x4] sm:$0xf]
    %v196 = vld [vmem:[%s1 + $0x8] sm:$0xf]
    %v197 = vld [vmem:[%s1 + $0xc] sm:$0xf]
    %v198 = vld [vmem:[%s1 + $0x10] sm:$0xf]
    %v199 = vld [vmem:[%s1 + $0x14] sm:$0xf]
    %v200 = vld [vmem:[%s1 + $0x18] sm:$0xf]
    %v201 = vld [vmem:[%s1 + $0x1c] sm:$0xf]
    %v202 = vld [vmem:[%s1 + $0x20] sm:$0xf]
    %v203 = vld [vmem:[%s1 + $0x24] sm:$0xf]
    %v204 = vld [vmem:[%s1 + $0x28] sm:$0xf]
    %v205 = vld [vmem:[%s1 + $0x2c] sm:$0xf]
    %v206 = vld [vmem:[%s1 + $0x30] sm:$0xf]
    %v207 = vld [vmem:[%s1 + $0x34] sm:$0xf]
    %v208 = vld [vmem:[%s1 + $0x38] sm:$0xf]
    %v209 = vld [vmem:[%s1 + $0x3c] sm:$0xf]
    %vm210 = vcmp.eq.s32.totalorder %v85, %v90
    %vm211 = vcmp.eq.s32.totalorder %v85, %v91
    %vm212 = vcmp.eq.s32.totalorder %v85, %v92
    %vm213 = vcmp.eq.s32.totalorder %v85, %v93
    %vm214 = vmand %vm86, %vm210
    %vm215 = vmand %vm87, %vm211
    %vm216 = vmand %vm88, %vm212
    %vm217 = vmand %vm89, %vm213
    %v218 = vsel %vm214, 1.0, 0.0
    %v219 = vsel %vm215, 1.0, 0.0
    %v220 = vsel %vm216, 1.0, 0.0
    %v221 = vsel %vm217, 1.0, 0.0
    %v222 = vpack.c.bf16 %v219, %v218
    %v223 = vpack.c.bf16 %v221, %v220
    %v225 = vsel %vm136, %v222, 0
    %v228 = vsel %vm136, %v223, 0
    %230 = vmatprep.subr.bf16.mxu0 0
    %231 = vmatpush1.bf16.msra.mxu0 %v128
    %232 = vmatprep.subr.bf16.mxu0 0
    %233 = vmatpush1.bf16.msra.mxu0 %v129
    %234 = vmatprep.subr.bf16.mxu0 0
    %235 = vmatpush1.bf16.msra.mxu0 %v130
    %236 = vmatprep.subr.bf16.mxu0 0
    %237 = vmatpush1.bf16.msra.mxu0 %v131
    %238 = vmatprep.subr.bf16.mxu0 0
    %239 = vmatpush1.bf16.msra.mxu0 0
    %240 = vmatprep.subr.bf16.mxu0 0
    %241 = vmatpush1.bf16.msra.mxu0 0
    %242 = vmatprep.subr.bf16.mxu0 0
    %243 = vmatpush1.bf16.msra.mxu0 0
    %244 = vmatprep.subr.bf16.mxu0 0
    %245 = vmatpush1.bf16.msra.mxu0 0
    %246 = vmatprep.subr.bf16.mxu0 0
    %247 = vmatpush1.bf16.msra.mxu0 0
    %248 = vmatprep.subr.bf16.mxu0 0
    %249 = vmatpush1.bf16.msra.mxu0 0
    %250 = vmatprep.subr.bf16.mxu0 0
    %251 = vmatpush1.bf16.msra.mxu0 0
    %252 = vmatprep.subr.bf16.mxu0 0
    %253 = vmatpush1.bf16.msra.mxu0 0
    %254 = vmatprep.subr.bf16.mxu0 0
    %255 = vmatpush1.bf16.msra.mxu0 0
    %256 = vmatprep.subr.bf16.mxu0 0
    %257 = vmatpush1.bf16.msra.mxu0 0
    %258 = vmatprep.subr.bf16.mxu0 0
    %259 = vmatpush1.bf16.msra.mxu0 0
    %260 = vmatprep.subr.bf16.mxu0 0
    %261 = vmatpush1.bf16.msra.mxu0 0
    %262 = vmatprep.mubr.bf16.mxu0 0
    %263 = vmatmul.mubr.bf16.gmra.mrb[0].mxu0 %v225
    %v264 = vpop.f32.mrb[0].mxu0
    %v265 = vadd.f32 0.0, %v264
    %v266 = vpop.f32.mrb[0].mxu0
    %v267 = vpop.f32.mrb[0].mxu0
    %v268 = vadd.f32 0.0, %v267
    %v269 = vpop.f32.mrb[0].mxu0
    %270 = vmatprep.mubr.bf16.mxu0 0
    %271 = vmatmul.mubr.bf16.gmra.mrb[0].mxu0 %v228
    %v272 = vpop.f32.mrb[0].mxu0
    %v273 = vadd.f32 0.0, %v272
    %v274 = vpop.f32.mrb[0].mxu0
    %v275 = vpop.f32.mrb[0].mxu0
    %v276 = vadd.f32 0.0, %v275
    %v277 = vpop.f32.mrb[0].mxu0
    %278 = vdwg.mxu0
    %v279 = vpack.c.bf16 %v268, %v265
    %v280 = vpack.c.bf16 %v276, %v273
    %v281 = vld [vmem:[%s1 + $0x40] sm:$0xf]
    %v282 = vld [vmem:[%s1 + $0x44] sm:$0xf]
    %v283 = vld [vmem:[%s1 + $0x48] sm:$0xf]
    %v284 = vld [vmem:[%s1 + $0x4c] sm:$0xf]
    %v285 = vld [vmem:[%s1 + $0x50] sm:$0xf]
    %v286 = vld [vmem:[%s1 + $0x54] sm:$0xf]
    %v287 = vld [vmem:[%s1 + $0x58] sm:$0xf]
    %v288 = vld [vmem:[%s1 + $0x5c] sm:$0xf]
    %v289 = vld [vmem:[%s1 + $0x60] sm:$0xf]
    %v290 = vld [vmem:[%s1 + $0x64] sm:$0xf]
    %v291 = vld [vmem:[%s1 + $0x68] sm:$0xf]
    %v292 = vld [vmem:[%s1 + $0x6c] sm:$0xf]
    %v293 = vld [vmem:[%s1 + $0x70] sm:$0xf]
    %v294 = vld [vmem:[%s1 + $0x74] sm:$0xf]
    %v295 = vld [vmem:[%s1 + $0x78] sm:$0xf]
    %v296 = vld [vmem:[%s1 + $0x7c] sm:$0xf]
    %v313 = vunpack.c.l.b16 %v281
    %v314 = vunpack.c.l.b16 %v282
    %v315 = vunpack.c.l.b16 %v283
    %v316 = vunpack.c.l.b16 %v284
    %v317 = vunpack.c.l.b16 %v285
    %v318 = vunpack.c.l.b16 %v286
    %v319 = vunpack.c.l.b16 %v287
    %v320 = vunpack.c.l.b16 %v288
    %v321 = vunpack.c.l.b16 %v289
    %v322 = vunpack.c.l.b16 %v290
    %v323 = vunpack.c.l.b16 %v291
    %v324 = vunpack.c.l.b16 %v292
    %v325 = vunpack.c.l.b16 %v293
    %v326 = vunpack.c.l.b16 %v294
    %v327 = vunpack.c.l.b16 %v295
    %v328 = vunpack.c.l.b16 %v296
    %v329 = vpack.c.b16 %v314, %v313
    %v330 = vpack.c.b16 %v316, %v315
    %v331 = vpack.c.b16 %v318, %v317
    %v332 = vpack.c.b16 %v320, %v319
    %v333 = vpack.c.b16 %v322, %v321
    %v334 = vpack.c.b16 %v324, %v323
    %v335 = vpack.c.b16 %v326, %v325
    %v336 = vpack.c.b16 %v328, %v327
    %345 = vmatprep.subr.bf16.mxu0 0
    %346 = vmatpush1.bf16.msra.mxu0 %v329
    %347 = vmatprep.subr.bf16.mxu0 0
    %348 = vmatpush1.bf16.msra.mxu0 %v330
    %349 = vmatprep.subr.bf16.mxu0 0
    %350 = vmatpush1.bf16.msra.mxu0 %v331
    %351 = vmatprep.subr.bf16.mxu0 0
    %352 = vmatpush1.bf16.msra.mxu0 %v332
    %353 = vmatprep.subr.bf16.mxu0 0
    %354 = vmatpush1.bf16.msra.mxu0 %v333
    %355 = vmatprep.subr.bf16.mxu0 0
    %356 = vmatpush1.bf16.msra.mxu0 %v334
    %357 = vmatprep.subr.bf16.mxu0 0
    %358 = vmatpush1.bf16.msra.mxu0 %v335
    %359 = vmatprep.subr.bf16.mxu0 0
    %360 = vmatpush1.bf16.msra.mxu0 %v336
    %361 = vmatprep.subr.bf16.mxu0 0
    %362 = vmatpush1.bf16.msra.mxu0 0
    %363 = vmatprep.subr.bf16.mxu0 0
    %364 = vmatpush1.bf16.msra.mxu0 0
    %365 = vmatprep.subr.bf16.mxu0 0
    %366 = vmatpush1.bf16.msra.mxu0 0
    %367 = vmatprep.subr.bf16.mxu0 0
    %368 = vmatpush1.bf16.msra.mxu0 0
    %369 = vmatprep.subr.bf16.mxu0 0
    %370 = vmatpush1.bf16.msra.mxu0 0
    %371 = vmatprep.subr.bf16.mxu0 0
    %372 = vmatpush1.bf16.msra.mxu0 0
    %373 = vmatprep.subr.bf16.mxu0 0
    %374 = vmatpush1.bf16.msra.mxu0 0
    %375 = vmatprep.subr.bf16.mxu0 0
    %376 = vmatpush1.bf16.msra.mxu0 0
    %377 = vmatprep.mubr.bf16.mxu0 0
    %378 = vmatmul.mubr.bf16.gmra.mrb[0].mxu0 %v279
    %v379 = vpop.f32.mrb[0].mxu0
    %v380 = vadd.f32 0.0, %v379
    %v381 = vpop.f32.mrb[0].mxu0
    %v382 = vpop.f32.mrb[0].mxu0
    %v383 = vadd.f32 0.0, %v382
    %v384 = vpop.f32.mrb[0].mxu0
    %385 = vmatprep.mubr.bf16.mxu0 0
    %386 = vmatmul.mubr.bf16.gmra.mrb[0].mxu0 %v280
    %v387 = vpop.f32.mrb[0].mxu0
    %v388 = vadd.f32 0.0, %v387
    %v389 = vpop.f32.mrb[0].mxu0
    %v390 = vpop.f32.mrb[0].mxu0
    %v391 = vadd.f32 0.0, %v390
    %v392 = vpop.f32.mrb[0].mxu0
    %393 = vdwg.mxu0
    %v410 = vunpack.c.l.b16 %v194
    %v411 = vunpack.c.l.b16 %v195
    %v412 = vunpack.c.l.b16 %v196
    %v413 = vunpack.c.l.b16 %v197
    %v414 = vunpack.c.l.b16 %v198
    %v415 = vunpack.c.l.b16 %v199
    %v416 = vunpack.c.l.b16 %v200
    %v417 = vunpack.c.l.b16 %v201
    %v418 = vunpack.c.l.b16 %v202
    %v419 = vunpack.c.l.b16 %v203
    %v420 = vunpack.c.l.b16 %v204
    %v421 = vunpack.c.l.b16 %v205
    %v422 = vunpack.c.l.b16 %v206
    %v423 = vunpack.c.l.b16 %v207
    %v424 = vunpack.c.l.b16 %v208
    %v425 = vunpack.c.l.b16 %v209
    %v426 = vpack.c.b16 %v411, %v410
    %v427 = vpack.c.b16 %v413, %v412
    %v428 = vpack.c.b16 %v415, %v414
    %v429 = vpack.c.b16 %v417, %v416
    %v430 = vpack.c.b16 %v419, %v418
    %v431 = vpack.c.b16 %v421, %v420
    %v432 = vpack.c.b16 %v423, %v422
    %v433 = vpack.c.b16 %v425, %v424
    %442 = vmatprep.subr.bf16.mxu0 0
    %443 = vmatpush1.bf16.msra.mxu0 %v426
    %444 = vmatprep.subr.bf16.mxu0 0
    %445 = vmatpush1.bf16.msra.mxu0 %v427
    %446 = vmatprep.subr.bf16.mxu0 0
    %447 = vmatpush1.bf16.msra.mxu0 %v428
    %448 = vmatprep.subr.bf16.mxu0 0
    %449 = vmatpush1.bf16.msra.mxu0 %v429
    %450 = vmatprep.subr.bf16.mxu0 0
    %451 = vmatpush1.bf16.msra.mxu0 %v430
    %452 = vmatprep.subr.bf16.mxu0 0
    %453 = vmatpush1.bf16.msra.mxu0 %v431
    %454 = vmatprep.subr.bf16.mxu0 0
    %455 = vmatpush1.bf16.msra.mxu0 %v432
    %456 = vmatprep.subr.bf16.mxu0 0
    %457 = vmatpush1.bf16.msra.mxu0 %v433
    %458 = vmatprep.subr.bf16.mxu0 0
    %459 = vmatpush1.bf16.msra.mxu0 0
    %460 = vmatprep.subr.bf16.mxu0 0
    %461 = vmatpush1.bf16.msra.mxu0 0
    %462 = vmatprep.subr.bf16.mxu0 0
    %463 = vmatpush1.bf16.msra.mxu0 0
    %464 = vmatprep.subr.bf16.mxu0 0
    %465 = vmatpush1.bf16.msra.mxu0 0
    %466 = vmatprep.subr.bf16.mxu0 0
    %467 = vmatpush1.bf16.msra.mxu0 0
    %468 = vmatprep.subr.bf16.mxu0 0
    %469 = vmatpush1.bf16.msra.mxu0 0
    %470 = vmatprep.subr.bf16.mxu0 0
    %471 = vmatpush1.bf16.msra.mxu0 0
    %472 = vmatprep.subr.bf16.mxu0 0
    %473 = vmatpush1.bf16.msra.mxu0 0
    %474 = vmatprep.mubr.bf16.mxu0 0
    %475 = vmatmul.mubr.bf16.gmra.mrb[0].mxu0 %v192
    %v476 = vpop.f32.mrb[0].mxu0
    %v477 = vadd.f32 %v380, %v476
    %v478 = vpop.f32.mrb[0].mxu0
    %v479 = vpop.f32.mrb[0].mxu0
    %v480 = vadd.f32 %v383, %v479
    %v481 = vpop.f32.mrb[0].mxu0
    %482 = vmatprep.mubr.bf16.mxu0 0
    %483 = vmatmul.mubr.bf16.gmra.mrb[0].mxu0 %v193
    %v484 = vpop.f32.mrb[0].mxu0
    %v485 = vadd.f32 %v388, %v484
    %v486 = vpop.f32.mrb[0].mxu0
    %v487 = vpop.f32.mrb[0].mxu0
    %v488 = vadd.f32 %v391, %v487
    %v489 = vpop.f32.mrb[0].mxu0
    %490 = vdwg.mxu0
    %v491 = vadd.s32 %v90, 1
    %v492 = vadd.s32 %v91, 1
    %v493 = vadd.s32 %v92, 1
    %v494 = vadd.s32 %v93, 1
    %vm495 = vcmp.eq.s32.totalorder %v85, %v491
    %vm496 = vcmp.eq.s32.totalorder %v85, %v492
    %vm497 = vcmp.eq.s32.totalorder %v85, %v493
    %vm498 = vcmp.eq.s32.totalorder %v85, %v494
    %vm499 = vmand %vm86, %vm495
    %vm500 = vmand %vm87, %vm496
    %vm501 = vmand %vm88, %vm497
    %vm502 = vmand %vm89, %vm498
    %v503 = vsel %vm499, 1.0, 0.0
    %v504 = vsel %vm500, 1.0, 0.0
    %v505 = vsel %vm501, 1.0, 0.0
    %v506 = vsel %vm502, 1.0, 0.0
    %v507 = vpack.c.bf16 %v504, %v503
    %v508 = vpack.c.bf16 %v506, %v505
    %v510 = vsel %vm136, %v507, 0
    %v513 = vsel %vm136, %v508, 0
    %515 = vmatprep.subr.bf16.mxu0 0
    %516 = vmatpush1.bf16.msra.mxu0 %v128
    %517 = vmatprep.subr.bf16.mxu0 0
    %518 = vmatpush1.bf16.msra.mxu0 %v129
    %519 = vmatprep.subr.bf16.mxu0 0
    %520 = vmatpush1.bf16.msra.mxu0 %v130
    %521 = vmatprep.subr.bf16.mxu0 0
    %522 = vmatpush1.bf16.msra.mxu0 %v131
    %523 = vmatprep.subr.bf16.mxu0 0
    %524 = vmatpush1.bf16.msra.mxu0 0
    %525 = vmatprep.subr.bf16.mxu0 0
    %526 = vmatpush1.bf16.msra.mxu0 0
    %527 = vmatprep.subr.bf16.mxu0 0
    %528 = vmatpush1.bf16.msra.mxu0 0
    %529 = vmatprep.subr.bf16.mxu0 0
    %530 = vmatpush1.bf16.msra.mxu0 0
    %531 = vmatprep.subr.bf16.mxu0 0
    %532 = vmatpush1.bf16.msra.mxu0 0
    %533 = vmatprep.subr.bf16.mxu0 0
    %534 = vmatpush1.bf16.msra.mxu0 0
    %535 = vmatprep.subr.bf16.mxu0 0
    %536 = vmatpush1.bf16.msra.mxu0 0
    %537 = vmatprep.subr.bf16.mxu0 0
    %538 = vmatpush1.bf16.msra.mxu0 0
    %539 = vmatprep.subr.bf16.mxu0 0
    %540 = vmatpush1.bf16.msra.mxu0 0
    %541 = vmatprep.subr.bf16.mxu0 0
    %542 = vmatpush1.bf16.msra.mxu0 0
    %543 = vmatprep.subr.bf16.mxu0 0
    %544 = vmatpush1.bf16.msra.mxu0 0
    %545 = vmatprep.subr.bf16.mxu0 0
    %546 = vmatpush1.bf16.msra.mxu0 0
    %547 = vmatprep.mubr.bf16.mxu0 0
    %548 = vmatmul.mubr.bf16.gmra.mrb[0].mxu0 %v510
    %v549 = vpop.f32.mrb[0].mxu0
    %v550 = vadd.f32 0.0, %v549
    %v551 = vpop.f32.mrb[0].mxu0
    %v552 = vpop.f32.mrb[0].mxu0
    %v553 = vadd.f32 0.0, %v552
    %v554 = vpop.f32.mrb[0].mxu0
    %555 = vmatprep.mubr.bf16.mxu0 0
    %556 = vmatmul.mubr.bf16.gmra.mrb[0].mxu0 %v513
    %v557 = vpop.f32.mrb[0].mxu0
    %v558 = vadd.f32 0.0, %v557
    %v559 = vpop.f32.mrb[0].mxu0
    %v560 = vpop.f32.mrb[0].mxu0
    %v561 = vadd.f32 0.0, %v560
    %v562 = vpop.f32.mrb[0].mxu0
    %563 = vdwg.mxu0
    %v564 = vpack.c.bf16 %v553, %v550
    %v565 = vpack.c.bf16 %v561, %v558
    %v566 = vld [vmem:[%s1 + $0x80] sm:$0xf]
    %v567 = vld [vmem:[%s1 + $0x84] sm:$0xf]
    %v568 = vld [vmem:[%s1 + $0x88] sm:$0xf]
    %v569 = vld [vmem:[%s1 + $0x8c] sm:$0xf]
    %v570 = vld [vmem:[%s1 + $0x90] sm:$0xf]
    %v571 = vld [vmem:[%s1 + $0x94] sm:$0xf]
    %v572 = vld [vmem:[%s1 + $0x98] sm:$0xf]
    %v573 = vld [vmem:[%s1 + $0x9c] sm:$0xf]
    %v574 = vld [vmem:[%s1 + $0xa0] sm:$0xf]
    %v575 = vld [vmem:[%s1 + $0xa4] sm:$0xf]
    %v576 = vld [vmem:[%s1 + $0xa8] sm:$0xf]
    %v577 = vld [vmem:[%s1 + $0xac] sm:$0xf]
    %v578 = vld [vmem:[%s1 + $0xb0] sm:$0xf]
    %v579 = vld [vmem:[%s1 + $0xb4] sm:$0xf]
    %v580 = vld [vmem:[%s1 + $0xb8] sm:$0xf]
    %v581 = vld [vmem:[%s1 + $0xbc] sm:$0xf]
    %v598 = vunpack.c.l.b16 %v566
    %v599 = vunpack.c.l.b16 %v567
    %v600 = vunpack.c.l.b16 %v568
    %v601 = vunpack.c.l.b16 %v569
    %v602 = vunpack.c.l.b16 %v570
    %v603 = vunpack.c.l.b16 %v571
    %v604 = vunpack.c.l.b16 %v572
    %v605 = vunpack.c.l.b16 %v573
    %v606 = vunpack.c.l.b16 %v574
    %v607 = vunpack.c.l.b16 %v575
    %v608 = vunpack.c.l.b16 %v576
    %v609 = vunpack.c.l.b16 %v577
    %v610 = vunpack.c.l.b16 %v578
    %v611 = vunpack.c.l.b16 %v579
    %v612 = vunpack.c.l.b16 %v580
    %v613 = vunpack.c.l.b16 %v581
    %v614 = vpack.c.b16 %v599, %v598
    %v615 = vpack.c.b16 %v601, %v600
    %v616 = vpack.c.b16 %v603, %v602
    %v617 = vpack.c.b16 %v605, %v604
    %v618 = vpack.c.b16 %v607, %v606
    %v619 = vpack.c.b16 %v609, %v608
    %v620 = vpack.c.b16 %v611, %v610
    %v621 = vpack.c.b16 %v613, %v612
    %630 = vmatprep.subr.bf16.mxu0 0
    %631 = vmatpush1.bf16.msra.mxu0 %v614
    %632 = vmatprep.subr.bf16.mxu0 0
    %633 = vmatpush1.bf16.msra.mxu0 %v615
    %634 = vmatprep.subr.bf16.mxu0 0
    %635 = vmatpush1.bf16.msra.mxu0 %v616
    %636 = vmatprep.subr.bf16.mxu0 0
    %637 = vmatpush1.bf16.msra.mxu0 %v617
    %638 = vmatprep.subr.bf16.mxu0 0
    %639 = vmatpush1.bf16.msra.mxu0 %v618
    %640 = vmatprep.subr.bf16.mxu0 0
    %641 = vmatpush1.bf16.msra.mxu0 %v619
    %642 = vmatprep.subr.bf16.mxu0 0
    %643 = vmatpush1.bf16.msra.mxu0 %v620
    %644 = vmatprep.subr.bf16.mxu0 0
    %645 = vmatpush1.bf16.msra.mxu0 %v621
    %646 = vmatprep.subr.bf16.mxu0 0
    %647 = vmatpush1.bf16.msra.mxu0 0
    %648 = vmatprep.subr.bf16.mxu0 0
    %649 = vmatpush1.bf16.msra.mxu0 0
    %650 = vmatprep.subr.bf16.mxu0 0
    %651 = vmatpush1.bf16.msra.mxu0 0
    %652 = vmatprep.subr.bf16.mxu0 0
    %653 = vmatpush1.bf16.msra.mxu0 0
    %654 = vmatprep.subr.bf16.mxu0 0
    %655 = vmatpush1.bf16.msra.mxu0 0
    %656 = vmatprep.subr.bf16.mxu0 0
    %657 = vmatpush1.bf16.msra.mxu0 0
    %658 = vmatprep.subr.bf16.mxu0 0
    %659 = vmatpush1.bf16.msra.mxu0 0
    %660 = vmatprep.subr.bf16.mxu0 0
    %661 = vmatpush1.bf16.msra.mxu0 0
    %662 = vmatprep.mubr.bf16.mxu0 0
    %663 = vmatmul.mubr.bf16.gmra.mrb[0].mxu0 %v564
    %v664 = vpop.f32.mrb[0].mxu0
    %v665 = vadd.f32 0.0, %v664
    %v666 = vpop.f32.mrb[0].mxu0
    %v667 = vpop.f32.mrb[0].mxu0
    %v668 = vadd.f32 0.0, %v667
    %v669 = vpop.f32.mrb[0].mxu0
    %670 = vmatprep.mubr.bf16.mxu0 0
    %671 = vmatmul.mubr.bf16.gmra.mrb[0].mxu0 %v565
    %v672 = vpop.f32.mrb[0].mxu0
    %v673 = vadd.f32 0.0, %v672
    %v674 = vpop.f32.mrb[0].mxu0
    %v675 = vpop.f32.mrb[0].mxu0
    %v676 = vadd.f32 0.0, %v675
    %v677 = vpop.f32.mrb[0].mxu0
    %678 = vdwg.mxu0
    %v679 = vadd.f32 %v477, %v665
    %v680 = vadd.f32 %v480, %v668
    %v681 = vadd.f32 %v485, %v673
    %v682 = vadd.f32 %v488, %v676
    %v683 = vadd.s32 %v90, 2
    %v684 = vadd.s32 %v91, 2
    %v685 = vadd.s32 %v92, 2
    %v686 = vadd.s32 %v93, 2
    %vm687 = vcmp.eq.s32.totalorder %v85, %v683
    %vm688 = vcmp.eq.s32.totalorder %v85, %v684
    %vm689 = vcmp.eq.s32.totalorder %v85, %v685
    %vm690 = vcmp.eq.s32.totalorder %v85, %v686
    %vm691 = vmand %vm86, %vm687
    %vm692 = vmand %vm87, %vm688
    %vm693 = vmand %vm88, %vm689
    %vm694 = vmand %vm89, %vm690
    %v695 = vsel %vm691, 1.0, 0.0
    %v696 = vsel %vm692, 1.0, 0.0
    %v697 = vsel %vm693, 1.0, 0.0
    %v698 = vsel %vm694, 1.0, 0.0
    %v699 = vpack.c.bf16 %v696, %v695
    %v700 = vpack.c.bf16 %v698, %v697
    %v702 = vsel %vm136, %v699, 0
    %v705 = vsel %vm136, %v700, 0
    %707 = vmatprep.subr.bf16.mxu0 0
    %708 = vmatpush1.bf16.msra.mxu0 %v128
    %709 = vmatprep.subr.bf16.mxu0 0
    %710 = vmatpush1.bf16.msra.mxu0 %v129
    %711 = vmatprep.subr.bf16.mxu0 0
    %712 = vmatpush1.bf16.msra.mxu0 %v130
    %713 = vmatprep.subr.bf16.mxu0 0
    %714 = vmatpush1.bf16.msra.mxu0 %v131
    %715 = vmatprep.subr.bf16.mxu0 0
    %716 = vmatpush1.bf16.msra.mxu0 0
    %717 = vmatprep.subr.bf16.mxu0 0
    %718 = vmatpush1.bf16.msra.mxu0 0
    %719 = vmatprep.subr.bf16.mxu0 0
    %720 = vmatpush1.bf16.msra.mxu0 0
    %721 = vmatprep.subr.bf16.mxu0 0
    %722 = vmatpush1.bf16.msra.mxu0 0
    %723 = vmatprep.subr.bf16.mxu0 0
    %724 = vmatpush1.bf16.msra.mxu0 0
    %725 = vmatprep.subr.bf16.mxu0 0
    %726 = vmatpush1.bf16.msra.mxu0 0
    %727 = vmatprep.subr.bf16.mxu0 0
    %728 = vmatpush1.bf16.msra.mxu0 0
    %729 = vmatprep.subr.bf16.mxu0 0
    %730 = vmatpush1.bf16.msra.mxu0 0
    %731 = vmatprep.subr.bf16.mxu0 0
    %732 = vmatpush1.bf16.msra.mxu0 0
    %733 = vmatprep.subr.bf16.mxu0 0
    %734 = vmatpush1.bf16.msra.mxu0 0
    %735 = vmatprep.subr.bf16.mxu0 0
    %736 = vmatpush1.bf16.msra.mxu0 0
    %737 = vmatprep.subr.bf16.mxu0 0
    %738 = vmatpush1.bf16.msra.mxu0 0
    %739 = vmatprep.mubr.bf16.mxu0 0
    %740 = vmatmul.mubr.bf16.gmra.mrb[0].mxu0 %v702
    %v741 = vpop.f32.mrb[0].mxu0
    %v742 = vadd.f32 0.0, %v741
    %v743 = vpop.f32.mrb[0].mxu0
    %v744 = vpop.f32.mrb[0].mxu0
    %v745 = vadd.f32 0.0, %v744
    %v746 = vpop.f32.mrb[0].mxu0
    %747 = vmatprep.mubr.bf16.mxu0 0
    %748 = vmatmul.mubr.bf16.gmra.mrb[0].mxu0 %v705
    %v749 = vpop.f32.mrb[0].mxu0
    %v750 = vadd.f32 0.0, %v749
    %v751 = vpop.f32.mrb[0].mxu0
    %v752 = vpop.f32.mrb[0].mxu0
    %v753 = vadd.f32 0.0, %v752
    %v754 = vpop.f32.mrb[0].mxu0
    %755 = vdwg.mxu0
    %v756 = vpack.c.bf16 %v745, %v742
    %v757 = vpack.c.bf16 %v753, %v750
    %v758 = vld [vmem:[%s1 + $0xc0] sm:$0xf]
    %v759 = vld [vmem:[%s1 + $0xc4] sm:$0xf]
    %v760 = vld [vmem:[%s1 + $0xc8] sm:$0xf]
    %v761 = vld [vmem:[%s1 + $0xcc] sm:$0xf]
    %v762 = vld [vmem:[%s1 + $0xd0] sm:$0xf]
    %v763 = vld [vmem:[%s1 + $0xd4] sm:$0xf]
    %v764 = vld [vmem:[%s1 + $0xd8] sm:$0xf]
    %v765 = vld [vmem:[%s1 + $0xdc] sm:$0xf]
    %v766 = vld [vmem:[%s1 + $0xe0] sm:$0xf]
    %v767 = vld [vmem:[%s1 + $0xe4] sm:$0xf]
    %v768 = vld [vmem:[%s1 + $0xe8] sm:$0xf]
    %v769 = vld [vmem:[%s1 + $0xec] sm:$0xf]
    %v770 = vld [vmem:[%s1 + $0xf0] sm:$0xf]
    %v771 = vld [vmem:[%s1 + $0xf4] sm:$0xf]
    %v772 = vld [vmem:[%s1 + $0xf8] sm:$0xf]
    %v773 = vld [vmem:[%s1 + $0xfc] sm:$0xf]
    %v790 = vunpack.c.l.b16 %v758
    %v791 = vunpack.c.l.b16 %v759
    %v792 = vunpack.c.l.b16 %v760
    %v793 = vunpack.c.l.b16 %v761
    %v794 = vunpack.c.l.b16 %v762
    %v795 = vunpack.c.l.b16 %v763
    %v796 = vunpack.c.l.b16 %v764
    %v797 = vunpack.c.l.b16 %v765
    %v798 = vunpack.c.l.b16 %v766
    %v799 = vunpack.c.l.b16 %v767
    %v800 = vunpack.c.l.b16 %v768
    %v801 = vunpack.c.l.b16 %v769
    %v802 = vunpack.c.l.b16 %v770
    %v803 = vunpack.c.l.b16 %v771
    %v804 = vunpack.c.l.b16 %v772
    %v805 = vunpack.c.l.b16 %v773
    %v806 = vpack.c.b16 %v791, %v790
    %v807 = vpack.c.b16 %v793, %v792
    %v808 = vpack.c.b16 %v795, %v794
    %v809 = vpack.c.b16 %v797, %v796
    %v810 = vpack.c.b16 %v799, %v798
    %v811 = vpack.c.b16 %v801, %v800
    %v812 = vpack.c.b16 %v803, %v802
    %v813 = vpack.c.b16 %v805, %v804
    %822 = vmatprep.subr.bf16.mxu0 0
    %823 = vmatpush1.bf16.msra.mxu0 %v806
    %824 = vmatprep.subr.bf16.mxu0 0
    %825 = vmatpush1.bf16.msra.mxu0 %v807
    %826 = vmatprep.subr.bf16.mxu0 0
    %827 = vmatpush1.bf16.msra.mxu0 %v808
    %828 = vmatprep.subr.bf16.mxu0 0
    %829 = vmatpush1.bf16.msra.mxu0 %v809
    %830 = vmatprep.subr.bf16.mxu0 0
    %831 = vmatpush1.bf16.msra.mxu0 %v810
    %832 = vmatprep.subr.bf16.mxu0 0
    %833 = vmatpush1.bf16.msra.mxu0 %v811
    %834 = vmatprep.subr.bf16.mxu0 0
    %835 = vmatpush1.bf16.msra.mxu0 %v812
    %836 = vmatprep.subr.bf16.mxu0 0
    %837 = vmatpush1.bf16.msra.mxu0 %v813
    %838 = vmatprep.subr.bf16.mxu0 0
    %839 = vmatpush1.bf16.msra.mxu0 0
    %840 = vmatprep.subr.bf16.mxu0 0
    %841 = vmatpush1.bf16.msra.mxu0 0
    %842 = vmatprep.subr.bf16.mxu0 0
    %843 = vmatpush1.bf16.msra.mxu0 0
    %844 = vmatprep.subr.bf16.mxu0 0
    %845 = vmatpush1.bf16.msra.mxu0 0
    %846 = vmatprep.subr.bf16.mxu0 0
    %847 = vmatpush1.bf16.msra.mxu0 0
    %848 = vmatprep.subr.bf16.mxu0 0
    %849 = vmatpush1.bf16.msra.mxu0 0
    %850 = vmatprep.subr.bf16.mxu0 0
    %851 = vmatpush1.bf16.msra.mxu0 0
    %852 = vmatprep.subr.bf16.mxu0 0
    %853 = vmatpush1.bf16.msra.mxu0 0
    %854 = vmatprep.mubr.bf16.mxu0 0
    %855 = vmatmul.mubr.bf16.gmra.mrb[0].mxu0 %v756
    %v856 = vpop.f32.mrb[0].mxu0
    %v857 = vadd.f32 0.0, %v856
    %v858 = vpop.f32.mrb[0].mxu0
    %v859 = vpop.f32.mrb[0].mxu0
    %v860 = vadd.f32 0.0, %v859
    %v861 = vpop.f32.mrb[0].mxu0
    %862 = vmatprep.mubr.bf16.mxu0 0
    %863 = vmatmul.mubr.bf16.gmra.mrb[0].mxu0 %v757
    %v864 = vpop.f32.mrb[0].mxu0
    %v865 = vadd.f32 0.0, %v864
    %v866 = vpop.f32.mrb[0].mxu0
    %v867 = vpop.f32.mrb[0].mxu0
    %v868 = vadd.f32 0.0, %v867
    %v869 = vpop.f32.mrb[0].mxu0
    %870 = vdwg.mxu0
    %v871 = vadd.f32 %v679, %v857
    %v872 = vadd.f32 %v680, %v860
    %v873 = vadd.f32 %v681, %v865
    %v874 = vadd.f32 %v682, %v868
    %vm875 = vcmp.gt.f32.partialorder %v871, 0.0
    %vm876 = vcmp.gt.f32.partialorder %v872, 0.0
    %vm877 = vcmp.gt.f32.partialorder %v873, 0.0
    %vm878 = vcmp.gt.f32.partialorder %v874, 0.0
    %v879 = vmul.f32 %v871, 0.2
    %v880 = vmul.f32 %v872, 0.2
    %v881 = vmul.f32 %v873, 0.2
    %v882 = vmul.f32 %v874, 0.2
    %v883 = vsel %vm875, %v871, %v879
    %v884 = vsel %vm876, %v872, %v880
    %v885 = vsel %vm877, %v873, %v881
    %v886 = vsel %vm878, %v874, %v882
    %v887 = vpack.c.bf16 %v884, %v883
    %v888 = vpack.c.bf16 %v886, %v885
    %v889 = vshra.s32 %v70, 3
    %v890 = vshra.s32 %v71, 3
    %v891 = vand.u32 %v70, 7
    %v892 = vand.u32 %v71, 7
    %v893 = vshra.s32 %v75, 4
    %v894 = vand.u32 %v75, 15
    %vm895 = vcmp.eq.s32.totalorder %v893, %v889
    %vm896 = vcmp.eq.s32.totalorder %v893, %v890
    %v897 = vmul.u32 %v891, 2
    %v898 = vmul.u32 %v892, 2
    %v899 = vadd.s32 %v897, 4294967295
    %v900 = vadd.s32 %v898, 4294967295
    %vm901 = vcmp.eq.s32.totalorder %v894, %v899
    %vm902 = vcmp.eq.s32.totalorder %v894, %v900
    %vm903 = vmand %vm895, %vm901
    %vm904 = vmand %vm896, %vm902
    %v905 = vsel %vm903, 1.0, 0.0
    %v906 = vsel %vm904, 1.0, 0.0
    %v907 = vpack.c.bf16 %v906, %v905
    %vm908 = vcmask 261120
    %v910 = vsel %vm908, %v907, 0
    %912 = vmatprep.subr.bf16.mxu0 0
    %913 = vmatpush1.bf16.msra.mxu0 %v887
    %914 = vmatprep.subr.bf16.mxu0 0
    %915 = vmatpush1.bf16.msra.mxu0 %v888
    %916 = vmatprep.subr.bf16.mxu0 0
    %917 = vmatpush1.bf16.msra.mxu0 0
    %918 = vmatprep.subr.bf16.mxu0 0
    %919 = vmatpush1.bf16.msra.mxu0 0
    %920 = vmatprep.subr.bf16.mxu0 0
    %921 = vmatpush1.bf16.msra.mxu0 0
    %922 = vmatprep.subr.bf16.mxu0 0
    %923 = vmatpush1.bf16.msra.mxu0 0
    %924 = vmatprep.subr.bf16.mxu0 0
    %925 = vmatpush1.bf16.msra.mxu0 0
    %926 = vmatprep.subr.bf16.mxu0 0
    %927 = vmatpush1.bf16.msra.mxu0 0
    %928 = vmatprep.subr.bf16.mxu0 0
    %929 = vmatpush1.bf16.msra.mxu0 0
    %930 = vmatprep.subr.bf16.mxu0 0
    %931 = vmatpush1.bf16.msra.mxu0 0
    %932 = vmatprep.subr.bf16.mxu0 0
    %933 = vmatpush1.bf16.msra.mxu0 0
    %934 = vmatprep.subr.bf16.mxu0 0
    %935 = vmatpush1.bf16.msra.mxu0 0
    %936 = vmatprep.subr.bf16.mxu0 0
    %937 = vmatpush1.bf16.msra.mxu0 0
    %938 = vmatprep.subr.bf16.mxu0 0
    %939 = vmatpush1.bf16.msra.mxu0 0
    %940 = vmatprep.subr.bf16.mxu0 0
    %941 = vmatpush1.bf16.msra.mxu0 0
    %942 = vmatprep.subr.bf16.mxu0 0
    %943 = vmatpush1.bf16.msra.mxu0 0
    %944 = vmatprep.mubr.bf16.mxu0 0
    %945 = vmatmul.mubr.bf16.gmra.mrb[0].mxu0 %v910
    %v946 = vpop.f32.mrb[0].mxu0
    %v947 = vadd.f32 0.0, %v946
    %v948 = vpop.f32.mrb[0].mxu0
    %v949 = vpop.f32.mrb[0].mxu0
    %v950 = vadd.f32 0.0, %v949
    %v951 = vpop.f32.mrb[0].mxu0
    %952 = vdwg.mxu0
    %v953 = vpack.c.bf16 %v950, %v947
    %v954 = vld [vmem:[%s2] sm:$0xf]
    %v955 = vld [vmem:[%s2 + $0x4] sm:$0xf]
    %v956 = vld [vmem:[%s2 + $0x8] sm:$0xf]
    %v957 = vld [vmem:[%s2 + $0xc] sm:$0xf]
    %v958 = vld [vmem:[%s2 + $0x10] sm:$0xf]
    %v959 = vld [vmem:[%s2 + $0x14] sm:$0xf]
    %v960 = vld [vmem:[%s2 + $0x18] sm:$0xf]
    %v961 = vld [vmem:[%s2 + $0x1c] sm:$0xf]
    %v962 = vld [vmem:[%s2 + $0x20] sm:$0xf]
    %v963 = vld [vmem:[%s2 + $0x24] sm:$0xf]
    %v964 = vld [vmem:[%s2 + $0x28] sm:$0xf]
    %v965 = vld [vmem:[%s2 + $0x2c] sm:$0xf]
    %v966 = vld [vmem:[%s2 + $0x30] sm:$0xf]
    %v967 = vld [vmem:[%s2 + $0x34] sm:$0xf]
    %v968 = vld [vmem:[%s2 + $0x38] sm:$0xf]
    %v969 = vld [vmem:[%s2 + $0x3c] sm:$0xf]
    %vm970 = vcmp.eq.s32.totalorder %v894, %v897
    %vm971 = vcmp.eq.s32.totalorder %v894, %v898
    %vm972 = vmand %vm895, %vm970
    %vm973 = vmand %vm896, %vm971
    %v974 = vsel %vm972, 1.0, 0.0
    %v975 = vsel %vm973, 1.0, 0.0
    %v976 = vpack.c.bf16 %v975, %v974
    %v978 = vsel %vm908, %v976, 0
    %980 = vmatprep.subr.bf16.mxu0 0
    %981 = vmatpush1.bf16.msra.mxu0 %v887
    %982 = vmatprep.subr.bf16.mxu0 0
    %983 = vmatpush1.bf16.msra.mxu0 %v888
    %984 = vmatprep.subr.bf16.mxu0 0
    %985 = vmatpush1.bf16.msra.mxu0 0
    %986 = vmatprep.subr.bf16.mxu0 0
    %987 = vmatpush1.bf16.msra.mxu0 0
    %988 = vmatprep.subr.bf16.mxu0 0
    %989 = vmatpush1.bf16.msra.mxu0 0
    %990 = vmatprep.subr.bf16.mxu0 0
    %991 = vmatpush1.bf16.msra.mxu0 0
    %992 = vmatprep.subr.bf16.mxu0 0
    %993 = vmatpush1.bf16.msra.mxu0 0
    %994 = vmatprep.subr.bf16.mxu0 0
    %995 = vmatpush1.bf16.msra.mxu0 0
    %996 = vmatprep.subr.bf16.mxu0 0
    %997 = vmatpush1.bf16.msra.mxu0 0
    %998 = vmatprep.subr.bf16.mxu0 0
    %999 = vmatpush1.bf16.msra.mxu0 0
    %1000 = vmatprep.subr.bf16.mxu0 0
    %1001 = vmatpush1.bf16.msra.mxu0 0
    %1002 = vmatprep.subr.bf16.mxu0 0
    %1003 = vmatpush1.bf16.msra.mxu0 0
    %1004 = vmatprep.subr.bf16.mxu0 0
    %1005 = vmatpush1.bf16.msra.mxu0 0
    %1006 = vmatprep.subr.bf16.mxu0 0
    %1007 = vmatpush1.bf16.msra.mxu0 0
    %1008 = vmatprep.subr.bf16.mxu0 0
    %1009 = vmatpush1.bf16.msra.mxu0 0
    %1010 = vmatprep.subr.bf16.mxu0 0
    %1011 = vmatpush1.bf16.msra.mxu0 0
    %1012 = vmatprep.mubr.bf16.mxu0 0
    %1013 = vmatmul.mubr.bf16.gmra.mrb[0].mxu0 %v978
    %v1014 = vpop.f32.mrb[0].mxu0
    %v1015 = vadd.f32 0.0, %v1014
    %v1016 = vpop.f32.mrb[0].mxu0
    %v1017 = vpop.f32.mrb[0].mxu0
    %v1018 = vadd.f32 0.0, %v1017
    %v1019 = vpop.f32.mrb[0].mxu0
    %1020 = vdwg.mxu0
    %v1021 = vpack.c.bf16 %v1018, %v1015
    %v1022 = vld [vmem:[%s2 + $0x40] sm:$0xf]
    %v1023 = vld [vmem:[%s2 + $0x44] sm:$0xf]
    %v1024 = vld [vmem:[%s2 + $0x48] sm:$0xf]
    %v1025 = vld [vmem:[%s2 + $0x4c] sm:$0xf]
    %v1026 = vld [vmem:[%s2 + $0x50] sm:$0xf]
    %v1027 = vld [vmem:[%s2 + $0x54] sm:$0xf]
    %v1028 = vld [vmem:[%s2 + $0x58] sm:$0xf]
    %v1029 = vld [vmem:[%s2 + $0x5c] sm:$0xf]
    %v1030 = vld [vmem:[%s2 + $0x60] sm:$0xf]
    %v1031 = vld [vmem:[%s2 + $0x64] sm:$0xf]
    %v1032 = vld [vmem:[%s2 + $0x68] sm:$0xf]
    %v1033 = vld [vmem:[%s2 + $0x6c] sm:$0xf]
    %v1034 = vld [vmem:[%s2 + $0x70] sm:$0xf]
    %v1035 = vld [vmem:[%s2 + $0x74] sm:$0xf]
    %v1036 = vld [vmem:[%s2 + $0x78] sm:$0xf]
    %v1037 = vld [vmem:[%s2 + $0x7c] sm:$0xf]
    %v1054 = vunpack.c.l.b16 %v1022
    %v1055 = vunpack.c.l.b16 %v1023
    %v1056 = vunpack.c.l.b16 %v1024
    %v1057 = vunpack.c.l.b16 %v1025
    %v1058 = vunpack.c.l.b16 %v1026
    %v1059 = vunpack.c.l.b16 %v1027
    %v1060 = vunpack.c.l.b16 %v1028
    %v1061 = vunpack.c.l.b16 %v1029
    %v1062 = vunpack.c.l.b16 %v1030
    %v1063 = vunpack.c.l.b16 %v1031
    %v1064 = vunpack.c.l.b16 %v1032
    %v1065 = vunpack.c.l.b16 %v1033
    %v1066 = vunpack.c.l.b16 %v1034
    %v1067 = vunpack.c.l.b16 %v1035
    %v1068 = vunpack.c.l.b16 %v1036
    %v1069 = vunpack.c.l.b16 %v1037
    %v1070 = vpack.c.b16 %v1055, %v1054
    %v1071 = vpack.c.b16 %v1057, %v1056
    %v1072 = vpack.c.b16 %v1059, %v1058
    %v1073 = vpack.c.b16 %v1061, %v1060
    %v1074 = vpack.c.b16 %v1063, %v1062
    %v1075 = vpack.c.b16 %v1065, %v1064
    %v1076 = vpack.c.b16 %v1067, %v1066
    %v1077 = vpack.c.b16 %v1069, %v1068
    %1086 = vmatprep.subr.bf16.mxu0 0
    %1087 = vmatpush1.bf16.msra.mxu0 %v1070
    %1088 = vmatprep.subr.bf16.mxu0 0
    %1089 = vmatpush1.bf16.msra.mxu0 %v1071
    %1090 = vmatprep.subr.bf16.mxu0 0
    %1091 = vmatpush1.bf16.msra.mxu0 %v1072
    %1092 = vmatprep.subr.bf16.mxu0 0
    %1093 = vmatpush1.bf16.msra.mxu0 %v1073
    %1094 = vmatprep.subr.bf16.mxu0 0
    %1095 = vmatpush1.bf16.msra.mxu0 %v1074
    %1096 = vmatprep.subr.bf16.mxu0 0
    %1097 = vmatpush1.bf16.msra.mxu0 %v1075
    %1098 = vmatprep.subr.bf16.mxu0 0
    %1099 = vmatpush1.bf16.msra.mxu0 %v1076
    %1100 = vmatprep.subr.bf16.mxu0 0
    %1101 = vmatpush1.bf16.msra.mxu0 %v1077
    %1102 = vmatprep.subr.bf16.mxu0 0
    %1103 = vmatpush1.bf16.msra.mxu0 0
    %1104 = vmatprep.subr.bf16.mxu0 0
    %1105 = vmatpush1.bf16.msra.mxu0 0
    %1106 = vmatprep.subr.bf16.mxu0 0
    %1107 = vmatpush1.bf16.msra.mxu0 0
    %1108 = vmatprep.subr.bf16.mxu0 0
    %1109 = vmatpush1.bf16.msra.mxu0 0
    %1110 = vmatprep.subr.bf16.mxu0 0
    %1111 = vmatpush1.bf16.msra.mxu0 0
    %1112 = vmatprep.subr.bf16.mxu0 0
    %1113 = vmatpush1.bf16.msra.mxu0 0
    %1114 = vmatprep.subr.bf16.mxu0 0
    %1115 = vmatpush1.bf16.msra.mxu0 0
    %1116 = vmatprep.subr.bf16.mxu0 0
    %1117 = vmatpush1.bf16.msra.mxu0 0
    %1118 = vmatprep.mubr.bf16.mxu0 0
    %1119 = vmatmul.mubr.bf16.gmra.mrb[0].mxu0 %v1021
    %v1120 = vpop.f32.mrb[0].mxu0
    %v1121 = vadd.f32 0.0, %v1120
    %v1122 = vpop.f32.mrb[0].mxu0
    %v1123 = vpop.f32.mrb[0].mxu0
    %v1124 = vadd.f32 0.0, %v1123
    %v1125 = vpop.f32.mrb[0].mxu0
    %1126 = vdwg.mxu0
    %v1143 = vunpack.c.l.b16 %v954
    %v1144 = vunpack.c.l.b16 %v955
    %v1145 = vunpack.c.l.b16 %v956
    %v1146 = vunpack.c.l.b16 %v957
    %v1147 = vunpack.c.l.b16 %v958
    %v1148 = vunpack.c.l.b16 %v959
    %v1149 = vunpack.c.l.b16 %v960
    %v1150 = vunpack.c.l.b16 %v961
    %v1151 = vunpack.c.l.b16 %v962
    %v1152 = vunpack.c.l.b16 %v963
    %v1153 = vunpack.c.l.b16 %v964
    %v1154 = vunpack.c.l.b16 %v965
    %v1155 = vunpack.c.l.b16 %v966
    %v1156 = vunpack.c.l.b16 %v967
    %v1157 = vunpack.c.l.b16 %v968
    %v1158 = vunpack.c.l.b16 %v969
    %v1159 = vpack.c.b16 %v1144, %v1143
    %v1160 = vpack.c.b16 %v1146, %v1145
    %v1161 = vpack.c.b16 %v1148, %v1147
    %v1162 = vpack.c.b16 %v1150, %v1149
    %v1163 = vpack.c.b16 %v1152, %v1151
    %v1164 = vpack.c.b16 %v1154, %v1153
    %v1165 = vpack.c.b16 %v1156, %v1155
    %v1166 = vpack.c.b16 %v1158, %v1157
    %1175 = vmatprep.subr.bf16.mxu0 0
    %1176 = vmatpush1.bf16.msra.mxu0 %v1159
    %1177 = vmatprep.subr.bf16.mxu0 0
    %1178 = vmatpush1.bf16.msra.mxu0 %v1160
    %1179 = vmatprep.subr.bf16.mxu0 0
    %1180 = vmatpush1.bf16.msra.mxu0 %v1161
    %1181 = vmatprep.subr.bf16.mxu0 0
    %1182 = vmatpush1.bf16.msra.mxu0 %v1162
    %1183 = vmatprep.subr.bf16.mxu0 0
    %1184 = vmatpush1.bf16.msra.mxu0 %v1163
    %1185 = vmatprep.subr.bf16.mxu0 0
    %1186 = vmatpush1.bf16.msra.mxu0 %v1164
    %1187 = vmatprep.subr.bf16.mxu0 0
    %1188 = vmatpush1.bf16.msra.mxu0 %v1165
    %1189 = vmatprep.subr.bf16.mxu0 0
    %1190 = vmatpush1.bf16.msra.mxu0 %v1166
    %1191 = vmatprep.subr.bf16.mxu0 0
    %1192 = vmatpush1.bf16.msra.mxu0 0
    %1193 = vmatprep.subr.bf16.mxu0 0
    %1194 = vmatpush1.bf16.msra.mxu0 0
    %1195 = vmatprep.subr.bf16.mxu0 0
    %1196 = vmatpush1.bf16.msra.mxu0 0
    %1197 = vmatprep.subr.bf16.mxu0 0
    %1198 = vmatpush1.bf16.msra.mxu0 0
    %1199 = vmatprep.subr.bf16.mxu0 0
    %1200 = vmatpush1.bf16.msra.mxu0 0
    %1201 = vmatprep.subr.bf16.mxu0 0
    %1202 = vmatpush1.bf16.msra.mxu0 0
    %1203 = vmatprep.subr.bf16.mxu0 0
    %1204 = vmatpush1.bf16.msra.mxu0 0
    %1205 = vmatprep.subr.bf16.mxu0 0
    %1206 = vmatpush1.bf16.msra.mxu0 0
    %1207 = vmatprep.mubr.bf16.mxu0 0
    %1208 = vmatmul.mubr.bf16.gmra.mrb[0].mxu0 %v953
    %v1209 = vpop.f32.mrb[0].mxu0
    %v1210 = vadd.f32 %v1121, %v1209
    %v1211 = vpop.f32.mrb[0].mxu0
    %v1212 = vpop.f32.mrb[0].mxu0
    %v1213 = vadd.f32 %v1124, %v1212
    %v1214 = vpop.f32.mrb[0].mxu0
    %1215 = vdwg.mxu0
    %v1216 = vadd.s32 %v897, 1
    %v1217 = vadd.s32 %v898, 1
    %vm1218 = vcmp.eq.s32.totalorder %v894, %v1216
    %vm1219 = vcmp.eq.s32.totalorder %v894, %v1217
    %vm1220 = vmand %vm895, %vm1218
    %vm1221 = vmand %vm896, %vm1219
    %v1222 = vsel %vm1220, 1.0, 0.0
    %v1223 = vsel %vm1221, 1.0, 0.0
    %v1224 = vpack.c.bf16 %v1223, %v1222
    %v1226 = vsel %vm908, %v1224, 0
    %1228 = vmatprep.subr.bf16.mxu0 0
    %1229 = vmatpush1.bf16.msra.mxu0 %v887
    %1230 = vmatprep.subr.bf16.mxu0 0
    %1231 = vmatpush1.bf16.msra.mxu0 %v888
    %1232 = vmatprep.subr.bf16.mxu0 0
    %1233 = vmatpush1.bf16.msra.mxu0 0
    %1234 = vmatprep.subr.bf16.mxu0 0
    %1235 = vmatpush1.bf16.msra.mxu0 0
    %1236 = vmatprep.subr.bf16.mxu0 0
    %1237 = vmatpush1.bf16.msra.mxu0 0
    %1238 = vmatprep.subr.bf16.mxu0 0
    %1239 = vmatpush1.bf16.msra.mxu0 0
    %1240 = vmatprep.subr.bf16.mxu0 0
    %1241 = vmatpush1.bf16.msra.mxu0 0
    %1242 = vmatprep.subr.bf16.mxu0 0
    %1243 = vmatpush1.bf16.msra.mxu0 0
    %1244 = vmatprep.subr.bf16.mxu0 0
    %1245 = vmatpush1.bf16.msra.mxu0 0
    %1246 = vmatprep.subr.bf16.mxu0 0
    %1247 = vmatpush1.bf16.msra.mxu0 0
    %1248 = vmatprep.subr.bf16.mxu0 0
    %1249 = vmatpush1.bf16.msra.mxu0 0
    %1250 = vmatprep.subr.bf16.mxu0 0
    %1251 = vmatpush1.bf16.msra.mxu0 0
    %1252 = vmatprep.subr.bf16.mxu0 0
    %1253 = vmatpush1.bf16.msra.mxu0 0
    %1254 = vmatprep.subr.bf16.mxu0 0
    %1255 = vmatpush1.bf16.msra.mxu0 0
    %1256 = vmatprep.subr.bf16.mxu0 0
    %1257 = vmatpush1.bf16.msra.mxu0 0
    %1258 = vmatprep.subr.bf16.mxu0 0
    %1259 = vmatpush1.bf16.msra.mxu0 0
    %1260 = vmatprep.mubr.bf16.mxu0 0
    %1261 = vmatmul.mubr.bf16.gmra.mrb[0].mxu0 %v1226
    %v1262 = vpop.f32.mrb[0].mxu0
    %v1263 = vadd.f32 0.0, %v1262
    %v1264 = vpop.f32.mrb[0].mxu0
    %v1265 = vpop.f32.mrb[0].mxu0
    %v1266 = vadd.f32 0.0, %v1265
    %v1267 = vpop.f32.mrb[0].mxu0
    %1268 = vdwg.mxu0
    %v1269 = vpack.c.bf16 %v1266, %v1263
    %v1270 = vld [vmem:[%s2 + $0x80] sm:$0xf]
    %v1271 = vld [vmem:[%s2 + $0x84] sm:$0xf]
    %v1272 = vld [vmem:[%s2 + $0x88] sm:$0xf]
    %v1273 = vld [vmem:[%s2 + $0x8c] sm:$0xf]
    %v1274 = vld [vmem:[%s2 + $0x90] sm:$0xf]
    %v1275 = vld [vmem:[%s2 + $0x94] sm:$0xf]
    %v1276 = vld [vmem:[%s2 + $0x98] sm:$0xf]
    %v1277 = vld [vmem:[%s2 + $0x9c] sm:$0xf]
    %v1278 = vld [vmem:[%s2 + $0xa0] sm:$0xf]
    %v1279 = vld [vmem:[%s2 + $0xa4] sm:$0xf]
    %v1280 = vld [vmem:[%s2 + $0xa8] sm:$0xf]
    %v1281 = vld [vmem:[%s2 + $0xac] sm:$0xf]
    %v1282 = vld [vmem:[%s2 + $0xb0] sm:$0xf]
    %v1283 = vld [vmem:[%s2 + $0xb4] sm:$0xf]
    %v1284 = vld [vmem:[%s2 + $0xb8] sm:$0xf]
    %v1285 = vld [vmem:[%s2 + $0xbc] sm:$0xf]
    %v1302 = vunpack.c.l.b16 %v1270
    %v1303 = vunpack.c.l.b16 %v1271
    %v1304 = vunpack.c.l.b16 %v1272
    %v1305 = vunpack.c.l.b16 %v1273
    %v1306 = vunpack.c.l.b16 %v1274
    %v1307 = vunpack.c.l.b16 %v1275
    %v1308 = vunpack.c.l.b16 %v1276
    %v1309 = vunpack.c.l.b16 %v1277
    %v1310 = vunpack.c.l.b16 %v1278
    %v1311 = vunpack.c.l.b16 %v1279
    %v1312 = vunpack.c.l.b16 %v1280
    %v1313 = vunpack.c.l.b16 %v1281
    %v1314 = vunpack.c.l.b16 %v1282
    %v1315 = vunpack.c.l.b16 %v1283
    %v1316 = vunpack.c.l.b16 %v1284
    %v1317 = vunpack.c.l.b16 %v1285
    %v1318 = vpack.c.b16 %v1303, %v1302
    %v1319 = vpack.c.b16 %v1305, %v1304
    %v1320 = vpack.c.b16 %v1307, %v1306
    %v1321 = vpack.c.b16 %v1309, %v1308
    %v1322 = vpack.c.b16 %v1311, %v1310
    %v1323 = vpack.c.b16 %v1313, %v1312
    %v1324 = vpack.c.b16 %v1315, %v1314
    %v1325 = vpack.c.b16 %v1317, %v1316
    %1334 = vmatprep.subr.bf16.mxu0 0
    %1335 = vmatpush1.bf16.msra.mxu0 %v1318
    %1336 = vmatprep.subr.bf16.mxu0 0
    %1337 = vmatpush1.bf16.msra.mxu0 %v1319
    %1338 = vmatprep.subr.bf16.mxu0 0
    %1339 = vmatpush1.bf16.msra.mxu0 %v1320
    %1340 = vmatprep.subr.bf16.mxu0 0
    %1341 = vmatpush1.bf16.msra.mxu0 %v1321
    %1342 = vmatprep.subr.bf16.mxu0 0
    %1343 = vmatpush1.bf16.msra.mxu0 %v1322
    %1344 = vmatprep.subr.bf16.mxu0 0
    %1345 = vmatpush1.bf16.msra.mxu0 %v1323
    %1346 = vmatprep.subr.bf16.mxu0 0
    %1347 = vmatpush1.bf16.msra.mxu0 %v1324
    %1348 = vmatprep.subr.bf16.mxu0 0
    %1349 = vmatpush1.bf16.msra.mxu0 %v1325
    %1350 = vmatprep.subr.bf16.mxu0 0
    %1351 = vmatpush1.bf16.msra.mxu0 0
    %1352 = vmatprep.subr.bf16.mxu0 0
    %1353 = vmatpush1.bf16.msra.mxu0 0
    %1354 = vmatprep.subr.bf16.mxu0 0
    %1355 = vmatpush1.bf16.msra.mxu0 0
    %1356 = vmatprep.subr.bf16.mxu0 0
    %1357 = vmatpush1.bf16.msra.mxu0 0
    %1358 = vmatprep.subr.bf16.mxu0 0
    %1359 = vmatpush1.bf16.msra.mxu0 0
    %1360 = vmatprep.subr.bf16.mxu0 0
    %1361 = vmatpush1.bf16.msra.mxu0 0
    %1362 = vmatprep.subr.bf16.mxu0 0
    %1363 = vmatpush1.bf16.msra.mxu0 0
    %1364 = vmatprep.subr.bf16.mxu0 0
    %1365 = vmatpush1.bf16.msra.mxu0 0
    %1366 = vmatprep.mubr.bf16.mxu0 0
    %1367 = vmatmul.mubr.bf16.gmra.mrb[0].mxu0 %v1269
    %v1368 = vpop.f32.mrb[0].mxu0
    %v1369 = vadd.f32 0.0, %v1368
    %v1370 = vpop.f32.mrb[0].mxu0
    %v1371 = vpop.f32.mrb[0].mxu0
    %v1372 = vadd.f32 0.0, %v1371
    %v1373 = vpop.f32.mrb[0].mxu0
    %1374 = vdwg.mxu0
    %v1375 = vadd.f32 %v1210, %v1369
    %v1376 = vadd.f32 %v1213, %v1372
    %v1377 = vadd.s32 %v897, 2
    %v1378 = vadd.s32 %v898, 2
    %vm1379 = vcmp.eq.s32.totalorder %v894, %v1377
    %vm1380 = vcmp.eq.s32.totalorder %v894, %v1378
    %vm1381 = vmand %vm895, %vm1379
    %vm1382 = vmand %vm896, %vm1380
    %v1383 = vsel %vm1381, 1.0, 0.0
    %v1384 = vsel %vm1382, 1.0, 0.0
    %v1385 = vpack.c.bf16 %v1384, %v1383
    %v1387 = vsel %vm908, %v1385, 0
    %1389 = vmatprep.subr.bf16.mxu0 0
    %1390 = vmatpush1.bf16.msra.mxu0 %v887
    %1391 = vmatprep.subr.bf16.mxu0 0
    %1392 = vmatpush1.bf16.msra.mxu0 %v888
    %1393 = vmatprep.subr.bf16.mxu0 0
    %1394 = vmatpush1.bf16.msra.mxu0 0
    %1395 = vmatprep.subr.bf16.mxu0 0
    %1396 = vmatpush1.bf16.msra.mxu0 0
    %1397 = vmatprep.subr.bf16.mxu0 0
    %1398 = vmatpush1.bf16.msra.mxu0 0
    %1399 = vmatprep.subr.bf16.mxu0 0
    %1400 = vmatpush1.bf16.msra.mxu0 0
    %1401 = vmatprep.subr.bf16.mxu0 0
    %1402 = vmatpush1.bf16.msra.mxu0 0
    %1403 = vmatprep.subr.bf16.mxu0 0
    %1404 = vmatpush1.bf16.msra.mxu0 0
    %1405 = vmatprep.subr.bf16.mxu0 0
    %1406 = vmatpush1.bf16.msra.mxu0 0
    %1407 = vmatprep.subr.bf16.mxu0 0
    %1408 = vmatpush1.bf16.msra.mxu0 0
    %1409 = vmatprep.subr.bf16.mxu0 0
    %1410 = vmatpush1.bf16.msra.mxu0 0
    %1411 = vmatprep.subr.bf16.mxu0 0
    %1412 = vmatpush1.bf16.msra.mxu0 0
    %1413 = vmatprep.subr.bf16.mxu0 0
    %1414 = vmatpush1.bf16.msra.mxu0 0
    %1415 = vmatprep.subr.bf16.mxu0 0
    %1416 = vmatpush1.bf16.msra.mxu0 0
    %1417 = vmatprep.subr.bf16.mxu0 0
    %1418 = vmatpush1.bf16.msra.mxu0 0
    %1419 = vmatprep.subr.bf16.mxu0 0
    %1420 = vmatpush1.bf16.msra.mxu0 0
    %1421 = vmatprep.mubr.bf16.mxu0 0
    %1422 = vmatmul.mubr.bf16.gmra.mrb[0].mxu0 %v1387
    %v1423 = vpop.f32.mrb[0].mxu0
    %v1424 = vadd.f32 0.0, %v1423
    %v1425 = vpop.f32.mrb[0].mxu0
    %v1426 = vpop.f32.mrb[0].mxu0
    %v1427 = vadd.f32 0.0, %v1426
    %v1428 = vpop.f32.mrb[0].mxu0
    %1429 = vdwg.mxu0
    %v1430 = vpack.c.bf16 %v1427, %v1424
    %v1431 = vld [vmem:[%s2 + $0xc0] sm:$0xf]
    %v1432 = vld [vmem:[%s2 + $0xc4] sm:$0xf]
    %v1433 = vld [vmem:[%s2 + $0xc8] sm:$0xf]
    %v1434 = vld [vmem:[%s2 + $0xcc] sm:$0xf]
    %v1435 = vld [vmem:[%s2 + $0xd0] sm:$0xf]
    %v1436 = vld [vmem:[%s2 + $0xd4] sm:$0xf]
    %v1437 = vld [vmem:[%s2 + $0xd8] sm:$0xf]
    %v1438 = vld [vmem:[%s2 + $0xdc] sm:$0xf]
    %v1439 = vld [vmem:[%s2 + $0xe0] sm:$0xf]
    %v1440 = vld [vmem:[%s2 + $0xe4] sm:$0xf]
    %v1441 = vld [vmem:[%s2 + $0xe8] sm:$0xf]
    %v1442 = vld [vmem:[%s2 + $0xec] sm:$0xf]
    %v1443 = vld [vmem:[%s2 + $0xf0] sm:$0xf]
    %v1444 = vld [vmem:[%s2 + $0xf4] sm:$0xf]
    %v1445 = vld [vmem:[%s2 + $0xf8] sm:$0xf]
    %v1446 = vld [vmem:[%s2 + $0xfc] sm:$0xf]
    %v1463 = vunpack.c.l.b16 %v1431
    %v1464 = vunpack.c.l.b16 %v1432
    %v1465 = vunpack.c.l.b16 %v1433
    %v1466 = vunpack.c.l.b16 %v1434
    %v1467 = vunpack.c.l.b16 %v1435
    %v1468 = vunpack.c.l.b16 %v1436
    %v1469 = vunpack.c.l.b16 %v1437
    %v1470 = vunpack.c.l.b16 %v1438
    %v1471 = vunpack.c.l.b16 %v1439
    %v1472 = vunpack.c.l.b16 %v1440
    %v1473 = vunpack.c.l.b16 %v1441
    %v1474 = vunpack.c.l.b16 %v1442
    %v1475 = vunpack.c.l.b16 %v1443
    %v1476 = vunpack.c.l.b16 %v1444
    %v1477 = vunpack.c.l.b16 %v1445
    %v1478 = vunpack.c.l.b16 %v1446
    %v1479 = vpack.c.b16 %v1464, %v1463
    %v1480 = vpack.c.b16 %v1466, %v1465
    %v1481 = vpack.c.b16 %v1468, %v1467
    %v1482 = vpack.c.b16 %v1470, %v1469
    %v1483 = vpack.c.b16 %v1472, %v1471
    %v1484 = vpack.c.b16 %v1474, %v1473
    %v1485 = vpack.c.b16 %v1476, %v1475
    %v1486 = vpack.c.b16 %v1478, %v1477
    %1495 = vmatprep.subr.bf16.mxu0 0
    %1496 = vmatpush1.bf16.msra.mxu0 %v1479
    %1497 = vmatprep.subr.bf16.mxu0 0
    %1498 = vmatpush1.bf16.msra.mxu0 %v1480
    %1499 = vmatprep.subr.bf16.mxu0 0
    %1500 = vmatpush1.bf16.msra.mxu0 %v1481
    %1501 = vmatprep.subr.bf16.mxu0 0
    %1502 = vmatpush1.bf16.msra.mxu0 %v1482
    %1503 = vmatprep.subr.bf16.mxu0 0
    %1504 = vmatpush1.bf16.msra.mxu0 %v1483
    %1505 = vmatprep.subr.bf16.mxu0 0
    %1506 = vmatpush1.bf16.msra.mxu0 %v1484
    %1507 = vmatprep.subr.bf16.mxu0 0
    %1508 = vmatpush1.bf16.msra.mxu0 %v1485
    %1509 = vmatprep.subr.bf16.mxu0 0
    %1510 = vmatpush1.bf16.msra.mxu0 %v1486
    %1511 = vmatprep.subr.bf16.mxu0 0
    %1512 = vmatpush1.bf16.msra.mxu0 0
    %1513 = vmatprep.subr.bf16.mxu0 0
    %1514 = vmatpush1.bf16.msra.mxu0 0
    %1515 = vmatprep.subr.bf16.mxu0 0
    %1516 = vmatpush1.bf16.msra.mxu0 0
    %1517 = vmatprep.subr.bf16.mxu0 0
    %1518 = vmatpush1.bf16.msra.mxu0 0
    %1519 = vmatprep.subr.bf16.mxu0 0
    %1520 = vmatpush1.bf16.msra.mxu0 0
    %1521 = vmatprep.subr.bf16.mxu0 0
    %1522 = vmatpush1.bf16.msra.mxu0 0
    %1523 = vmatprep.subr.bf16.mxu0 0
    %1524 = vmatpush1.bf16.msra.mxu0 0
    %1525 = vmatprep.subr.bf16.mxu0 0
    %1526 = vmatpush1.bf16.msra.mxu0 0
    %1527 = vmatprep.mubr.bf16.mxu0 0
    %1528 = vmatmul.mubr.bf16.gmra.mrb[0].mxu0 %v1430
    %v1529 = vpop.f32.mrb[0].mxu0
    %v1530 = vadd.f32 0.0, %v1529
    %v1531 = vpop.f32.mrb[0].mxu0
    %v1532 = vpop.f32.mrb[0].mxu0
    %v1533 = vadd.f32 0.0, %v1532
    %v1534 = vpop.f32.mrb[0].mxu0
    %1535 = vdwg.mxu0
    %v1536 = vadd.f32 %v1375, %v1530
    %v1537 = vadd.f32 %v1376, %v1533
    %vm1538 = vcmp.gt.f32.partialorder %v1536, 0.0
    %vm1539 = vcmp.gt.f32.partialorder %v1537, 0.0
    %v1540 = vmul.f32 %v1536, 0.2
    %v1541 = vmul.f32 %v1537, 0.2
    %v1542 = vsel %vm1538, %v1536, %v1540
    %v1543 = vsel %vm1539, %v1537, %v1541
    %v1544 = vadd.f32 %v1542, %v1543
    %v1545 = vrot.slane %v1544, 4
    %v1546 = vadd.f32 %v1544, %v1545
    %v1547 = vrot.slane %v1546, 2
    %v1548 = vadd.f32 %v1546, %v1547
    %v1549 = vrot.slane %v1548, 1
    %v1550 = vadd.f32 %v1548, %v1549
    %v1551 = vmul.f32 %v1542, %v1542
    %v1552 = vmul.f32 %v1543, %v1543
    %v1553 = vadd.f32 %v1551, %v1552
    %v1554 = vrot.slane %v1553, 4
    %v1555 = vadd.f32 %v1553, %v1554
    %v1556 = vrot.slane %v1555, 2
    %v1557 = vadd.f32 %v1555, %v1556
    %v1558 = vrot.slane %v1557, 1
    %v1559 = vadd.f32 %v1557, %v1558
    %v1560 = vadd.s32 %v70, 32
    %v1561 = vadd.s32 %v70, 40
    %v1562 = vadd.s32 %v70, 48
    %v1563 = vadd.s32 %v70, 56
    %v1564 = vadd.s32 %v70, 64
    %v1565 = vadd.s32 %v70, 72
    %v1566 = vadd.s32 %v70, 80
    %v1567 = vadd.s32 %v70, 88
    %v1568 = vadd.s32 %v70, 96
    %v1569 = vadd.s32 %v70, 104
    %v1570 = vadd.s32 %v70, 112
    %v1571 = vadd.s32 %v70, 120
    %v1572 = vand.u32 %v1560, 15
    %v1573 = vand.u32 %v1561, 15
    %v1574 = vand.u32 %v1562, 15
    %v1575 = vand.u32 %v1563, 15
    %v1576 = vand.u32 %v1564, 15
    %v1577 = vand.u32 %v1565, 15
    %v1578 = vand.u32 %v1566, 15
    %v1579 = vand.u32 %v1567, 15
    %v1580 = vand.u32 %v1568, 15
    %v1581 = vand.u32 %v1569, 15
    %v1582 = vand.u32 %v1570, 15
    %v1583 = vand.u32 %v1571, 15
    %vm1584 = vcmp.eq.s32.totalorder %v80, %v894
    %vm1585 = vcmp.eq.s32.totalorder %v81, %v894
    %vm1586 = vcmp.eq.s32.totalorder %v82, %v894
    %vm1587 = vcmp.eq.s32.totalorder %v83, %v894
    %vm1588 = vcmp.eq.s32.totalorder %v1572, %v894
    %vm1589 = vcmp.eq.s32.totalorder %v1573, %v894
    %vm1590 = vcmp.eq.s32.totalorder %v1574, %v894
    %vm1591 = vcmp.eq.s32.totalorder %v1575, %v894
    %vm1592 = vcmp.eq.s32.totalorder %v1576, %v894
    %vm1593 = vcmp.eq.s32.totalorder %v1577, %v894
    %vm1594 = vcmp.eq.s32.totalorder %v1578, %v894
    %vm1595 = vcmp.eq.s32.totalorder %v1579, %v894
    %vm1596 = vcmp.eq.s32.totalorder %v1580, %v894
    %vm1597 = vcmp.eq.s32.totalorder %v1581, %v894
    %vm1598 = vcmp.eq.s32.totalorder %v1582, %v894
    %vm1599 = vcmp.eq.s32.totalorder %v1583, %v894
    %v1600 = vsel %vm1584, 1.0, 0.0
    %v1601 = vsel %vm1585, 1.0, 0.0
    %v1602 = vsel %vm1586, 1.0, 0.0
    %v1603 = vsel %vm1587, 1.0, 0.0
    %v1604 = vsel %vm1588, 1.0, 0.0
    %v1605 = vsel %vm1589, 1.0, 0.0
    %v1606 = vsel %vm1590, 1.0, 0.0
    %v1607 = vsel %vm1591, 1.0, 0.0
    %v1608 = vsel %vm1592, 1.0, 0.0
    %v1609 = vsel %vm1593, 1.0, 0.0
    %v1610 = vsel %vm1594, 1.0, 0.0
    %v1611 = vsel %vm1595, 1.0, 0.0
    %v1612 = vsel %vm1596, 1.0, 0.0
    %v1613 = vsel %vm1597, 1.0, 0.0
    %v1614 = vsel %vm1598, 1.0, 0.0
    %v1615 = vsel %vm1599, 1.0, 0.0
    %1616 = vmatprep.subr.mxu0 0.0
    %1617 = vmatpush1.msra.mxu0 %v1600
    %1618 = vmatprep.subr.mxu0 0.0
    %1619 = vmatpush1.msra.mxu0 %v1601
    %1620 = vmatprep.subr.mxu0 0.0
    %1621 = vmatpush1.msra.mxu0 %v1602
    %1622 = vmatprep.subr.mxu0 0.0
    %1623 = vmatpush1.msra.mxu0 %v1603
    %1624 = vmatprep.subr.mxu0 0.0
    %1625 = vmatpush1.msra.mxu0 %v1604
    %1626 = vmatprep.subr.mxu0 0.0
    %1627 = vmatpush1.msra.mxu0 %v1605
    %1628 = vmatprep.subr.mxu0 0.0
    %1629 = vmatpush1.msra.mxu0 %v1606
    %1630 = vmatprep.subr.mxu0 0.0
    %1631 = vmatpush1.msra.mxu0 %v1607
    %1632 = vmatprep.subr.mxu0 0.0
    %1633 = vmatpush1.msra.mxu0 %v1608
    %1634 = vmatprep.subr.mxu0 0.0
    %1635 = vmatpush1.msra.mxu0 %v1609
    %1636 = vmatprep.subr.mxu0 0.0
    %1637 = vmatpush1.msra.mxu0 %v1610
    %1638 = vmatprep.subr.mxu0 0.0
    %1639 = vmatpush1.msra.mxu0 %v1611
    %1640 = vmatprep.subr.mxu0 0.0
    %1641 = vmatpush1.msra.mxu0 %v1612
    %1642 = vmatprep.subr.mxu0 0.0
    %1643 = vmatpush1.msra.mxu0 %v1613
    %1644 = vmatprep.subr.mxu0 0.0
    %1645 = vmatpush1.msra.mxu0 %v1614
    %1646 = vmatprep.subr.mxu0 0.0
    %1647 = vmatpush1.msra.mxu0 %v1615
    %1648 = vmatprep.subr.mxu0 0.0
    %1649 = vmatpush1.msra.mxu0 0.0
    %1650 = vmatprep.subr.mxu0 0.0
    %1651 = vmatpush1.msra.mxu0 0.0
    %1652 = vmatprep.subr.mxu0 0.0
    %1653 = vmatpush1.msra.mxu0 0.0
    %1654 = vmatprep.subr.mxu0 0.0
    %1655 = vmatpush1.msra.mxu0 0.0
    %1656 = vmatprep.subr.mxu0 0.0
    %1657 = vmatpush1.msra.mxu0 0.0
    %1658 = vmatprep.subr.mxu0 0.0
    %1659 = vmatpush1.msra.mxu0 0.0
    %1660 = vmatprep.subr.mxu0 0.0
    %1661 = vmatpush1.msra.mxu0 0.0
    %1662 = vmatprep.subr.mxu0 0.0
    %1663 = vmatpush1.msra.mxu0 0.0
    %1664 = vmatprep.subr.mxu0 0.0
    %1665 = vmatpush1.msra.mxu0 0.0
    %1666 = vmatprep.subr.mxu0 0.0
    %1667 = vmatpush1.msra.mxu0 0.0
    %1668 = vmatprep.subr.mxu0 0.0
    %1669 = vmatpush1.msra.mxu0 0.0
    %1670 = vmatprep.subr.mxu0 0.0
    %1671 = vmatpush1.msra.mxu0 0.0
    %1672 = vmatprep.subr.mxu0 0.0
    %1673 = vmatpush1.msra.mxu0 0.0
    %1674 = vmatprep.subr.mxu0 0.0
    %1675 = vmatpush1.msra.mxu0 0.0
    %1676 = vmatprep.subr.mxu0 0.0
    %1677 = vmatpush1.msra.mxu0 0.0
    %1678 = vmatprep.subr.mxu0 0.0
    %1679 = vmatpush1.msra.mxu0 0.0
    %1680 = vmatprep.mubr.f32.mxu0 0.0
    %1681 = vmatmul.mubr.f32.gmra.mrb[0].mxu0 %v1550
    %v1682 = vpop.f32.mrb[0].mxu0
    %v1683 = vadd.f32 0.0, %v1682
    %v1684 = vpop.f32.mrb[0].mxu0
    %1685 = vdwg.mxu0
    %v1686 = vmul.f32 %v1683, 0.0078125
    %1687 = vmatprep.subr.mxu0 0.0
    %1688 = vmatpush1.msra.mxu0 %v1600
    %1689 = vmatprep.subr.mxu0 0.0
    %1690 = vmatpush1.msra.mxu0 %v1601
    %1691 = vmatprep.subr.mxu0 0.0
    %1692 = vmatpush1.msra.mxu0 %v1602
    %1693 = vmatprep.subr.mxu0 0.0
    %1694 = vmatpush1.msra.mxu0 %v1603
    %1695 = vmatprep.subr.mxu0 0.0
    %1696 = vmatpush1.msra.mxu0 %v1604
    %1697 = vmatprep.subr.mxu0 0.0
    %1698 = vmatpush1.msra.mxu0 %v1605
    %1699 = vmatprep.subr.mxu0 0.0
    %1700 = vmatpush1.msra.mxu0 %v1606
    %1701 = vmatprep.subr.mxu0 0.0
    %1702 = vmatpush1.msra.mxu0 %v1607
    %1703 = vmatprep.subr.mxu0 0.0
    %1704 = vmatpush1.msra.mxu0 %v1608
    %1705 = vmatprep.subr.mxu0 0.0
    %1706 = vmatpush1.msra.mxu0 %v1609
    %1707 = vmatprep.subr.mxu0 0.0
    %1708 = vmatpush1.msra.mxu0 %v1610
    %1709 = vmatprep.subr.mxu0 0.0
    %1710 = vmatpush1.msra.mxu0 %v1611
    %1711 = vmatprep.subr.mxu0 0.0
    %1712 = vmatpush1.msra.mxu0 %v1612
    %1713 = vmatprep.subr.mxu0 0.0
    %1714 = vmatpush1.msra.mxu0 %v1613
    %1715 = vmatprep.subr.mxu0 0.0
    %1716 = vmatpush1.msra.mxu0 %v1614
    %1717 = vmatprep.subr.mxu0 0.0
    %1718 = vmatpush1.msra.mxu0 %v1615
    %1719 = vmatprep.subr.mxu0 0.0
    %1720 = vmatpush1.msra.mxu0 0.0
    %1721 = vmatprep.subr.mxu0 0.0
    %1722 = vmatpush1.msra.mxu0 0.0
    %1723 = vmatprep.subr.mxu0 0.0
    %1724 = vmatpush1.msra.mxu0 0.0
    %1725 = vmatprep.subr.mxu0 0.0
    %1726 = vmatpush1.msra.mxu0 0.0
    %1727 = vmatprep.subr.mxu0 0.0
    %1728 = vmatpush1.msra.mxu0 0.0
    %1729 = vmatprep.subr.mxu0 0.0
    %1730 = vmatpush1.msra.mxu0 0.0
    %1731 = vmatprep.subr.mxu0 0.0
    %1732 = vmatpush1.msra.mxu0 0.0
    %1733 = vmatprep.subr.mxu0 0.0
    %1734 = vmatpush1.msra.mxu0 0.0
    %1735 = vmatprep.subr.mxu0 0.0
    %1736 = vmatpush1.msra.mxu0 0.0
    %1737 = vmatprep.subr.mxu0 0.0
    %1738 = vmatpush1.msra.mxu0 0.0
    %1739 = vmatprep.subr.mxu0 0.0
    %1740 = vmatpush1.msra.mxu0 0.0
    %1741 = vmatprep.subr.mxu0 0.0
    %1742 = vmatpush1.msra.mxu0 0.0
    %1743 = vmatprep.subr.mxu0 0.0
    %1744 = vmatpush1.msra.mxu0 0.0
    %1745 = vmatprep.subr.mxu0 0.0
    %1746 = vmatpush1.msra.mxu0 0.0
    %1747 = vmatprep.subr.mxu0 0.0
    %1748 = vmatpush1.msra.mxu0 0.0
    %1749 = vmatprep.subr.mxu0 0.0
    %1750 = vmatpush1.msra.mxu0 0.0
    %1751 = vmatprep.mubr.f32.mxu0 0.0
    %1752 = vmatmul.mubr.f32.gmra.mrb[0].mxu0 %v1559
    %v1753 = vpop.f32.mrb[0].mxu0
    %v1754 = vadd.f32 0.0, %v1753
    %v1755 = vpop.f32.mrb[0].mxu0
    %1756 = vdwg.mxu0
    %v1757 = vmul.f32 %v1754, 0.0078125
    %v1758 = vmul.f32 %v1686, %v1686
    %v1759 = vsub.f32 %v1757, %v1758
    %v1760 = vadd.f32 %v1759, 1e-05
    %v1761 = vrsqrt.pop %v1760
    %v1762 = vlaneseq
    %v1763 = vshrl.u32 %v1762, 7
    %v1764 = vsub.s32 0, %v1763
    %v1765 = vrot.slane %v1686, %v1764
    %v1766 = vsub.f32 %v1542, %v1765
    %v1767 = vsub.f32 %v1543, %v1765
    %v1768 = vld [vmem:[%s5] sm:$0x1]
    %v1769 = vmul.f32 %v1761, %v1768
    %v1770 = vlaneseq
    %v1771 = vshrl.u32 %v1770, 7
    %v1772 = vsub.s32 0, %v1771
    %v1773 = vrot.slane %v1769, %v1772
    %v1774 = vmul.f32 %v1766, %v1773
    %v1775 = vmul.f32 %v1767, %v1773
    %v1776 = vld [vmem:[%s6] sm:$0x1]
    %v1778 = vlaneseq
    %v1779 = vshrl.u32 %v1778, 7
    %v1780 = vsub.s32 0, %v1779
    %v1781 = vrot.slane %v1776, %v1780
    %v1783 = vadd.f32 %v1774, %v1781
    %v1784 = vadd.f32 %v1775, %v1781
    %v1785 = vpack.c.bf16 %v1784, %v1783
    %v1786 = vshra.s32 %v70, 2
    %v1787 = vand.u32 %v70, 3
    %v1788 = vshra.s32 %v75, 3
    %v1789 = vand.u32 %v75, 7
    %vm1790 = vcmp.eq.s32.totalorder %v1788, %v1786
    %v1791 = vmul.u32 %v1787, 2
    %v1792 = vadd.s32 %v1791, 4294967295
    %vm1793 = vcmp.eq.s32.totalorder %v1789, %v1792
    %vm1794 = vmand %vm1790, %vm1793
    %v1795 = vsel %vm1794, 1.0, 0.0
    %v1796 = vpack.c.bf16 %v1795, %v1795
    %vm1797 = vcmask 130048
    %v1799 = vsel %vm1797, %v1796, 0
    %1801 = vmatprep.subr.bf16.mxu0 0
    %1802 = vmatpush1.bf16.msra.mxu0 %v1785
    %1803 = vmatprep.subr.bf16.mxu0 0
    %1804 = vmatpush1.bf16.msra.mxu0 0
    %1805 = vmatprep.subr.bf16.mxu0 0
    %1806 = vmatpush1.bf16.msra.mxu0 0
    %1807 = vmatprep.subr.bf16.mxu0 0
    %1808 = vmatpush1.bf16.msra.mxu0 0
    %1809 = vmatprep.subr.bf16.mxu0 0
    %1810 = vmatpush1.bf16.msra.mxu0 0
    %1811 = vmatprep.subr.bf16.mxu0 0
    %1812 = vmatpush1.bf16.msra.mxu0 0
    %1813 = vmatprep.subr.bf16.mxu0 0
    %1814 = vmatpush1.bf16.msra.mxu0 0
    %1815 = vmatprep.subr.bf16.mxu0 0
    %1816 = vmatpush1.bf16.msra.mxu0 0
    %1817 = vmatprep.subr.bf16.mxu0 0
    %1818 = vmatpush1.bf16.msra.mxu0 0
    %1819 = vmatprep.subr.bf16.mxu0 0
    %1820 = vmatpush1.bf16.msra.mxu0 0
    %1821 = vmatprep.subr.bf16.mxu0 0
    %1822 = vmatpush1.bf16.msra.mxu0 0
    %1823 = vmatprep.subr.bf16.mxu0 0
    %1824 = vmatpush1.bf16.msra.mxu0 0
    %1825 = vmatprep.subr.bf16.mxu0 0
    %1826 = vmatpush1.bf16.msra.mxu0 0
    %1827 = vmatprep.subr.bf16.mxu0 0
    %1828 = vmatpush1.bf16.msra.mxu0 0
    %1829 = vmatprep.subr.bf16.mxu0 0
    %1830 = vmatpush1.bf16.msra.mxu0 0
    %1831 = vmatprep.subr.bf16.mxu0 0
    %1832 = vmatpush1.bf16.msra.mxu0 0
    %1833 = vmatprep.mubr.bf16.mxu0 0
    %1834 = vmatmul.mubr.bf16.gmra.mrb[0].mxu0 %v1799
    %v1835 = vpop.f32.mrb[0].mxu0
    %v1836 = vadd.f32 0.0, %v1835
    %v1837 = vpop.f32.mrb[0].mxu0
    %v1838 = vpop.f32.mrb[0].mxu0
    %v1839 = vpop.f32.mrb[0].mxu0
    %1840 = vdwg.mxu0
    %v1841 = vpack.c.bf16 %v1836, %v1836
    %v1842 = vld [vmem:[%s3] sm:$0xf]
    %v1843 = vld [vmem:[%s3 + $0x4] sm:$0xf]
    %v1844 = vld [vmem:[%s3 + $0x8] sm:$0xf]
    %v1845 = vld [vmem:[%s3 + $0xc] sm:$0xf]
    %v1846 = vld [vmem:[%s3 + $0x10] sm:$0xf]
    %v1847 = vld [vmem:[%s3 + $0x14] sm:$0xf]
    %v1848 = vld [vmem:[%s3 + $0x18] sm:$0xf]
    %v1849 = vld [vmem:[%s3 + $0x1c] sm:$0xf]
    %v1850 = vld [vmem:[%s3 + $0x20] sm:$0xf]
    %v1851 = vld [vmem:[%s3 + $0x24] sm:$0xf]
    %v1852 = vld [vmem:[%s3 + $0x28] sm:$0xf]
    %v1853 = vld [vmem:[%s3 + $0x2c] sm:$0xf]
    %v1854 = vld [vmem:[%s3 + $0x30] sm:$0xf]
    %v1855 = vld [vmem:[%s3 + $0x34] sm:$0xf]
    %v1856 = vld [vmem:[%s3 + $0x38] sm:$0xf]
    %v1857 = vld [vmem:[%s3 + $0x3c] sm:$0xf]
    %vm1858 = vcmp.eq.s32.totalorder %v1789, %v1791
    %vm1859 = vmand %vm1790, %vm1858
    %v1860 = vsel %vm1859, 1.0, 0.0
    %v1861 = vpack.c.bf16 %v1860, %v1860
    %v1863 = vsel %vm1797, %v1861, 0
    %1865 = vmatprep.subr.bf16.mxu0 0
    %1866 = vmatpush1.bf16.msra.mxu0 %v1785
    %1867 = vmatprep.subr.bf16.mxu0 0
    %1868 = vmatpush1.bf16.msra.mxu0 0
    %1869 = vmatprep.subr.bf16.mxu0 0
    %1870 = vmatpush1.bf16.msra.mxu0 0
    %1871 = vmatprep.subr.bf16.mxu0 0
    %1872 = vmatpush1.bf16.msra.mxu0 0
    %1873 = vmatprep.subr.bf16.mxu0 0
    %1874 = vmatpush1.bf16.msra.mxu0 0
    %1875 = vmatprep.subr.bf16.mxu0 0
    %1876 = vmatpush1.bf16.msra.mxu0 0
    %1877 = vmatprep.subr.bf16.mxu0 0
    %1878 = vmatpush1.bf16.msra.mxu0 0
    %1879 = vmatprep.subr.bf16.mxu0 0
    %1880 = vmatpush1.bf16.msra.mxu0 0
    %1881 = vmatprep.subr.bf16.mxu0 0
    %1882 = vmatpush1.bf16.msra.mxu0 0
    %1883 = vmatprep.subr.bf16.mxu0 0
    %1884 = vmatpush1.bf16.msra.mxu0 0
    %1885 = vmatprep.subr.bf16.mxu0 0
    %1886 = vmatpush1.bf16.msra.mxu0 0
    %1887 = vmatprep.subr.bf16.mxu0 0
    %1888 = vmatpush1.bf16.msra.mxu0 0
    %1889 = vmatprep.subr.bf16.mxu0 0
    %1890 = vmatpush1.bf16.msra.mxu0 0
    %1891 = vmatprep.subr.bf16.mxu0 0
    %1892 = vmatpush1.bf16.msra.mxu0 0
    %1893 = vmatprep.subr.bf16.mxu0 0
    %1894 = vmatpush1.bf16.msra.mxu0 0
    %1895 = vmatprep.subr.bf16.mxu0 0
    %1896 = vmatpush1.bf16.msra.mxu0 0
    %1897 = vmatprep.mubr.bf16.mxu0 0
    %1898 = vmatmul.mubr.bf16.gmra.mrb[0].mxu0 %v1863
    %v1899 = vpop.f32.mrb[0].mxu0
    %v1900 = vadd.f32 0.0, %v1899
    %v1901 = vpop.f32.mrb[0].mxu0
    %v1902 = vpop.f32.mrb[0].mxu0
    %v1903 = vpop.f32.mrb[0].mxu0
    %1904 = vdwg.mxu0
    %v1905 = vpack.c.bf16 %v1900, %v1900
    %v1906 = vld [vmem:[%s3 + $0x40] sm:$0xf]
    %v1907 = vld [vmem:[%s3 + $0x44] sm:$0xf]
    %v1908 = vld [vmem:[%s3 + $0x48] sm:$0xf]
    %v1909 = vld [vmem:[%s3 + $0x4c] sm:$0xf]
    %v1910 = vld [vmem:[%s3 + $0x50] sm:$0xf]
    %v1911 = vld [vmem:[%s3 + $0x54] sm:$0xf]
    %v1912 = vld [vmem:[%s3 + $0x58] sm:$0xf]
    %v1913 = vld [vmem:[%s3 + $0x5c] sm:$0xf]
    %v1914 = vld [vmem:[%s3 + $0x60] sm:$0xf]
    %v1915 = vld [vmem:[%s3 + $0x64] sm:$0xf]
    %v1916 = vld [vmem:[%s3 + $0x68] sm:$0xf]
    %v1917 = vld [vmem:[%s3 + $0x6c] sm:$0xf]
    %v1918 = vld [vmem:[%s3 + $0x70] sm:$0xf]
    %v1919 = vld [vmem:[%s3 + $0x74] sm:$0xf]
    %v1920 = vld [vmem:[%s3 + $0x78] sm:$0xf]
    %v1921 = vld [vmem:[%s3 + $0x7c] sm:$0xf]
    %v1938 = vunpack.c.l.b16 %v1906
    %v1939 = vunpack.c.l.b16 %v1907
    %v1940 = vunpack.c.l.b16 %v1908
    %v1941 = vunpack.c.l.b16 %v1909
    %v1942 = vunpack.c.l.b16 %v1910
    %v1943 = vunpack.c.l.b16 %v1911
    %v1944 = vunpack.c.l.b16 %v1912
    %v1945 = vunpack.c.l.b16 %v1913
    %v1946 = vunpack.c.l.b16 %v1914
    %v1947 = vunpack.c.l.b16 %v1915
    %v1948 = vunpack.c.l.b16 %v1916
    %v1949 = vunpack.c.l.b16 %v1917
    %v1950 = vunpack.c.l.b16 %v1918
    %v1951 = vunpack.c.l.b16 %v1919
    %v1952 = vunpack.c.l.b16 %v1920
    %v1953 = vunpack.c.l.b16 %v1921
    %v1954 = vpack.c.b16 %v1939, %v1938
    %v1955 = vpack.c.b16 %v1941, %v1940
    %v1956 = vpack.c.b16 %v1943, %v1942
    %v1957 = vpack.c.b16 %v1945, %v1944
    %v1958 = vpack.c.b16 %v1947, %v1946
    %v1959 = vpack.c.b16 %v1949, %v1948
    %v1960 = vpack.c.b16 %v1951, %v1950
    %v1961 = vpack.c.b16 %v1953, %v1952
    %1970 = vmatprep.subr.bf16.mxu0 0
    %1971 = vmatpush1.bf16.msra.mxu0 %v1954
    %1972 = vmatprep.subr.bf16.mxu0 0
    %1973 = vmatpush1.bf16.msra.mxu0 %v1955
    %1974 = vmatprep.subr.bf16.mxu0 0
    %1975 = vmatpush1.bf16.msra.mxu0 %v1956
    %1976 = vmatprep.subr.bf16.mxu0 0
    %1977 = vmatpush1.bf16.msra.mxu0 %v1957
    %1978 = vmatprep.subr.bf16.mxu0 0
    %1979 = vmatpush1.bf16.msra.mxu0 %v1958
    %1980 = vmatprep.subr.bf16.mxu0 0
    %1981 = vmatpush1.bf16.msra.mxu0 %v1959
    %1982 = vmatprep.subr.bf16.mxu0 0
    %1983 = vmatpush1.bf16.msra.mxu0 %v1960
    %1984 = vmatprep.subr.bf16.mxu0 0
    %1985 = vmatpush1.bf16.msra.mxu0 %v1961
    %1986 = vmatprep.subr.bf16.mxu0 0
    %1987 = vmatpush1.bf16.msra.mxu0 0
    %1988 = vmatprep.subr.bf16.mxu0 0
    %1989 = vmatpush1.bf16.msra.mxu0 0
    %1990 = vmatprep.subr.bf16.mxu0 0
    %1991 = vmatpush1.bf16.msra.mxu0 0
    %1992 = vmatprep.subr.bf16.mxu0 0
    %1993 = vmatpush1.bf16.msra.mxu0 0
    %1994 = vmatprep.subr.bf16.mxu0 0
    %1995 = vmatpush1.bf16.msra.mxu0 0
    %1996 = vmatprep.subr.bf16.mxu0 0
    %1997 = vmatpush1.bf16.msra.mxu0 0
    %1998 = vmatprep.subr.bf16.mxu0 0
    %1999 = vmatpush1.bf16.msra.mxu0 0
    %2000 = vmatprep.subr.bf16.mxu0 0
    %2001 = vmatpush1.bf16.msra.mxu0 0
    %2002 = vmatprep.mubr.bf16.mxu0 0
    %2003 = vmatmul.mubr.bf16.gmra.mrb[0].mxu0 %v1905
    %v2004 = vpop.f32.mrb[0].mxu0
    %v2005 = vadd.f32 0.0, %v2004
    %v2006 = vpop.f32.mrb[0].mxu0
    %v2007 = vpop.f32.mrb[0].mxu0
    %v2008 = vpop.f32.mrb[0].mxu0
    %2009 = vdwg.mxu0
    %v2026 = vunpack.c.l.b16 %v1842
    %v2027 = vunpack.c.l.b16 %v1843
    %v2028 = vunpack.c.l.b16 %v1844
    %v2029 = vunpack.c.l.b16 %v1845
    %v2030 = vunpack.c.l.b16 %v1846
    %v2031 = vunpack.c.l.b16 %v1847
    %v2032 = vunpack.c.l.b16 %v1848
    %v2033 = vunpack.c.l.b16 %v1849
    %v2034 = vunpack.c.l.b16 %v1850
    %v2035 = vunpack.c.l.b16 %v1851
    %v2036 = vunpack.c.l.b16 %v1852
    %v2037 = vunpack.c.l.b16 %v1853
    %v2038 = vunpack.c.l.b16 %v1854
    %v2039 = vunpack.c.l.b16 %v1855
    %v2040 = vunpack.c.l.b16 %v1856
    %v2041 = vunpack.c.l.b16 %v1857
    %v2042 = vpack.c.b16 %v2027, %v2026
    %v2043 = vpack.c.b16 %v2029, %v2028
    %v2044 = vpack.c.b16 %v2031, %v2030
    %v2045 = vpack.c.b16 %v2033, %v2032
    %v2046 = vpack.c.b16 %v2035, %v2034
    %v2047 = vpack.c.b16 %v2037, %v2036
    %v2048 = vpack.c.b16 %v2039, %v2038
    %v2049 = vpack.c.b16 %v2041, %v2040
    %2058 = vmatprep.subr.bf16.mxu0 0
    %2059 = vmatpush1.bf16.msra.mxu0 %v2042
    %2060 = vmatprep.subr.bf16.mxu0 0
    %2061 = vmatpush1.bf16.msra.mxu0 %v2043
    %2062 = vmatprep.subr.bf16.mxu0 0
    %2063 = vmatpush1.bf16.msra.mxu0 %v2044
    %2064 = vmatprep.subr.bf16.mxu0 0
    %2065 = vmatpush1.bf16.msra.mxu0 %v2045
    %2066 = vmatprep.subr.bf16.mxu0 0
    %2067 = vmatpush1.bf16.msra.mxu0 %v2046
    %2068 = vmatprep.subr.bf16.mxu0 0
    %2069 = vmatpush1.bf16.msra.mxu0 %v2047
    %2070 = vmatprep.subr.bf16.mxu0 0
    %2071 = vmatpush1.bf16.msra.mxu0 %v2048
    %2072 = vmatprep.subr.bf16.mxu0 0
    %2073 = vmatpush1.bf16.msra.mxu0 %v2049
    %2074 = vmatprep.subr.bf16.mxu0 0
    %2075 = vmatpush1.bf16.msra.mxu0 0
    %2076 = vmatprep.subr.bf16.mxu0 0
    %2077 = vmatpush1.bf16.msra.mxu0 0
    %2078 = vmatprep.subr.bf16.mxu0 0
    %2079 = vmatpush1.bf16.msra.mxu0 0
    %2080 = vmatprep.subr.bf16.mxu0 0
    %2081 = vmatpush1.bf16.msra.mxu0 0
    %2082 = vmatprep.subr.bf16.mxu0 0
    %2083 = vmatpush1.bf16.msra.mxu0 0
    %2084 = vmatprep.subr.bf16.mxu0 0
    %2085 = vmatpush1.bf16.msra.mxu0 0
    %2086 = vmatprep.subr.bf16.mxu0 0
    %2087 = vmatpush1.bf16.msra.mxu0 0
    %2088 = vmatprep.subr.bf16.mxu0 0
    %2089 = vmatpush1.bf16.msra.mxu0 0
    %2090 = vmatprep.mubr.bf16.mxu0 0
    %2091 = vmatmul.mubr.bf16.gmra.mrb[0].mxu0 %v1841
    %v2092 = vpop.f32.mrb[0].mxu0
    %v2093 = vadd.f32 %v2005, %v2092
    %v2094 = vpop.f32.mrb[0].mxu0
    %v2095 = vpop.f32.mrb[0].mxu0
    %v2096 = vpop.f32.mrb[0].mxu0
    %2097 = vdwg.mxu0
    %v2098 = vadd.s32 %v1791, 1
    %vm2099 = vcmp.eq.s32.totalorder %v1789, %v2098
    %vm2100 = vmand %vm1790, %vm2099
    %v2101 = vsel %vm2100, 1.0, 0.0
    %v2102 = vpack.c.bf16 %v2101, %v2101
    %v2104 = vsel %vm1797, %v2102, 0
    %2106 = vmatprep.subr.bf16.mxu0 0
    %2107 = vmatpush1.bf16.msra.mxu0 %v1785
    %2108 = vmatprep.subr.bf16.mxu0 0
    %2109 = vmatpush1.bf16.msra.mxu0 0
    %2110 = vmatprep.subr.bf16.mxu0 0
    %2111 = vmatpush1.bf16.msra.mxu0 0
    %2112 = vmatprep.subr.bf16.mxu0 0
    %2113 = vmatpush1.bf16.msra.mxu0 0
    %2114 = vmatprep.subr.bf16.mxu0 0
    %2115 = vmatpush1.bf16.msra.mxu0 0
    %2116 = vmatprep.subr.bf16.mxu0 0
    %2117 = vmatpush1.bf16.msra.mxu0 0
    %2118 = vmatprep.subr.bf16.mxu0 0
    %2119 = vmatpush1.bf16.msra.mxu0 0
    %2120 = vmatprep.subr.bf16.mxu0 0
    %2121 = vmatpush1.bf16.msra.mxu0 0
    %2122 = vmatprep.subr.bf16.mxu0 0
    %2123 = vmatpush1.bf16.msra.mxu0 0
    %2124 = vmatprep.subr.bf16.mxu0 0
    %2125 = vmatpush1.bf16.msra.mxu0 0
    %2126 = vmatprep.subr.bf16.mxu0 0
    %2127 = vmatpush1.bf16.msra.mxu0 0
    %2128 = vmatprep.subr.bf16.mxu0 0
    %2129 = vmatpush1.bf16.msra.mxu0 0
    %2130 = vmatprep.subr.bf16.mxu0 0
    %2131 = vmatpush1.bf16.msra.mxu0 0
    %2132 = vmatprep.subr.bf16.mxu0 0
    %2133 = vmatpush1.bf16.msra.mxu0 0
    %2134 = vmatprep.subr.bf16.mxu0 0
    %2135 = vmatpush1.bf16.msra.mxu0 0
    %2136 = vmatprep.subr.bf16.mxu0 0
    %2137 = vmatpush1.bf16.msra.mxu0 0
    %2138 = vmatprep.mubr.bf16.mxu0 0
    %2139 = vmatmul.mubr.bf16.gmra.mrb[0].mxu0 %v2104
    %v2140 = vpop.f32.mrb[0].mxu0
    %v2141 = vadd.f32 0.0, %v2140
    %v2142 = vpop.f32.mrb[0].mxu0
    %v2143 = vpop.f32.mrb[0].mxu0
    %v2144 = vpop.f32.mrb[0].mxu0
    %2145 = vdwg.mxu0
    %v2146 = vpack.c.bf16 %v2141, %v2141
    %v2147 = vld [vmem:[%s3 + $0x80] sm:$0xf]
    %v2148 = vld [vmem:[%s3 + $0x84] sm:$0xf]
    %v2149 = vld [vmem:[%s3 + $0x88] sm:$0xf]
    %v2150 = vld [vmem:[%s3 + $0x8c] sm:$0xf]
    %v2151 = vld [vmem:[%s3 + $0x90] sm:$0xf]
    %v2152 = vld [vmem:[%s3 + $0x94] sm:$0xf]
    %v2153 = vld [vmem:[%s3 + $0x98] sm:$0xf]
    %v2154 = vld [vmem:[%s3 + $0x9c] sm:$0xf]
    %v2155 = vld [vmem:[%s3 + $0xa0] sm:$0xf]
    %v2156 = vld [vmem:[%s3 + $0xa4] sm:$0xf]
    %v2157 = vld [vmem:[%s3 + $0xa8] sm:$0xf]
    %v2158 = vld [vmem:[%s3 + $0xac] sm:$0xf]
    %v2159 = vld [vmem:[%s3 + $0xb0] sm:$0xf]
    %v2160 = vld [vmem:[%s3 + $0xb4] sm:$0xf]
    %v2161 = vld [vmem:[%s3 + $0xb8] sm:$0xf]
    %v2162 = vld [vmem:[%s3 + $0xbc] sm:$0xf]
    %v2179 = vunpack.c.l.b16 %v2147
    %v2180 = vunpack.c.l.b16 %v2148
    %v2181 = vunpack.c.l.b16 %v2149
    %v2182 = vunpack.c.l.b16 %v2150
    %v2183 = vunpack.c.l.b16 %v2151
    %v2184 = vunpack.c.l.b16 %v2152
    %v2185 = vunpack.c.l.b16 %v2153
    %v2186 = vunpack.c.l.b16 %v2154
    %v2187 = vunpack.c.l.b16 %v2155
    %v2188 = vunpack.c.l.b16 %v2156
    %v2189 = vunpack.c.l.b16 %v2157
    %v2190 = vunpack.c.l.b16 %v2158
    %v2191 = vunpack.c.l.b16 %v2159
    %v2192 = vunpack.c.l.b16 %v2160
    %v2193 = vunpack.c.l.b16 %v2161
    %v2194 = vunpack.c.l.b16 %v2162
    %v2195 = vpack.c.b16 %v2180, %v2179
    %v2196 = vpack.c.b16 %v2182, %v2181
    %v2197 = vpack.c.b16 %v2184, %v2183
    %v2198 = vpack.c.b16 %v2186, %v2185
    %v2199 = vpack.c.b16 %v2188, %v2187
    %v2200 = vpack.c.b16 %v2190, %v2189
    %v2201 = vpack.c.b16 %v2192, %v2191
    %v2202 = vpack.c.b16 %v2194, %v2193
    %2211 = vmatprep.subr.bf16.mxu0 0
    %2212 = vmatpush1.bf16.msra.mxu0 %v2195
    %2213 = vmatprep.subr.bf16.mxu0 0
    %2214 = vmatpush1.bf16.msra.mxu0 %v2196
    %2215 = vmatprep.subr.bf16.mxu0 0
    %2216 = vmatpush1.bf16.msra.mxu0 %v2197
    %2217 = vmatprep.subr.bf16.mxu0 0
    %2218 = vmatpush1.bf16.msra.mxu0 %v2198
    %2219 = vmatprep.subr.bf16.mxu0 0
    %2220 = vmatpush1.bf16.msra.mxu0 %v2199
    %2221 = vmatprep.subr.bf16.mxu0 0
    %2222 = vmatpush1.bf16.msra.mxu0 %v2200
    %2223 = vmatprep.subr.bf16.mxu0 0
    %2224 = vmatpush1.bf16.msra.mxu0 %v2201
    %2225 = vmatprep.subr.bf16.mxu0 0
    %2226 = vmatpush1.bf16.msra.mxu0 %v2202
    %2227 = vmatprep.subr.bf16.mxu0 0
    %2228 = vmatpush1.bf16.msra.mxu0 0
    %2229 = vmatprep.subr.bf16.mxu0 0
    %2230 = vmatpush1.bf16.msra.mxu0 0
    %2231 = vmatprep.subr.bf16.mxu0 0
    %2232 = vmatpush1.bf16.msra.mxu0 0
    %2233 = vmatprep.subr.bf16.mxu0 0
    %2234 = vmatpush1.bf16.msra.mxu0 0
    %2235 = vmatprep.subr.bf16.mxu0 0
    %2236 = vmatpush1.bf16.msra.mxu0 0
    %2237 = vmatprep.subr.bf16.mxu0 0
    %2238 = vmatpush1.bf16.msra.mxu0 0
    %2239 = vmatprep.subr.bf16.mxu0 0
    %2240 = vmatpush1.bf16.msra.mxu0 0
    %2241 = vmatprep.subr.bf16.mxu0 0
    %2242 = vmatpush1.bf16.msra.mxu0 0
    %2243 = vmatprep.mubr.bf16.mxu0 0
    %2244 = vmatmul.mubr.bf16.gmra.mrb[0].mxu0 %v2146
    %v2245 = vpop.f32.mrb[0].mxu0
    %v2246 = vadd.f32 0.0, %v2245
    %v2247 = vpop.f32.mrb[0].mxu0
    %v2248 = vpop.f32.mrb[0].mxu0
    %v2249 = vpop.f32.mrb[0].mxu0
    %2250 = vdwg.mxu0
    %v2251 = vadd.f32 %v2093, %v2246
    %v2252 = vadd.s32 %v1791, 2
    %vm2253 = vcmp.eq.s32.totalorder %v1789, %v2252
    %vm2254 = vmand %vm1790, %vm2253
    %v2255 = vsel %vm2254, 1.0, 0.0
    %v2256 = vpack.c.bf16 %v2255, %v2255
    %v2258 = vsel %vm1797, %v2256, 0
    %2260 = vmatprep.subr.bf16.mxu0 0
    %2261 = vmatpush1.bf16.msra.mxu0 %v1785
    %2262 = vmatprep.subr.bf16.mxu0 0
    %2263 = vmatpush1.bf16.msra.mxu0 0
    %2264 = vmatprep.subr.bf16.mxu0 0
    %2265 = vmatpush1.bf16.msra.mxu0 0
    %2266 = vmatprep.subr.bf16.mxu0 0
    %2267 = vmatpush1.bf16.msra.mxu0 0
    %2268 = vmatprep.subr.bf16.mxu0 0
    %2269 = vmatpush1.bf16.msra.mxu0 0
    %2270 = vmatprep.subr.bf16.mxu0 0
    %2271 = vmatpush1.bf16.msra.mxu0 0
    %2272 = vmatprep.subr.bf16.mxu0 0
    %2273 = vmatpush1.bf16.msra.mxu0 0
    %2274 = vmatprep.subr.bf16.mxu0 0
    %2275 = vmatpush1.bf16.msra.mxu0 0
    %2276 = vmatprep.subr.bf16.mxu0 0
    %2277 = vmatpush1.bf16.msra.mxu0 0
    %2278 = vmatprep.subr.bf16.mxu0 0
    %2279 = vmatpush1.bf16.msra.mxu0 0
    %2280 = vmatprep.subr.bf16.mxu0 0
    %2281 = vmatpush1.bf16.msra.mxu0 0
    %2282 = vmatprep.subr.bf16.mxu0 0
    %2283 = vmatpush1.bf16.msra.mxu0 0
    %2284 = vmatprep.subr.bf16.mxu0 0
    %2285 = vmatpush1.bf16.msra.mxu0 0
    %2286 = vmatprep.subr.bf16.mxu0 0
    %2287 = vmatpush1.bf16.msra.mxu0 0
    %2288 = vmatprep.subr.bf16.mxu0 0
    %2289 = vmatpush1.bf16.msra.mxu0 0
    %2290 = vmatprep.subr.bf16.mxu0 0
    %2291 = vmatpush1.bf16.msra.mxu0 0
    %2292 = vmatprep.mubr.bf16.mxu0 0
    %2293 = vmatmul.mubr.bf16.gmra.mrb[0].mxu0 %v2258
    %v2294 = vpop.f32.mrb[0].mxu0
    %v2295 = vadd.f32 0.0, %v2294
    %v2296 = vpop.f32.mrb[0].mxu0
    %v2297 = vpop.f32.mrb[0].mxu0
    %v2298 = vpop.f32.mrb[0].mxu0
    %2299 = vdwg.mxu0
    %v2300 = vpack.c.bf16 %v2295, %v2295
    %v2301 = vld [vmem:[%s3 + $0xc0] sm:$0xf]
    %v2302 = vld [vmem:[%s3 + $0xc4] sm:$0xf]
    %v2303 = vld [vmem:[%s3 + $0xc8] sm:$0xf]
    %v2304 = vld [vmem:[%s3 + $0xcc] sm:$0xf]
    %v2305 = vld [vmem:[%s3 + $0xd0] sm:$0xf]
    %v2306 = vld [vmem:[%s3 + $0xd4] sm:$0xf]
    %v2307 = vld [vmem:[%s3 + $0xd8] sm:$0xf]
    %v2308 = vld [vmem:[%s3 + $0xdc] sm:$0xf]
    %v2309 = vld [vmem:[%s3 + $0xe0] sm:$0xf]
    %v2310 = vld [vmem:[%s3 + $0xe4] sm:$0xf]
    %v2311 = vld [vmem:[%s3 + $0xe8] sm:$0xf]
    %v2312 = vld [vmem:[%s3 + $0xec] sm:$0xf]
    %v2313 = vld [vmem:[%s3 + $0xf0] sm:$0xf]
    %v2314 = vld [vmem:[%s3 + $0xf4] sm:$0xf]
    %v2315 = vld [vmem:[%s3 + $0xf8] sm:$0xf]
    %v2316 = vld [vmem:[%s3 + $0xfc] sm:$0xf]
    %v2333 = vunpack.c.l.b16 %v2301
    %v2334 = vunpack.c.l.b16 %v2302
    %v2335 = vunpack.c.l.b16 %v2303
    %v2336 = vunpack.c.l.b16 %v2304
    %v2337 = vunpack.c.l.b16 %v2305
    %v2338 = vunpack.c.l.b16 %v2306
    %v2339 = vunpack.c.l.b16 %v2307
    %v2340 = vunpack.c.l.b16 %v2308
    %v2341 = vunpack.c.l.b16 %v2309
    %v2342 = vunpack.c.l.b16 %v2310
    %v2343 = vunpack.c.l.b16 %v2311
    %v2344 = vunpack.c.l.b16 %v2312
    %v2345 = vunpack.c.l.b16 %v2313
    %v2346 = vunpack.c.l.b16 %v2314
    %v2347 = vunpack.c.l.b16 %v2315
    %v2348 = vunpack.c.l.b16 %v2316
    %v2349 = vpack.c.b16 %v2334, %v2333
    %v2350 = vpack.c.b16 %v2336, %v2335
    %v2351 = vpack.c.b16 %v2338, %v2337
    %v2352 = vpack.c.b16 %v2340, %v2339
    %v2353 = vpack.c.b16 %v2342, %v2341
    %v2354 = vpack.c.b16 %v2344, %v2343
    %v2355 = vpack.c.b16 %v2346, %v2345
    %v2356 = vpack.c.b16 %v2348, %v2347
    %2365 = vmatprep.subr.bf16.mxu0 0
    %2366 = vmatpush1.bf16.msra.mxu0 %v2349
    %2367 = vmatprep.subr.bf16.mxu0 0
    %2368 = vmatpush1.bf16.msra.mxu0 %v2350
    %2369 = vmatprep.subr.bf16.mxu0 0
    %2370 = vmatpush1.bf16.msra.mxu0 %v2351
    %2371 = vmatprep.subr.bf16.mxu0 0
    %2372 = vmatpush1.bf16.msra.mxu0 %v2352
    %2373 = vmatprep.subr.bf16.mxu0 0
    %2374 = vmatpush1.bf16.msra.mxu0 %v2353
    %2375 = vmatprep.subr.bf16.mxu0 0
    %2376 = vmatpush1.bf16.msra.mxu0 %v2354
    %2377 = vmatprep.subr.bf16.mxu0 0
    %2378 = vmatpush1.bf16.msra.mxu0 %v2355
    %2379 = vmatprep.subr.bf16.mxu0 0
    %2380 = vmatpush1.bf16.msra.mxu0 %v2356
    %2381 = vmatprep.subr.bf16.mxu0 0
    %2382 = vmatpush1.bf16.msra.mxu0 0
    %2383 = vmatprep.subr.bf16.mxu0 0
    %2384 = vmatpush1.bf16.msra.mxu0 0
    %2385 = vmatprep.subr.bf16.mxu0 0
    %2386 = vmatpush1.bf16.msra.mxu0 0
    %2387 = vmatprep.subr.bf16.mxu0 0
    %2388 = vmatpush1.bf16.msra.mxu0 0
    %2389 = vmatprep.subr.bf16.mxu0 0
    %2390 = vmatpush1.bf16.msra.mxu0 0
    %2391 = vmatprep.subr.bf16.mxu0 0
    %2392 = vmatpush1.bf16.msra.mxu0 0
    %2393 = vmatprep.subr.bf16.mxu0 0
    %2394 = vmatpush1.bf16.msra.mxu0 0
    %2395 = vmatprep.subr.bf16.mxu0 0
    %2396 = vmatpush1.bf16.msra.mxu0 0
    %2397 = vmatprep.mubr.bf16.mxu0 0
    %2398 = vmatmul.mubr.bf16.gmra.mrb[0].mxu0 %v2300
    %v2399 = vpop.f32.mrb[0].mxu0
    %v2400 = vadd.f32 0.0, %v2399
    %v2401 = vpop.f32.mrb[0].mxu0
    %v2402 = vpop.f32.mrb[0].mxu0
    %v2403 = vpop.f32.mrb[0].mxu0
    %2404 = vdwg.mxu0
    %v2405 = vadd.f32 %v2251, %v2400
    %vm2406 = vcmp.gt.f32.partialorder %v2405, 0.0
    %v2407 = vmul.f32 %v2405, 0.2
    %v2408 = vsel %vm2406, %v2405, %v2407
    %v2409 = vrot.slane %v2408, 4
    %v2410 = vadd.f32 %v2408, %v2409
    %v2411 = vrot.slane %v2410, 2
    %v2412 = vadd.f32 %v2410, %v2411
    %v2413 = vrot.slane %v2412, 1
    %v2414 = vadd.f32 %v2412, %v2413
    %v2415 = vmul.f32 %v2408, %v2408
    %v2416 = vrot.slane %v2415, 4
    %v2417 = vadd.f32 %v2415, %v2416
    %v2418 = vrot.slane %v2417, 2
    %v2419 = vadd.f32 %v2417, %v2418
    %v2420 = vrot.slane %v2419, 1
    %v2421 = vadd.f32 %v2419, %v2420
    %v2422 = vand.u32 %v70, 31
    %v2423 = vand.u32 %v71, 31
    %v2424 = vand.u32 %v72, 31
    %v2425 = vand.u32 %v73, 31
    %v2426 = vand.u32 %v1560, 31
    %v2427 = vand.u32 %v1561, 31
    %v2428 = vand.u32 %v1562, 31
    %v2429 = vand.u32 %v1563, 31
    %v2430 = vand.u32 %v1564, 31
    %v2431 = vand.u32 %v1565, 31
    %v2432 = vand.u32 %v1566, 31
    %v2433 = vand.u32 %v1567, 31
    %v2434 = vand.u32 %v1568, 31
    %v2435 = vand.u32 %v1569, 31
    %v2436 = vand.u32 %v1570, 31
    %v2437 = vand.u32 %v1571, 31
    %vm2438 = vcmp.eq.s32.totalorder %v2422, %v85
    %vm2439 = vcmp.eq.s32.totalorder %v2423, %v85
    %vm2440 = vcmp.eq.s32.totalorder %v2424, %v85
    %vm2441 = vcmp.eq.s32.totalorder %v2425, %v85
    %vm2442 = vcmp.eq.s32.totalorder %v2426, %v85
    %vm2443 = vcmp.eq.s32.totalorder %v2427, %v85
    %vm2444 = vcmp.eq.s32.totalorder %v2428, %v85
    %vm2445 = vcmp.eq.s32.totalorder %v2429, %v85
    %vm2446 = vcmp.eq.s32.totalorder %v2430, %v85
    %vm2447 = vcmp.eq.s32.totalorder %v2431, %v85
    %vm2448 = vcmp.eq.s32.totalorder %v2432, %v85
    %vm2449 = vcmp.eq.s32.totalorder %v2433, %v85
    %vm2450 = vcmp.eq.s32.totalorder %v2434, %v85
    %vm2451 = vcmp.eq.s32.totalorder %v2435, %v85
    %vm2452 = vcmp.eq.s32.totalorder %v2436, %v85
    %vm2453 = vcmp.eq.s32.totalorder %v2437, %v85
    %v2454 = vsel %vm2438, 1.0, 0.0
    %v2455 = vsel %vm2439, 1.0, 0.0
    %v2456 = vsel %vm2440, 1.0, 0.0
    %v2457 = vsel %vm2441, 1.0, 0.0
    %v2458 = vsel %vm2442, 1.0, 0.0
    %v2459 = vsel %vm2443, 1.0, 0.0
    %v2460 = vsel %vm2444, 1.0, 0.0
    %v2461 = vsel %vm2445, 1.0, 0.0
    %v2462 = vsel %vm2446, 1.0, 0.0
    %v2463 = vsel %vm2447, 1.0, 0.0
    %v2464 = vsel %vm2448, 1.0, 0.0
    %v2465 = vsel %vm2449, 1.0, 0.0
    %v2466 = vsel %vm2450, 1.0, 0.0
    %v2467 = vsel %vm2451, 1.0, 0.0
    %v2468 = vsel %vm2452, 1.0, 0.0
    %v2469 = vsel %vm2453, 1.0, 0.0
    %2470 = vmatprep.subr.mxu0 0.0
    %2471 = vmatpush1.msra.mxu0 %v2454
    %2472 = vmatprep.subr.mxu0 0.0
    %2473 = vmatpush1.msra.mxu0 %v2455
    %2474 = vmatprep.subr.mxu0 0.0
    %2475 = vmatpush1.msra.mxu0 %v2456
    %2476 = vmatprep.subr.mxu0 0.0
    %2477 = vmatpush1.msra.mxu0 %v2457
    %2478 = vmatprep.subr.mxu0 0.0
    %2479 = vmatpush1.msra.mxu0 %v2458
    %2480 = vmatprep.subr.mxu0 0.0
    %2481 = vmatpush1.msra.mxu0 %v2459
    %2482 = vmatprep.subr.mxu0 0.0
    %2483 = vmatpush1.msra.mxu0 %v2460
    %2484 = vmatprep.subr.mxu0 0.0
    %2485 = vmatpush1.msra.mxu0 %v2461
    %2486 = vmatprep.subr.mxu0 0.0
    %2487 = vmatpush1.msra.mxu0 %v2462
    %2488 = vmatprep.subr.mxu0 0.0
    %2489 = vmatpush1.msra.mxu0 %v2463
    %2490 = vmatprep.subr.mxu0 0.0
    %2491 = vmatpush1.msra.mxu0 %v2464
    %2492 = vmatprep.subr.mxu0 0.0
    %2493 = vmatpush1.msra.mxu0 %v2465
    %2494 = vmatprep.subr.mxu0 0.0
    %2495 = vmatpush1.msra.mxu0 %v2466
    %2496 = vmatprep.subr.mxu0 0.0
    %2497 = vmatpush1.msra.mxu0 %v2467
    %2498 = vmatprep.subr.mxu0 0.0
    %2499 = vmatpush1.msra.mxu0 %v2468
    %2500 = vmatprep.subr.mxu0 0.0
    %2501 = vmatpush1.msra.mxu0 %v2469
    %2502 = vmatprep.subr.mxu0 0.0
    %2503 = vmatpush1.msra.mxu0 0.0
    %2504 = vmatprep.subr.mxu0 0.0
    %2505 = vmatpush1.msra.mxu0 0.0
    %2506 = vmatprep.subr.mxu0 0.0
    %2507 = vmatpush1.msra.mxu0 0.0
    %2508 = vmatprep.subr.mxu0 0.0
    %2509 = vmatpush1.msra.mxu0 0.0
    %2510 = vmatprep.subr.mxu0 0.0
    %2511 = vmatpush1.msra.mxu0 0.0
    %2512 = vmatprep.subr.mxu0 0.0
    %2513 = vmatpush1.msra.mxu0 0.0
    %2514 = vmatprep.subr.mxu0 0.0
    %2515 = vmatpush1.msra.mxu0 0.0
    %2516 = vmatprep.subr.mxu0 0.0
    %2517 = vmatpush1.msra.mxu0 0.0
    %2518 = vmatprep.subr.mxu0 0.0
    %2519 = vmatpush1.msra.mxu0 0.0
    %2520 = vmatprep.subr.mxu0 0.0
    %2521 = vmatpush1.msra.mxu0 0.0
    %2522 = vmatprep.subr.mxu0 0.0
    %2523 = vmatpush1.msra.mxu0 0.0
    %2524 = vmatprep.subr.mxu0 0.0
    %2525 = vmatpush1.msra.mxu0 0.0
    %2526 = vmatprep.subr.mxu0 0.0
    %2527 = vmatpush1.msra.mxu0 0.0
    %2528 = vmatprep.subr.mxu0 0.0
    %2529 = vmatpush1.msra.mxu0 0.0
    %2530 = vmatprep.subr.mxu0 0.0
    %2531 = vmatpush1.msra.mxu0 0.0
    %2532 = vmatprep.subr.mxu0 0.0
    %2533 = vmatpush1.msra.mxu0 0.0
    %2534 = vmatprep.mubr.f32.mxu0 0.0
    %2535 = vmatmul.mubr.f32.gmra.mrb[0].mxu0 %v2414
    %v2536 = vpop.f32.mrb[0].mxu0
    %v2537 = vadd.f32 0.0, %v2536
    %v2538 = vpop.f32.mrb[0].mxu0
    %2539 = vdwg.mxu0
    %v2540 = vmul.f32 %v2537, 0.03125
    %2541 = vmatprep.subr.mxu0 0.0
    %2542 = vmatpush1.msra.mxu0 %v2454
    %2543 = vmatprep.subr.mxu0 0.0
    %2544 = vmatpush1.msra.mxu0 %v2455
    %2545 = vmatprep.subr.mxu0 0.0
    %2546 = vmatpush1.msra.mxu0 %v2456
    %2547 = vmatprep.subr.mxu0 0.0
    %2548 = vmatpush1.msra.mxu0 %v2457
    %2549 = vmatprep.subr.mxu0 0.0
    %2550 = vmatpush1.msra.mxu0 %v2458
    %2551 = vmatprep.subr.mxu0 0.0
    %2552 = vmatpush1.msra.mxu0 %v2459
    %2553 = vmatprep.subr.mxu0 0.0
    %2554 = vmatpush1.msra.mxu0 %v2460
    %2555 = vmatprep.subr.mxu0 0.0
    %2556 = vmatpush1.msra.mxu0 %v2461
    %2557 = vmatprep.subr.mxu0 0.0
    %2558 = vmatpush1.msra.mxu0 %v2462
    %2559 = vmatprep.subr.mxu0 0.0
    %2560 = vmatpush1.msra.mxu0 %v2463
    %2561 = vmatprep.subr.mxu0 0.0
    %2562 = vmatpush1.msra.mxu0 %v2464
    %2563 = vmatprep.subr.mxu0 0.0
    %2564 = vmatpush1.msra.mxu0 %v2465
    %2565 = vmatprep.subr.mxu0 0.0
    %2566 = vmatpush1.msra.mxu0 %v2466
    %2567 = vmatprep.subr.mxu0 0.0
    %2568 = vmatpush1.msra.mxu0 %v2467
    %2569 = vmatprep.subr.mxu0 0.0
    %2570 = vmatpush1.msra.mxu0 %v2468
    %2571 = vmatprep.subr.mxu0 0.0
    %2572 = vmatpush1.msra.mxu0 %v2469
    %2573 = vmatprep.subr.mxu0 0.0
    %2574 = vmatpush1.msra.mxu0 0.0
    %2575 = vmatprep.subr.mxu0 0.0
    %2576 = vmatpush1.msra.mxu0 0.0
    %2577 = vmatprep.subr.mxu0 0.0
    %2578 = vmatpush1.msra.mxu0 0.0
    %2579 = vmatprep.subr.mxu0 0.0
    %2580 = vmatpush1.msra.mxu0 0.0
    %2581 = vmatprep.subr.mxu0 0.0
    %2582 = vmatpush1.msra.mxu0 0.0
    %2583 = vmatprep.subr.mxu0 0.0
    %2584 = vmatpush1.msra.mxu0 0.0
    %2585 = vmatprep.subr.mxu0 0.0
    %2586 = vmatpush1.msra.mxu0 0.0
    %2587 = vmatprep.subr.mxu0 0.0
    %2588 = vmatpush1.msra.mxu0 0.0
    %2589 = vmatprep.subr.mxu0 0.0
    %2590 = vmatpush1.msra.mxu0 0.0
    %2591 = vmatprep.subr.mxu0 0.0
    %2592 = vmatpush1.msra.mxu0 0.0
    %2593 = vmatprep.subr.mxu0 0.0
    %2594 = vmatpush1.msra.mxu0 0.0
    %2595 = vmatprep.subr.mxu0 0.0
    %2596 = vmatpush1.msra.mxu0 0.0
    %2597 = vmatprep.subr.mxu0 0.0
    %2598 = vmatpush1.msra.mxu0 0.0
    %2599 = vmatprep.subr.mxu0 0.0
    %2600 = vmatpush1.msra.mxu0 0.0
    %2601 = vmatprep.subr.mxu0 0.0
    %2602 = vmatpush1.msra.mxu0 0.0
    %2603 = vmatprep.subr.mxu0 0.0
    %2604 = vmatpush1.msra.mxu0 0.0
    %2605 = vmatprep.mubr.f32.mxu0 0.0
    %2606 = vmatmul.mubr.f32.gmra.mrb[0].mxu0 %v2421
    %v2607 = vpop.f32.mrb[0].mxu0
    %v2608 = vadd.f32 0.0, %v2607
    %v2609 = vpop.f32.mrb[0].mxu0
    %2610 = vdwg.mxu0
    %v2611 = vmul.f32 %v2608, 0.03125
    %v2612 = vmul.f32 %v2540, %v2540
    %v2613 = vsub.f32 %v2611, %v2612
    %v2614 = vadd.f32 %v2613, 1e-05
    %v2615 = vrsqrt.pop %v2614
    %v2616 = vlaneseq
    %v2617 = vshrl.u32 %v2616, 7
    %v2618 = vsub.s32 0, %v2617
    %v2619 = vrot.slane %v2540, %v2618
    %v2620 = vsub.f32 %v2408, %v2619
    %v2621 = vld [vmem:[%s7] sm:$0x1]
    %v2622 = vmul.f32 %v2615, %v2621
    %v2623 = vlaneseq
    %v2624 = vshrl.u32 %v2623, 7
    %v2625 = vsub.s32 0, %v2624
    %v2626 = vrot.slane %v2622, %v2625
    %v2627 = vmul.f32 %v2620, %v2626
    %v2628 = vld [vmem:[%s8] sm:$0x1]
    %v2630 = vlaneseq
    %v2631 = vshrl.u32 %v2630, 7
    %v2632 = vsub.s32 0, %v2631
    %v2633 = vrot.slane %v2628, %v2632
    %v2635 = vadd.f32 %v2627, %v2633
    %v2636 = vpack.c.bf16 %v2635, %v2635
    %v2637 = vshra.s32 %v70, 1
    %v2638 = vand.u32 %v70, 1
    %v2639 = vshra.s32 %v75, 2
    %v2640 = vand.u32 %v75, 3
    %vm2641 = vcmp.eq.s32.totalorder %v2639, %v2637
    %v2642 = vmul.u32 %v2638, 2
    %v2643 = vadd.s32 %v2642, 4294967295
    %vm2644 = vcmp.eq.s32.totalorder %v2640, %v2643
    %vm2645 = vmand %vm2641, %vm2644
    %v2646 = vsel %vm2645, 1.0, 0.0
    %v2647 = vpack.c.bf16 %v2646, %v2646
    %vm2648 = vcmask 64512
    %v2650 = vsel %vm2648, %v2647, 0
    %vm2652 = vcmask 1043456
    %v2654 = vsel %vm2652, %v2636, 0
    %2656 = vmatprep.subr.bf16.mxu0 0
    %2657 = vmatpush1.bf16.msra.mxu0 %v2654
    %2658 = vmatprep.subr.bf16.mxu0 0
    %2659 = vmatpush1.bf16.msra.mxu0 0
    %2660 = vmatprep.subr.bf16.mxu0 0
    %2661 = vmatpush1.bf16.msra.mxu0 0
    %2662 = vmatprep.subr.bf16.mxu0 0
    %2663 = vmatpush1.bf16.msra.mxu0 0
    %2664 = vmatprep.subr.bf16.mxu0 0
    %2665 = vmatpush1.bf16.msra.mxu0 0
    %2666 = vmatprep.subr.bf16.mxu0 0
    %2667 = vmatpush1.bf16.msra.mxu0 0
    %2668 = vmatprep.subr.bf16.mxu0 0
    %2669 = vmatpush1.bf16.msra.mxu0 0
    %2670 = vmatprep.subr.bf16.mxu0 0
    %2671 = vmatpush1.bf16.msra.mxu0 0
    %2672 = vmatprep.subr.bf16.mxu0 0
    %2673 = vmatpush1.bf16.msra.mxu0 0
    %2674 = vmatprep.subr.bf16.mxu0 0
    %2675 = vmatpush1.bf16.msra.mxu0 0
    %2676 = vmatprep.subr.bf16.mxu0 0
    %2677 = vmatpush1.bf16.msra.mxu0 0
    %2678 = vmatprep.subr.bf16.mxu0 0
    %2679 = vmatpush1.bf16.msra.mxu0 0
    %2680 = vmatprep.subr.bf16.mxu0 0
    %2681 = vmatpush1.bf16.msra.mxu0 0
    %2682 = vmatprep.subr.bf16.mxu0 0
    %2683 = vmatpush1.bf16.msra.mxu0 0
    %2684 = vmatprep.subr.bf16.mxu0 0
    %2685 = vmatpush1.bf16.msra.mxu0 0
    %2686 = vmatprep.subr.bf16.mxu0 0
    %2687 = vmatpush1.bf16.msra.mxu0 0
    %2688 = vmatprep.mubr.bf16.mxu0 0
    %2689 = vmatmul.mubr.bf16.gmra.mrb[0].mxu0 %v2650
    %v2690 = vpop.f32.mrb[0].mxu0
    %v2691 = vadd.f32 0.0, %v2690
    %v2692 = vpop.f32.mrb[0].mxu0
    %v2693 = vpop.f32.mrb[0].mxu0
    %v2694 = vpop.f32.mrb[0].mxu0
    %2695 = vdwg.mxu0
    %v2696 = vpack.c.bf16 %v2691, %v2691
    %v2697 = vld [vmem:[#allocation3] sm:$0xf]
    %v2698 = vld [vmem:[#allocation3 + $0x4] sm:$0xf]
    %v2699 = vld [vmem:[#allocation3 + $0x8] sm:$0xf]
    %v2700 = vld [vmem:[#allocation3 + $0xc] sm:$0xf]
    %v2701 = vld [vmem:[#allocation3 + $0x10] sm:$0xf]
    %v2702 = vld [vmem:[#allocation3 + $0x14] sm:$0xf]
    %v2703 = vld [vmem:[#allocation3 + $0x18] sm:$0xf]
    %v2704 = vld [vmem:[#allocation3 + $0x1c] sm:$0xf]
    %v2705 = vld [vmem:[#allocation3 + $0x20] sm:$0xf]
    %v2706 = vld [vmem:[#allocation3 + $0x24] sm:$0xf]
    %v2707 = vld [vmem:[#allocation3 + $0x28] sm:$0xf]
    %v2708 = vld [vmem:[#allocation3 + $0x2c] sm:$0xf]
    %v2709 = vld [vmem:[#allocation3 + $0x30] sm:$0xf]
    %v2710 = vld [vmem:[#allocation3 + $0x34] sm:$0xf]
    %v2711 = vld [vmem:[#allocation3 + $0x38] sm:$0xf]
    %v2712 = vld [vmem:[#allocation3 + $0x3c] sm:$0xf]
    %vm2713 = vcmp.eq.s32.totalorder %v2640, %v2642
    %vm2714 = vmand %vm2641, %vm2713
    %v2715 = vsel %vm2714, 1.0, 0.0
    %v2716 = vpack.c.bf16 %v2715, %v2715
    %v2718 = vsel %vm2648, %v2716, 0
    %2720 = vmatprep.subr.bf16.mxu0 0
    %2721 = vmatpush1.bf16.msra.mxu0 %v2654
    %2722 = vmatprep.subr.bf16.mxu0 0
    %2723 = vmatpush1.bf16.msra.mxu0 0
    %2724 = vmatprep.subr.bf16.mxu0 0
    %2725 = vmatpush1.bf16.msra.mxu0 0
    %2726 = vmatprep.subr.bf16.mxu0 0
    %2727 = vmatpush1.bf16.msra.mxu0 0
    %2728 = vmatprep.subr.bf16.mxu0 0
    %2729 = vmatpush1.bf16.msra.mxu0 0
    %2730 = vmatprep.subr.bf16.mxu0 0
    %2731 = vmatpush1.bf16.msra.mxu0 0
    %2732 = vmatprep.subr.bf16.mxu0 0
    %2733 = vmatpush1.bf16.msra.mxu0 0
    %2734 = vmatprep.subr.bf16.mxu0 0
    %2735 = vmatpush1.bf16.msra.mxu0 0
    %2736 = vmatprep.subr.bf16.mxu0 0
    %2737 = vmatpush1.bf16.msra.mxu0 0
    %2738 = vmatprep.subr.bf16.mxu0 0
    %2739 = vmatpush1.bf16.msra.mxu0 0
    %2740 = vmatprep.subr.bf16.mxu0 0
    %2741 = vmatpush1.bf16.msra.mxu0 0
    %2742 = vmatprep.subr.bf16.mxu0 0
    %2743 = vmatpush1.bf16.msra.mxu0 0
    %2744 = vmatprep.subr.bf16.mxu0 0
    %2745 = vmatpush1.bf16.msra.mxu0 0
    %2746 = vmatprep.subr.bf16.mxu0 0
    %2747 = vmatpush1.bf16.msra.mxu0 0
    %2748 = vmatprep.subr.bf16.mxu0 0
    %2749 = vmatpush1.bf16.msra.mxu0 0
    %2750 = vmatprep.subr.bf16.mxu0 0
    %2751 = vmatpush1.bf16.msra.mxu0 0
    %2752 = vmatprep.mubr.bf16.mxu0 0
    %2753 = vmatmul.mubr.bf16.gmra.mrb[0].mxu0 %v2718
    %v2754 = vpop.f32.mrb[0].mxu0
    %v2755 = vadd.f32 0.0, %v2754
    %v2756 = vpop.f32.mrb[0].mxu0
    %v2757 = vpop.f32.mrb[0].mxu0
    %v2758 = vpop.f32.mrb[0].mxu0
    %2759 = vdwg.mxu0
    %v2760 = vpack.c.bf16 %v2755, %v2755
    %v2761 = vld [vmem:[#allocation3 + $0x40] sm:$0xf]
    %v2762 = vld [vmem:[#allocation3 + $0x44] sm:$0xf]
    %v2763 = vld [vmem:[#allocation3 + $0x48] sm:$0xf]
    %v2764 = vld [vmem:[#allocation3 + $0x4c] sm:$0xf]
    %v2765 = vld [vmem:[#allocation3 + $0x50] sm:$0xf]
    %v2766 = vld [vmem:[#allocation3 + $0x54] sm:$0xf]
    %v2767 = vld [vmem:[#allocation3 + $0x58] sm:$0xf]
    %v2768 = vld [vmem:[#allocation3 + $0x5c] sm:$0xf]
    %v2769 = vld [vmem:[#allocation3 + $0x60] sm:$0xf]
    %v2770 = vld [vmem:[#allocation3 + $0x64] sm:$0xf]
    %v2771 = vld [vmem:[#allocation3 + $0x68] sm:$0xf]
    %v2772 = vld [vmem:[#allocation3 + $0x6c] sm:$0xf]
    %v2773 = vld [vmem:[#allocation3 + $0x70] sm:$0xf]
    %v2774 = vld [vmem:[#allocation3 + $0x74] sm:$0xf]
    %v2775 = vld [vmem:[#allocation3 + $0x78] sm:$0xf]
    %v2776 = vld [vmem:[#allocation3 + $0x7c] sm:$0xf]
    %v2793 = vunpack.c.l.b16 %v2761
    %v2794 = vunpack.c.l.b16 %v2762
    %v2795 = vunpack.c.l.b16 %v2763
    %v2796 = vunpack.c.l.b16 %v2764
    %v2797 = vunpack.c.l.b16 %v2765
    %v2798 = vunpack.c.l.b16 %v2766
    %v2799 = vunpack.c.l.b16 %v2767
    %v2800 = vunpack.c.l.b16 %v2768
    %v2801 = vunpack.c.l.b16 %v2769
    %v2802 = vunpack.c.l.b16 %v2770
    %v2803 = vunpack.c.l.b16 %v2771
    %v2804 = vunpack.c.l.b16 %v2772
    %v2805 = vunpack.c.l.b16 %v2773
    %v2806 = vunpack.c.l.b16 %v2774
    %v2807 = vunpack.c.l.b16 %v2775
    %v2808 = vunpack.c.l.b16 %v2776
    %v2809 = vpack.c.b16 %v2794, %v2793
    %v2810 = vpack.c.b16 %v2796, %v2795
    %v2811 = vpack.c.b16 %v2798, %v2797
    %v2812 = vpack.c.b16 %v2800, %v2799
    %v2813 = vpack.c.b16 %v2802, %v2801
    %v2814 = vpack.c.b16 %v2804, %v2803
    %v2815 = vpack.c.b16 %v2806, %v2805
    %v2816 = vpack.c.b16 %v2808, %v2807
    %2825 = vmatprep.subr.bf16.mxu0 0
    %2826 = vmatpush1.bf16.msra.mxu0 %v2809
    %2827 = vmatprep.subr.bf16.mxu0 0
    %2828 = vmatpush1.bf16.msra.mxu0 %v2810
    %2829 = vmatprep.subr.bf16.mxu0 0
    %2830 = vmatpush1.bf16.msra.mxu0 %v2811
    %2831 = vmatprep.subr.bf16.mxu0 0
    %2832 = vmatpush1.bf16.msra.mxu0 %v2812
    %2833 = vmatprep.subr.bf16.mxu0 0
    %2834 = vmatpush1.bf16.msra.mxu0 %v2813
    %2835 = vmatprep.subr.bf16.mxu0 0
    %2836 = vmatpush1.bf16.msra.mxu0 %v2814
    %2837 = vmatprep.subr.bf16.mxu0 0
    %2838 = vmatpush1.bf16.msra.mxu0 %v2815
    %2839 = vmatprep.subr.bf16.mxu0 0
    %2840 = vmatpush1.bf16.msra.mxu0 %v2816
    %2841 = vmatprep.subr.bf16.mxu0 0
    %2842 = vmatpush1.bf16.msra.mxu0 0
    %2843 = vmatprep.subr.bf16.mxu0 0
    %2844 = vmatpush1.bf16.msra.mxu0 0
    %2845 = vmatprep.subr.bf16.mxu0 0
    %2846 = vmatpush1.bf16.msra.mxu0 0
    %2847 = vmatprep.subr.bf16.mxu0 0
    %2848 = vmatpush1.bf16.msra.mxu0 0
    %2849 = vmatprep.subr.bf16.mxu0 0
    %2850 = vmatpush1.bf16.msra.mxu0 0
    %2851 = vmatprep.subr.bf16.mxu0 0
    %2852 = vmatpush1.bf16.msra.mxu0 0
    %2853 = vmatprep.subr.bf16.mxu0 0
    %2854 = vmatpush1.bf16.msra.mxu0 0
    %2855 = vmatprep.subr.bf16.mxu0 0
    %2856 = vmatpush1.bf16.msra.mxu0 0
    %2857 = vmatprep.mubr.bf16.mxu0 0
    %2858 = vmatmul.mubr.bf16.gmra.mrb[0].mxu0 %v2760
    %v2859 = vpop.f32.mrb[0].mxu0
    %v2860 = vadd.f32 0.0, %v2859
    %v2861 = vpop.f32.mrb[0].mxu0
    %v2862 = vpop.f32.mrb[0].mxu0
    %v2863 = vpop.f32.mrb[0].mxu0
    %2864 = vdwg.mxu0
    %v2881 = vunpack.c.l.b16 %v2697
    %v2882 = vunpack.c.l.b16 %v2698
    %v2883 = vunpack.c.l.b16 %v2699
    %v2884 = vunpack.c.l.b16 %v2700
    %v2885 = vunpack.c.l.b16 %v2701
    %v2886 = vunpack.c.l.b16 %v2702
    %v2887 = vunpack.c.l.b16 %v2703
    %v2888 = vunpack.c.l.b16 %v2704
    %v2889 = vunpack.c.l.b16 %v2705
    %v2890 = vunpack.c.l.b16 %v2706
    %v2891 = vunpack.c.l.b16 %v2707
    %v2892 = vunpack.c.l.b16 %v2708
    %v2893 = vunpack.c.l.b16 %v2709
    %v2894 = vunpack.c.l.b16 %v2710
    %v2895 = vunpack.c.l.b16 %v2711
    %v2896 = vunpack.c.l.b16 %v2712
    %v2897 = vpack.c.b16 %v2882, %v2881
    %v2898 = vpack.c.b16 %v2884, %v2883
    %v2899 = vpack.c.b16 %v2886, %v2885
    %v2900 = vpack.c.b16 %v2888, %v2887
    %v2901 = vpack.c.b16 %v2890, %v2889
    %v2902 = vpack.c.b16 %v2892, %v2891
    %v2903 = vpack.c.b16 %v2894, %v2893
    %v2904 = vpack.c.b16 %v2896, %v2895
    %2913 = vmatprep.subr.bf16.mxu0 0
    %2914 = vmatpush1.bf16.msra.mxu0 %v2897
    %2915 = vmatprep.subr.bf16.mxu0 0
    %2916 = vmatpush1.bf16.msra.mxu0 %v2898
    %2917 = vmatprep.subr.bf16.mxu0 0
    %2918 = vmatpush1.bf16.msra.mxu0 %v2899
    %2919 = vmatprep.subr.bf16.mxu0 0
    %2920 = vmatpush1.bf16.msra.mxu0 %v2900
    %2921 = vmatprep.subr.bf16.mxu0 0
    %2922 = vmatpush1.bf16.msra.mxu0 %v2901
    %2923 = vmatprep.subr.bf16.mxu0 0
    %2924 = vmatpush1.bf16.msra.mxu0 %v2902
    %2925 = vmatprep.subr.bf16.mxu0 0
    %2926 = vmatpush1.bf16.msra.mxu0 %v2903
    %2927 = vmatprep.subr.bf16.mxu0 0
    %2928 = vmatpush1.bf16.msra.mxu0 %v2904
    %2929 = vmatprep.subr.bf16.mxu0 0
    %2930 = vmatpush1.bf16.msra.mxu0 0
    %2931 = vmatprep.subr.bf16.mxu0 0
    %2932 = vmatpush1.bf16.msra.mxu0 0
    %2933 = vmatprep.subr.bf16.mxu0 0
    %2934 = vmatpush1.bf16.msra.mxu0 0
    %2935 = vmatprep.subr.bf16.mxu0 0
    %2936 = vmatpush1.bf16.msra.mxu0 0
    %2937 = vmatprep.subr.bf16.mxu0 0
    %2938 = vmatpush1.bf16.msra.mxu0 0
    %2939 = vmatprep.subr.bf16.mxu0 0
    %2940 = vmatpush1.bf16.msra.mxu0 0
    %2941 = vmatprep.subr.bf16.mxu0 0
    %2942 = vmatpush1.bf16.msra.mxu0 0
    %2943 = vmatprep.subr.bf16.mxu0 0
    %2944 = vmatpush1.bf16.msra.mxu0 0
    %2945 = vmatprep.mubr.bf16.mxu0 0
    %2946 = vmatmul.mubr.bf16.gmra.mrb[0].mxu0 %v2696
    %v2947 = vpop.f32.mrb[0].mxu0
    %v2948 = vadd.f32 %v2860, %v2947
    %v2949 = vpop.f32.mrb[0].mxu0
    %v2950 = vpop.f32.mrb[0].mxu0
    %v2951 = vpop.f32.mrb[0].mxu0
    %2952 = vdwg.mxu0
    %v2953 = vadd.s32 %v2642, 1
    %vm2954 = vcmp.eq.s32.totalorder %v2640, %v2953
    %vm2955 = vmand %vm2641, %vm2954
    %v2956 = vsel %vm2955, 1.0, 0.0
    %v2957 = vpack.c.bf16 %v2956, %v2956
    %v2959 = vsel %vm2648, %v2957, 0
    %2961 = vmatprep.subr.bf16.mxu0 0
    %2962 = vmatpush1.bf16.msra.mxu0 %v2654
    %2963 = vmatprep.subr.bf16.mxu0 0
    %2964 = vmatpush1.bf16.msra.mxu0 0
    %2965 = vmatprep.subr.bf16.mxu0 0
    %2966 = vmatpush1.bf16.msra.mxu0 0
    %2967 = vmatprep.subr.bf16.mxu0 0
    %2968 = vmatpush1.bf16.msra.mxu0 0
    %2969 = vmatprep.subr.bf16.mxu0 0
    %2970 = vmatpush1.bf16.msra.mxu0 0
    %2971 = vmatprep.subr.bf16.mxu0 0
    %2972 = vmatpush1.bf16.msra.mxu0 0
    %2973 = vmatprep.subr.bf16.mxu0 0
    %2974 = vmatpush1.bf16.msra.mxu0 0
    %2975 = vmatprep.subr.bf16.mxu0 0
    %2976 = vmatpush1.bf16.msra.mxu0 0
    %2977 = vmatprep.subr.bf16.mxu0 0
    %2978 = vmatpush1.bf16.msra.mxu0 0
    %2979 = vmatprep.subr.bf16.mxu0 0
    %2980 = vmatpush1.bf16.msra.mxu0 0
    %2981 = vmatprep.subr.bf16.mxu0 0
    %2982 = vmatpush1.bf16.msra.mxu0 0
    %2983 = vmatprep.subr.bf16.mxu0 0
    %2984 = vmatpush1.bf16.msra.mxu0 0
    %2985 = vmatprep.subr.bf16.mxu0 0
    %2986 = vmatpush1.bf16.msra.mxu0 0
    %2987 = vmatprep.subr.bf16.mxu0 0
    %2988 = vmatpush1.bf16.msra.mxu0 0
    %2989 = vmatprep.subr.bf16.mxu0 0
    %2990 = vmatpush1.bf16.msra.mxu0 0
    %2991 = vmatprep.subr.bf16.mxu0 0
    %2992 = vmatpush1.bf16.msra.mxu0 0
    %2993 = vmatprep.mubr.bf16.mxu0 0
    %2994 = vmatmul.mubr.bf16.gmra.mrb[0].mxu0 %v2959
    %v2995 = vpop.f32.mrb[0].mxu0
    %v2996 = vadd.f32 0.0, %v2995
    %v2997 = vpop.f32.mrb[0].mxu0
    %v2998 = vpop.f32.mrb[0].mxu0
    %v2999 = vpop.f32.mrb[0].mxu0
    %3000 = vdwg.mxu0
    %v3001 = vpack.c.bf16 %v2996, %v2996
    %v3002 = vld [vmem:[#allocation3 + $0x80] sm:$0xf]
    %v3003 = vld [vmem:[#allocation3 + $0x84] sm:$0xf]
    %v3004 = vld [vmem:[#allocation3 + $0x88] sm:$0xf]
    %v3005 = vld [vmem:[#allocation3 + $0x8c] sm:$0xf]
    %v3006 = vld [vmem:[#allocation3 + $0x90] sm:$0xf]
    %v3007 = vld [vmem:[#allocation3 + $0x94] sm:$0xf]
    %v3008 = vld [vmem:[#allocation3 + $0x98] sm:$0xf]
    %v3009 = vld [vmem:[#allocation3 + $0x9c] sm:$0xf]
    %v3010 = vld [vmem:[#allocation3 + $0xa0] sm:$0xf]
    %v3011 = vld [vmem:[#allocation3 + $0xa4] sm:$0xf]
    %v3012 = vld [vmem:[#allocation3 + $0xa8] sm:$0xf]
    %v3013 = vld [vmem:[#allocation3 + $0xac] sm:$0xf]
    %v3014 = vld [vmem:[#allocation3 + $0xb0] sm:$0xf]
    %v3015 = vld [vmem:[#allocation3 + $0xb4] sm:$0xf]
    %v3016 = vld [vmem:[#allocation3 + $0xb8] sm:$0xf]
    %v3017 = vld [vmem:[#allocation3 + $0xbc] sm:$0xf]
    %v3034 = vunpack.c.l.b16 %v3002
    %v3035 = vunpack.c.l.b16 %v3003
    %v3036 = vunpack.c.l.b16 %v3004
    %v3037 = vunpack.c.l.b16 %v3005
    %v3038 = vunpack.c.l.b16 %v3006
    %v3039 = vunpack.c.l.b16 %v3007
    %v3040 = vunpack.c.l.b16 %v3008
    %v3041 = vunpack.c.l.b16 %v3009
    %v3042 = vunpack.c.l.b16 %v3010
    %v3043 = vunpack.c.l.b16 %v3011
    %v3044 = vunpack.c.l.b16 %v3012
    %v3045 = vunpack.c.l.b16 %v3013
    %v3046 = vunpack.c.l.b16 %v3014
    %v3047 = vunpack.c.l.b16 %v3015
    %v3048 = vunpack.c.l.b16 %v3016
    %v3049 = vunpack.c.l.b16 %v3017
    %v3050 = vpack.c.b16 %v3035, %v3034
    %v3051 = vpack.c.b16 %v3037, %v3036
    %v3052 = vpack.c.b16 %v3039, %v3038
    %v3053 = vpack.c.b16 %v3041, %v3040
    %v3054 = vpack.c.b16 %v3043, %v3042
    %v3055 = vpack.c.b16 %v3045, %v3044
    %v3056 = vpack.c.b16 %v3047, %v3046
    %v3057 = vpack.c.b16 %v3049, %v3048
    %3066 = vmatprep.subr.bf16.mxu0 0
    %3067 = vmatpush1.bf16.msra.mxu0 %v3050
    %3068 = vmatprep.subr.bf16.mxu0 0
    %3069 = vmatpush1.bf16.msra.mxu0 %v3051
    %3070 = vmatprep.subr.bf16.mxu0 0
    %3071 = vmatpush1.bf16.msra.mxu0 %v3052
    %3072 = vmatprep.subr.bf16.mxu0 0
    %3073 = vmatpush1.bf16.msra.mxu0 %v3053
    %3074 = vmatprep.subr.bf16.mxu0 0
    %3075 = vmatpush1.bf16.msra.mxu0 %v3054
    %3076 = vmatprep.subr.bf16.mxu0 0
    %3077 = vmatpush1.bf16.msra.mxu0 %v3055
    %3078 = vmatprep.subr.bf16.mxu0 0
    %3079 = vmatpush1.bf16.msra.mxu0 %v3056
    %3080 = vmatprep.subr.bf16.mxu0 0
    %3081 = vmatpush1.bf16.msra.mxu0 %v3057
    %3082 = vmatprep.subr.bf16.mxu0 0
    %3083 = vmatpush1.bf16.msra.mxu0 0
    %3084 = vmatprep.subr.bf16.mxu0 0
    %3085 = vmatpush1.bf16.msra.mxu0 0
    %3086 = vmatprep.subr.bf16.mxu0 0
    %3087 = vmatpush1.bf16.msra.mxu0 0
    %3088 = vmatprep.subr.bf16.mxu0 0
    %3089 = vmatpush1.bf16.msra.mxu0 0
    %3090 = vmatprep.subr.bf16.mxu0 0
    %3091 = vmatpush1.bf16.msra.mxu0 0
    %3092 = vmatprep.subr.bf16.mxu0 0
    %3093 = vmatpush1.bf16.msra.mxu0 0
    %3094 = vmatprep.subr.bf16.mxu0 0
    %3095 = vmatpush1.bf16.msra.mxu0 0
    %3096 = vmatprep.subr.bf16.mxu0 0
    %3097 = vmatpush1.bf16.msra.mxu0 0
    %3098 = vmatprep.mubr.bf16.mxu0 0
    %3099 = vmatmul.mubr.bf16.gmra.mrb[0].mxu0 %v3001
    %v3100 = vpop.f32.mrb[0].mxu0
    %v3101 = vadd.f32 0.0, %v3100
    %v3102 = vpop.f32.mrb[0].mxu0
    %v3103 = vpop.f32.mrb[0].mxu0
    %v3104 = vpop.f32.mrb[0].mxu0
    %3105 = vdwg.mxu0
    %v3106 = vadd.f32 %v2948, %v3101
    %v3107 = vadd.s32 %v2642, 2
    %vm3108 = vcmp.eq.s32.totalorder %v2640, %v3107
    %vm3109 = vmand %vm2641, %vm3108
    %v3110 = vsel %vm3109, 1.0, 0.0
    %v3111 = vpack.c.bf16 %v3110, %v3110
    %v3113 = vsel %vm2648, %v3111, 0
    %3115 = vmatprep.subr.bf16.mxu0 0
    %3116 = vmatpush1.bf16.msra.mxu0 %v2654
    %3117 = vmatprep.subr.bf16.mxu0 0
    %3118 = vmatpush1.bf16.msra.mxu0 0
    %3119 = vmatprep.subr.bf16.mxu0 0
    %3120 = vmatpush1.bf16.msra.mxu0 0
    %3121 = vmatprep.subr.bf16.mxu0 0
    %3122 = vmatpush1.bf16.msra.mxu0 0
    %3123 = vmatprep.subr.bf16.mxu0 0
    %3124 = vmatpush1.bf16.msra.mxu0 0
    %3125 = vmatprep.subr.bf16.mxu0 0
    %3126 = vmatpush1.bf16.msra.mxu0 0
    %3127 = vmatprep.subr.bf16.mxu0 0
    %3128 = vmatpush1.bf16.msra.mxu0 0
    %3129 = vmatprep.subr.bf16.mxu0 0
    %3130 = vmatpush1.bf16.msra.mxu0 0
    %3131 = vmatprep.subr.bf16.mxu0 0
    %3132 = vmatpush1.bf16.msra.mxu0 0
    %3133 = vmatprep.subr.bf16.mxu0 0
    %3134 = vmatpush1.bf16.msra.mxu0 0
    %3135 = vmatprep.subr.bf16.mxu0 0
    %3136 = vmatpush1.bf16.msra.mxu0 0
    %3137 = vmatprep.subr.bf16.mxu0 0
    %3138 = vmatpush1.bf16.msra.mxu0 0
    %3139 = vmatprep.subr.bf16.mxu0 0
    %3140 = vmatpush1.bf16.msra.mxu0 0
    %3141 = vmatprep.subr.bf16.mxu0 0
    %3142 = vmatpush1.bf16.msra.mxu0 0
    %3143 = vmatprep.subr.bf16.mxu0 0
    %3144 = vmatpush1.bf16.msra.mxu0 0
    %3145 = vmatprep.subr.bf16.mxu0 0
    %3146 = vmatpush1.bf16.msra.mxu0 0
    %3147 = vmatprep.mubr.bf16.mxu0 0
    %3148 = vmatmul.mubr.bf16.gmra.mrb[0].mxu0 %v3113
    %v3149 = vpop.f32.mrb[0].mxu0
    %v3150 = vadd.f32 0.0, %v3149
    %v3151 = vpop.f32.mrb[0].mxu0
    %v3152 = vpop.f32.mrb[0].mxu0
    %v3153 = vpop.f32.mrb[0].mxu0
    %3154 = vdwg.mxu0
    %v3155 = vpack.c.bf16 %v3150, %v3150
    %v3156 = vld [vmem:[#allocation3 + $0xc0] sm:$0xf]
    %v3157 = vld [vmem:[#allocation3 + $0xc4] sm:$0xf]
    %v3158 = vld [vmem:[#allocation3 + $0xc8] sm:$0xf]
    %v3159 = vld [vmem:[#allocation3 + $0xcc] sm:$0xf]
    %v3160 = vld [vmem:[#allocation3 + $0xd0] sm:$0xf]
    %v3161 = vld [vmem:[#allocation3 + $0xd4] sm:$0xf]
    %v3162 = vld [vmem:[#allocation3 + $0xd8] sm:$0xf]
    %v3163 = vld [vmem:[#allocation3 + $0xdc] sm:$0xf]
    %v3164 = vld [vmem:[#allocation3 + $0xe0] sm:$0xf]
    %v3165 = vld [vmem:[#allocation3 + $0xe4] sm:$0xf]
    %v3166 = vld [vmem:[#allocation3 + $0xe8] sm:$0xf]
    %v3167 = vld [vmem:[#allocation3 + $0xec] sm:$0xf]
    %v3168 = vld [vmem:[#allocation3 + $0xf0] sm:$0xf]
    %v3169 = vld [vmem:[#allocation3 + $0xf4] sm:$0xf]
    %v3170 = vld [vmem:[#allocation3 + $0xf8] sm:$0xf]
    %v3171 = vld [vmem:[#allocation3 + $0xfc] sm:$0xf]
    %v3188 = vunpack.c.l.b16 %v3156
    %v3189 = vunpack.c.l.b16 %v3157
    %v3190 = vunpack.c.l.b16 %v3158
    %v3191 = vunpack.c.l.b16 %v3159
    %v3192 = vunpack.c.l.b16 %v3160
    %v3193 = vunpack.c.l.b16 %v3161
    %v3194 = vunpack.c.l.b16 %v3162
    %v3195 = vunpack.c.l.b16 %v3163
    %v3196 = vunpack.c.l.b16 %v3164
    %v3197 = vunpack.c.l.b16 %v3165
    %v3198 = vunpack.c.l.b16 %v3166
    %v3199 = vunpack.c.l.b16 %v3167
    %v3200 = vunpack.c.l.b16 %v3168
    %v3201 = vunpack.c.l.b16 %v3169
    %v3202 = vunpack.c.l.b16 %v3170
    %v3203 = vunpack.c.l.b16 %v3171
    %v3204 = vpack.c.b16 %v3189, %v3188
    %v3205 = vpack.c.b16 %v3191, %v3190
    %v3206 = vpack.c.b16 %v3193, %v3192
    %v3207 = vpack.c.b16 %v3195, %v3194
    %v3208 = vpack.c.b16 %v3197, %v3196
    %v3209 = vpack.c.b16 %v3199, %v3198
    %v3210 = vpack.c.b16 %v3201, %v3200
    %v3211 = vpack.c.b16 %v3203, %v3202
    %3220 = vmatprep.subr.bf16.mxu0 0
    %3221 = vmatpush1.bf16.msra.mxu0 %v3204
    %3222 = vmatprep.subr.bf16.mxu0 0
    %3223 = vmatpush1.bf16.msra.mxu0 %v3205
    %3224 = vmatprep.subr.bf16.mxu0 0
    %3225 = vmatpush1.bf16.msra.mxu0 %v3206
    %3226 = vmatprep.subr.bf16.mxu0 0
    %3227 = vmatpush1.bf16.msra.mxu0 %v3207
    %3228 = vmatprep.subr.bf16.mxu0 0
    %3229 = vmatpush1.bf16.msra.mxu0 %v3208
    %3230 = vmatprep.subr.bf16.mxu0 0
    %3231 = vmatpush1.bf16.msra.mxu0 %v3209
    %3232 = vmatprep.subr.bf16.mxu0 0
    %3233 = vmatpush1.bf16.msra.mxu0 %v3210
    %3234 = vmatprep.subr.bf16.mxu0 0
    %3235 = vmatpush1.bf16.msra.mxu0 %v3211
    %3236 = vmatprep.subr.bf16.mxu0 0
    %3237 = vmatpush1.bf16.msra.mxu0 0
    %3238 = vmatprep.subr.bf16.mxu0 0
    %3239 = vmatpush1.bf16.msra.mxu0 0
    %3240 = vmatprep.subr.bf16.mxu0 0
    %3241 = vmatpush1.bf16.msra.mxu0 0
    %3242 = vmatprep.subr.bf16.mxu0 0
    %3243 = vmatpush1.bf16.msra.mxu0 0
    %3244 = vmatprep.subr.bf16.mxu0 0
    %3245 = vmatpush1.bf16.msra.mxu0 0
    %3246 = vmatprep.subr.bf16.mxu0 0
    %3247 = vmatpush1.bf16.msra.mxu0 0
    %3248 = vmatprep.subr.bf16.mxu0 0
    %3249 = vmatpush1.bf16.msra.mxu0 0
    %3250 = vmatprep.subr.bf16.mxu0 0
    %3251 = vmatpush1.bf16.msra.mxu0 0
    %3252 = vmatprep.mubr.bf16.mxu0 0
    %3253 = vmatmul.mubr.bf16.gmra.mrb[0].mxu0 %v3155
    %v3254 = vpop.f32.mrb[0].mxu0
    %v3255 = vadd.f32 0.0, %v3254
    %v3256 = vpop.f32.mrb[0].mxu0
    %v3257 = vpop.f32.mrb[0].mxu0
    %v3258 = vpop.f32.mrb[0].mxu0
    %3259 = vdwg.mxu0
    %v3260 = vadd.f32 %v3106, %v3255
    %vm3261 = vcmp.gt.f32.partialorder %v3260, 0.0
    %v3262 = vmul.f32 %v3260, 0.2
    %v3263 = vsel %vm3261, %v3260, %v3262
    %v3264 = vsel %vm2652, %v3263, 0.0
    %v3265 = vrot.slane %v3264, 4
    %v3266 = vadd.f32 %v3264, %v3265
    %v3267 = vrot.slane %v3266, 2
    %v3268 = vadd.f32 %v3266, %v3267
    %v3269 = vrot.slane %v3268, 1
    %v3270 = vadd.f32 %v3268, %v3269
    %v3271 = vmul.f32 %v3263, %v3263
    %v3272 = vsel %vm2652, %v3271, 0.0
    %v3273 = vrot.slane %v3272, 4
    %v3274 = vadd.f32 %v3272, %v3273
    %v3275 = vrot.slane %v3274, 2
    %v3276 = vadd.f32 %v3274, %v3275
    %v3277 = vrot.slane %v3276, 1
    %v3278 = vadd.f32 %v3276, %v3277
    %v3279 = vand.u32 %v70, 63
    %v3280 = vand.u32 %v71, 63
    %v3281 = vand.u32 %v72, 63
    %v3282 = vand.u32 %v73, 63
    %v3283 = vand.u32 %v1560, 63
    %v3284 = vand.u32 %v1561, 63
    %v3285 = vand.u32 %v1562, 63
    %v3286 = vand.u32 %v1563, 63
    %v3287 = vand.u32 %v1564, 63
    %v3288 = vand.u32 %v1565, 63
    %v3289 = vand.u32 %v1566, 63
    %v3290 = vand.u32 %v1567, 63
    %v3291 = vand.u32 %v1568, 63
    %v3292 = vand.u32 %v1569, 63
    %v3293 = vand.u32 %v1570, 63
    %v3294 = vand.u32 %v1571, 63
    %v3295 = vand.u32 %v75, 63
    %vm3296 = vcmp.eq.s32.totalorder %v3279, %v3295
    %vm3297 = vcmp.eq.s32.totalorder %v3280, %v3295
    %vm3298 = vcmp.eq.s32.totalorder %v3281, %v3295
    %vm3299 = vcmp.eq.s32.totalorder %v3282, %v3295
    %vm3300 = vcmp.eq.s32.totalorder %v3283, %v3295
    %vm3301 = vcmp.eq.s32.totalorder %v3284, %v3295
    %vm3302 = vcmp.eq.s32.totalorder %v3285, %v3295
    %vm3303 = vcmp.eq.s32.totalorder %v3286, %v3295
    %vm3304 = vcmp.eq.s32.totalorder %v3287, %v3295
    %vm3305 = vcmp.eq.s32.totalorder %v3288, %v3295
    %vm3306 = vcmp.eq.s32.totalorder %v3289, %v3295
    %vm3307 = vcmp.eq.s32.totalorder %v3290, %v3295
    %vm3308 = vcmp.eq.s32.totalorder %v3291, %v3295
    %vm3309 = vcmp.eq.s32.totalorder %v3292, %v3295
    %vm3310 = vcmp.eq.s32.totalorder %v3293, %v3295
    %vm3311 = vcmp.eq.s32.totalorder %v3294, %v3295
    %v3312 = vsel %vm3296, 1.0, 0.0
    %v3313 = vsel %vm3297, 1.0, 0.0
    %v3314 = vsel %vm3298, 1.0, 0.0
    %v3315 = vsel %vm3299, 1.0, 0.0
    %v3316 = vsel %vm3300, 1.0, 0.0
    %v3317 = vsel %vm3301, 1.0, 0.0
    %v3318 = vsel %vm3302, 1.0, 0.0
    %v3319 = vsel %vm3303, 1.0, 0.0
    %v3320 = vsel %vm3304, 1.0, 0.0
    %v3321 = vsel %vm3305, 1.0, 0.0
    %v3322 = vsel %vm3306, 1.0, 0.0
    %v3323 = vsel %vm3307, 1.0, 0.0
    %v3324 = vsel %vm3308, 1.0, 0.0
    %v3325 = vsel %vm3309, 1.0, 0.0
    %v3326 = vsel %vm3310, 1.0, 0.0
    %v3327 = vsel %vm3311, 1.0, 0.0
    %3328 = vmatprep.subr.mxu0 0.0
    %3329 = vmatpush1.msra.mxu0 %v3312
    %3330 = vmatprep.subr.mxu0 0.0
    %3331 = vmatpush1.msra.mxu0 %v3313
    %3332 = vmatprep.subr.mxu0 0.0
    %3333 = vmatpush1.msra.mxu0 %v3314
    %3334 = vmatprep.subr.mxu0 0.0
    %3335 = vmatpush1.msra.mxu0 %v3315
    %3336 = vmatprep.subr.mxu0 0.0
    %3337 = vmatpush1.msra.mxu0 %v3316
    %3338 = vmatprep.subr.mxu0 0.0
    %3339 = vmatpush1.msra.mxu0 %v3317
    %3340 = vmatprep.subr.mxu0 0.0
    %3341 = vmatpush1.msra.mxu0 %v3318
    %3342 = vmatprep.subr.mxu0 0.0
    %3343 = vmatpush1.msra.mxu0 %v3319
    %3344 = vmatprep.subr.mxu0 0.0
    %3345 = vmatpush1.msra.mxu0 %v3320
    %3346 = vmatprep.subr.mxu0 0.0
    %3347 = vmatpush1.msra.mxu0 %v3321
    %3348 = vmatprep.subr.mxu0 0.0
    %3349 = vmatpush1.msra.mxu0 %v3322
    %3350 = vmatprep.subr.mxu0 0.0
    %3351 = vmatpush1.msra.mxu0 %v3323
    %3352 = vmatprep.subr.mxu0 0.0
    %3353 = vmatpush1.msra.mxu0 %v3324
    %3354 = vmatprep.subr.mxu0 0.0
    %3355 = vmatpush1.msra.mxu0 %v3325
    %3356 = vmatprep.subr.mxu0 0.0
    %3357 = vmatpush1.msra.mxu0 %v3326
    %3358 = vmatprep.subr.mxu0 0.0
    %3359 = vmatpush1.msra.mxu0 %v3327
    %3360 = vmatprep.subr.mxu0 0.0
    %3361 = vmatpush1.msra.mxu0 0.0
    %3362 = vmatprep.subr.mxu0 0.0
    %3363 = vmatpush1.msra.mxu0 0.0
    %3364 = vmatprep.subr.mxu0 0.0
    %3365 = vmatpush1.msra.mxu0 0.0
    %3366 = vmatprep.subr.mxu0 0.0
    %3367 = vmatpush1.msra.mxu0 0.0
    %3368 = vmatprep.subr.mxu0 0.0
    %3369 = vmatpush1.msra.mxu0 0.0
    %3370 = vmatprep.subr.mxu0 0.0
    %3371 = vmatpush1.msra.mxu0 0.0
    %3372 = vmatprep.subr.mxu0 0.0
    %3373 = vmatpush1.msra.mxu0 0.0
    %3374 = vmatprep.subr.mxu0 0.0
    %3375 = vmatpush1.msra.mxu0 0.0
    %3376 = vmatprep.subr.mxu0 0.0
    %3377 = vmatpush1.msra.mxu0 0.0
    %3378 = vmatprep.subr.mxu0 0.0
    %3379 = vmatpush1.msra.mxu0 0.0
    %3380 = vmatprep.subr.mxu0 0.0
    %3381 = vmatpush1.msra.mxu0 0.0
    %3382 = vmatprep.subr.mxu0 0.0
    %3383 = vmatpush1.msra.mxu0 0.0
    %3384 = vmatprep.subr.mxu0 0.0
    %3385 = vmatpush1.msra.mxu0 0.0
    %3386 = vmatprep.subr.mxu0 0.0
    %3387 = vmatpush1.msra.mxu0 0.0
    %3388 = vmatprep.subr.mxu0 0.0
    %3389 = vmatpush1.msra.mxu0 0.0
    %3390 = vmatprep.subr.mxu0 0.0
    %3391 = vmatpush1.msra.mxu0 0.0
    %3392 = vmatprep.mubr.f32.mxu0 0.0
    %3393 = vmatmul.mubr.f32.gmra.mrb[0].mxu0 %v3270
    %v3394 = vpop.f32.mrb[0].mxu0
    %v3395 = vadd.f32 0.0, %v3394
    %v3396 = vpop.f32.mrb[0].mxu0
    %3397 = vdwg.mxu0
    %v3398 = vmul.f32 %v3395, 0.125
    %3399 = vmatprep.subr.mxu0 0.0
    %3400 = vmatpush1.msra.mxu0 %v3312
    %3401 = vmatprep.subr.mxu0 0.0
    %3402 = vmatpush1.msra.mxu0 %v3313
    %3403 = vmatprep.subr.mxu0 0.0
    %3404 = vmatpush1.msra.mxu0 %v3314
    %3405 = vmatprep.subr.mxu0 0.0
    %3406 = vmatpush1.msra.mxu0 %v3315
    %3407 = vmatprep.subr.mxu0 0.0
    %3408 = vmatpush1.msra.mxu0 %v3316
    %3409 = vmatprep.subr.mxu0 0.0
    %3410 = vmatpush1.msra.mxu0 %v3317
    %3411 = vmatprep.subr.mxu0 0.0
    %3412 = vmatpush1.msra.mxu0 %v3318
    %3413 = vmatprep.subr.mxu0 0.0
    %3414 = vmatpush1.msra.mxu0 %v3319
    %3415 = vmatprep.subr.mxu0 0.0
    %3416 = vmatpush1.msra.mxu0 %v3320
    %3417 = vmatprep.subr.mxu0 0.0
    %3418 = vmatpush1.msra.mxu0 %v3321
    %3419 = vmatprep.subr.mxu0 0.0
    %3420 = vmatpush1.msra.mxu0 %v3322
    %3421 = vmatprep.subr.mxu0 0.0
    %3422 = vmatpush1.msra.mxu0 %v3323
    %3423 = vmatprep.subr.mxu0 0.0
    %3424 = vmatpush1.msra.mxu0 %v3324
    %3425 = vmatprep.subr.mxu0 0.0
    %3426 = vmatpush1.msra.mxu0 %v3325
    %3427 = vmatprep.subr.mxu0 0.0
    %3428 = vmatpush1.msra.mxu0 %v3326
    %3429 = vmatprep.subr.mxu0 0.0
    %3430 = vmatpush1.msra.mxu0 %v3327
    %3431 = vmatprep.subr.mxu0 0.0
    %3432 = vmatpush1.msra.mxu0 0.0
    %3433 = vmatprep.subr.mxu0 0.0
    %3434 = vmatpush1.msra.mxu0 0.0
    %3435 = vmatprep.subr.mxu0 0.0
    %3436 = vmatpush1.msra.mxu0 0.0
    %3437 = vmatprep.subr.mxu0 0.0
    %3438 = vmatpush1.msra.mxu0 0.0
    %3439 = vmatprep.subr.mxu0 0.0
    %3440 = vmatpush1.msra.mxu0 0.0
    %3441 = vmatprep.subr.mxu0 0.0
    %3442 = vmatpush1.msra.mxu0 0.0
    %3443 = vmatprep.subr.mxu0 0.0
    %3444 = vmatpush1.msra.mxu0 0.0
    %3445 = vmatprep.subr.mxu0 0.0
    %3446 = vmatpush1.msra.mxu0 0.0
    %3447 = vmatprep.subr.mxu0 0.0
    %3448 = vmatpush1.msra.mxu0 0.0
    %3449 = vmatprep.subr.mxu0 0.0
    %3450 = vmatpush1.msra.mxu0 0.0
    %3451 = vmatprep.subr.mxu0 0.0
    %3452 = vmatpush1.msra.mxu0 0.0
    %3453 = vmatprep.subr.mxu0 0.0
    %3454 = vmatpush1.msra.mxu0 0.0
    %3455 = vmatprep.subr.mxu0 0.0
    %3456 = vmatpush1.msra.mxu0 0.0
    %3457 = vmatprep.subr.mxu0 0.0
    %3458 = vmatpush1.msra.mxu0 0.0
    %3459 = vmatprep.subr.mxu0 0.0
    %3460 = vmatpush1.msra.mxu0 0.0
    %3461 = vmatprep.subr.mxu0 0.0
    %3462 = vmatpush1.msra.mxu0 0.0
    %3463 = vmatprep.mubr.f32.mxu0 0.0
    %3464 = vmatmul.mubr.f32.gmra.mrb[0].mxu0 %v3278
    %v3465 = vpop.f32.mrb[0].mxu0
    %v3466 = vadd.f32 0.0, %v3465
    %v3467 = vpop.f32.mrb[0].mxu0
    %3468 = vdwg.mxu0
    %v3469 = vmul.f32 %v3466, 0.125
    %v3470 = vmul.f32 %v3398, %v3398
    %v3471 = vsub.f32 %v3469, %v3470
    %v3472 = vadd.f32 %v3471, 1e-05
    %v3473 = vrsqrt.pop %v3472
    %v3474 = vlaneseq
    %v3475 = vshrl.u32 %v3474, 7
    %v3476 = vsub.s32 0, %v3475
    %v3477 = vrot.slane %v3398, %v3476
    %v3478 = vsub.f32 %v3263, %v3477
    %v3479 = vld [vmem:[%s9] sm:$0x1]
    %v3480 = vmul.f32 %v3473, %v3479
    %v3481 = vlaneseq
    %v3482 = vshrl.u32 %v3481, 7
    %v3483 = vsub.s32 0, %v3482
    %v3484 = vrot.slane %v3480, %v3483
    %v3485 = vmul.f32 %v3478, %v3484
    %v3486 = vld [vmem:[%s10] sm:$0x1]
    %v3488 = vlaneseq
    %v3489 = vshrl.u32 %v3488, 7
    %v3490 = vsub.s32 0, %v3489
    %v3491 = vrot.slane %v3486, %v3490
    %v3493 = vadd.f32 %v3485, %v3491
    %vm3494 = vcmp.eq.s32.totalorder %v2638, 0
    %v3495 = vld [vmem:[%s11] sm:$0x1]
    %v3496 = vld [vmem:[%s11 + $0x1] sm:$0x1]
    %v3497 = vlaneseq
    %v3498 = vshrl.u32 %v3497, 7
    %v3499 = vsub.s32 0, %v3498
    %v3500 = vrot.slane %v3495, %v3499
    %v3501 = vlaneseq
    %v3502 = vshrl.u32 %v3501, 7
    %v3503 = vsub.s32 0, %v3502
    %v3504 = vrot.slane %v3496, %v3503
    %v3505 = vsel %vm3494, %v3500, %v3504
    %v3506 = vmul.f32 %v3493, %v3505
    %v3507 = vshra.s32 %v75, 1
    %vm3508 = vcmp.eq.s32.totalorder %v3507, %v70
    %v3509 = vsel %vm3508, 1.0, 0.0
    %vm3510 = vcmask 31744
    %v3512 = vsel %vm3510, %v3509, 0
    %v3515 = vsel %vm2652, %v3506, 0
    %3517 = vmatprep.subr.mxu0 0.0
    %3518 = vmatpush1.msra.mxu0 %v3515
    %3519 = vmatprep.subr.mxu0 0.0
    %3520 = vmatpush1.msra.mxu0 0.0
    %3521 = vmatprep.subr.mxu0 0.0
    %3522 = vmatpush1.msra.mxu0 0.0
    %3523 = vmatprep.subr.mxu0 0.0
    %3524 = vmatpush1.msra.mxu0 0.0
    %3525 = vmatprep.subr.mxu0 0.0
    %3526 = vmatpush1.msra.mxu0 0.0
    %3527 = vmatprep.subr.mxu0 0.0
    %3528 = vmatpush1.msra.mxu0 0.0
    %3529 = vmatprep.subr.mxu0 0.0
    %3530 = vmatpush1.msra.mxu0 0.0
    %3531 = vmatprep.subr.mxu0 0.0
    %3532 = vmatpush1.msra.mxu0 0.0
    %3533 = vmatprep.subr.mxu0 0.0
    %3534 = vmatpush1.msra.mxu0 0.0
    %3535 = vmatprep.subr.mxu0 0.0
    %3536 = vmatpush1.msra.mxu0 0.0
    %3537 = vmatprep.subr.mxu0 0.0
    %3538 = vmatpush1.msra.mxu0 0.0
    %3539 = vmatprep.subr.mxu0 0.0
    %3540 = vmatpush1.msra.mxu0 0.0
    %3541 = vmatprep.subr.mxu0 0.0
    %3542 = vmatpush1.msra.mxu0 0.0
    %3543 = vmatprep.subr.mxu0 0.0
    %3544 = vmatpush1.msra.mxu0 0.0
    %3545 = vmatprep.subr.mxu0 0.0
    %3546 = vmatpush1.msra.mxu0 0.0
    %3547 = vmatprep.subr.mxu0 0.0
    %3548 = vmatpush1.msra.mxu0 0.0
    %3549 = vmatprep.subr.mxu0 0.0
    %3550 = vmatpush1.msra.mxu0 0.0
    %3551 = vmatprep.subr.mxu0 0.0
    %3552 = vmatpush1.msra.mxu0 0.0
    %3553 = vmatprep.subr.mxu0 0.0
    %3554 = vmatpush1.msra.mxu0 0.0
    %3555 = vmatprep.subr.mxu0 0.0
    %3556 = vmatpush1.msra.mxu0 0.0
    %3557 = vmatprep.subr.mxu0 0.0
    %3558 = vmatpush1.msra.mxu0 0.0
    %3559 = vmatprep.subr.mxu0 0.0
    %3560 = vmatpush1.msra.mxu0 0.0
    %3561 = vmatprep.subr.mxu0 0.0
    %3562 = vmatpush1.msra.mxu0 0.0
    %3563 = vmatprep.subr.mxu0 0.0
    %3564 = vmatpush1.msra.mxu0 0.0
    %3565 = vmatprep.subr.mxu0 0.0
    %3566 = vmatpush1.msra.mxu0 0.0
    %3567 = vmatprep.subr.mxu0 0.0
    %3568 = vmatpush1.msra.mxu0 0.0
    %3569 = vmatprep.subr.mxu0 0.0
    %3570 = vmatpush1.msra.mxu0 0.0
    %3571 = vmatprep.subr.mxu0 0.0
    %3572 = vmatpush1.msra.mxu0 0.0
    %3573 = vmatprep.subr.mxu0 0.0
    %3574 = vmatpush1.msra.mxu0 0.0
    %3575 = vmatprep.subr.mxu0 0.0
    %3576 = vmatpush1.msra.mxu0 0.0
    %3577 = vmatprep.subr.mxu0 0.0
    %3578 = vmatpush1.msra.mxu0 0.0
    %3579 = vmatprep.subr.mxu0 0.0
    %3580 = vmatpush1.msra.mxu0 0.0
    %3581 = vmatprep.mubr.f32.mxu0 0.0
    %3582 = vmatmul.mubr.f32.gmra.mrb[0].mxu0 %v3512
    %v3583 = vpop.f32.mrb[0].mxu0
    %v3584 = vadd.f32 0.0, %v3583
    %v3585 = vpop.f32.mrb[0].mxu0
    %3586 = vdwg.mxu0
    %vm3587 = vcmask 1041408
    %v3588 = vsel %vm3587, %v3584, 0.0
    %3589 = vadd.xlane.f32.xlu0 %v3588
    %v3590 = vpop.xlane.xlu0 %3589
    %v3591 = vld [vmem:[#allocation2] sm:$0x1]
    %v3593 = vlaneseq
    %v3594 = vshrl.u32 %v3593, 7
    %v3595 = vsub.s32 0, %v3594
    %v3596 = vrot.slane %v3591, %v3595
    %v3598 = vadd.f32 %v3590, %v3596
    %vm3599 = vcmask 1024
    %3600 = vst.msk [vmem:[%s13] sm:$0x3] %vm3599, %v3598
    // Predicated region
    $region58: #{discriminator_forward.1} parent=1 // pred_check
      _
    $region59: #{discriminator_forward.1} parent=1 // pred_check_branch
      %3602 = sbr.rel (0) target = $region61
    $region60: #{discriminator_forward.1} parent=1 // pred_region
      _
    $region61: #{discriminator_forward.1} parent=1 // pred_fallthru
      _
    // Predicated region
    $region62: #{discriminator_forward.1} parent=1 // pred_check
      _
    $region63: #{discriminator_forward.1} parent=1 // pred_check_branch
      %3604 = sbr.rel (0) target = $region65
    $region64: #{discriminator_forward.1} parent=1 // pred_region
      _
    $region65: #{discriminator_forward.1} parent=1 // pred_fallthru
      _
    %3605 = vsyncpa [#allocation4], 1

</llo_original>
